<compile_context>
chip_gen: v7x
topology: tpu7x:2x2x1
jax: 0.10.0
libtpu: 0.0.40
codegen_flags: <defaults>
</compile_context>

<pallas_src>
import math

import jax
import jax.numpy as jnp
from jax.experimental import pallas as pl
from jax.experimental.pallas import tpu as pltpu

LN_EPS = 1e-5                      # PyTorch nn.LayerNorm default
VMEM_LIMIT = 32 * 1024 * 1024      # safe on v5e/v6e/v7x; raise on v5e/v6e (128 MiB) at scale


def _round_up(x, m):
    return (x + m - 1) // m * m


def _choose_b_tile(B, max_tile=8):
    """Largest divisor of B that is <= max_tile, preferring >= 2 grid steps (megacore)."""
    cands = [d for d in range(1, min(B, max_tile) + 1) if B % d == 0]
    pref = [d for d in cands if B // d >= 2]
    return max(pref) if pref else max(cands)


# ----------------------------- Pallas kernels ------------------------------

def _ln(x, gamma, beta):
    mu = jnp.mean(x, axis=-1, keepdims=True)
    var = jnp.mean((x - mu) ** 2, axis=-1, keepdims=True)
    return (x - mu) * jax.lax.rsqrt(var + LN_EPS) * gamma + beta


def make_patch_embed_kernel(f_real):
    """Fused LayerNorm(patch_dim) -> Linear(patch_dim, dim) over lane-padded features.
    LayerNorm statistics are computed with raw moments over the real feature
    count so zero-padded lanes do not change the result; gamma/beta/w are
    zero-padded so padded lanes contribute nothing to the matmul."""
    inv_f = 1.0 / float(f_real)

    def kernel(x_ref, g_ref, b_ref, w_ref, bias_ref, o_ref):
        x = x_ref[...]                                              # (tm, Fp) f32
        mu = jnp.sum(x, axis=-1, keepdims=True) * inv_f
        var = jnp.sum(x * x, axis=-1, keepdims=True) * inv_f - mu * mu
        y = (x - mu) * jax.lax.rsqrt(var + LN_EPS) * g_ref[...] + b_ref[...]
        o_ref[...] = jnp.dot(y.astype(jnp.bfloat16), w_ref[...],
                             preferred_element_type=jnp.float32) + bias_ref[...]

    return kernel


def make_layers_kernel(heads, dim_head, n_real):
    """All transformer layers in one kernel.  grid = (batch_tiles, depth); the
    activations stay resident in the xs VMEM scratch across the layer axis."""
    hd = heads * dim_head
    scale = dim_head ** -0.5

    def kernel(x_ref, ag_ref, ab_ref, wqkv_ref, wo_ref, bo_ref,
               fg_ref, fb_ref, w1_ref, b1_ref, w2_ref, b2_ref,
               o_ref, xs_ref):
        layer = pl.program_id(1)

        @pl.when(layer == 0)
        def _():
            xs_ref[...] = x_ref[...]

        bt, npad, d = xs_ref.shape
        rows = bt * npad
        x = xs_ref[...].reshape(rows, d)                            # (R, D) f32

        # ---------------- PreNorm multi-head attention ----------------
        xn = _ln(x, ag_ref[0], ab_ref[0])
        qkv = jnp.dot(xn.astype(jnp.bfloat16), wqkv_ref[0],
                      preferred_element_type=jnp.float32)           # (R, 3*H*dh)

        # split heads via static lane slices, batch them on the major axis
        qs, ks, vs = [], [], []
        for h in range(heads):
            lo = h * dim_head
            qs.append((qkv[:, lo:lo + dim_head] * scale)            # scale folded into q
                      .reshape(bt, npad, dim_head))
            ks.append(qkv[:, hd + lo:hd + lo + dim_head].reshape(bt, npad, dim_head))
            vs.append(qkv[:, 2 * hd + lo:2 * hd + lo + dim_head].reshape(bt, npad, dim_head))
        qh = jnp.concatenate(qs, axis=0).astype(jnp.bfloat16)       # (H*bt, npad, dh)
        kh = jnp.concatenate(ks, axis=0).astype(jnp.bfloat16)
        vh = jnp.concatenate(vs, axis=0).astype(jnp.bfloat16)

        s = jnp.einsum('bqe,bke->bqk', qh, kh,
                       preferred_element_type=jnp.float32)          # (H*bt, npad, npad)
        kmask = jax.lax.broadcasted_iota(jnp.int32, (1, 1, npad), 2) < n_real
        s = jnp.where(kmask, s, -1e30)                              # mask padded keys
        s = s - jnp.max(s, axis=-1, keepdims=True)
        p = jnp.exp(s)
        p = p * pl.reciprocal(jnp.sum(p, axis=-1, keepdims=True), approx=True)

        o = jnp.einsum('bqk,bke->bqe', p.astype(jnp.bfloat16), vh,
                       preferred_element_type=jnp.float32)          # (H*bt, npad, dh)
        # repack heads into lanes -> (R, H*dh), single fused output projection
        o = jnp.concatenate(
            [o[h * bt:(h + 1) * bt].reshape(rows, dim_head) for h in range(heads)],
            axis=-1)
        attn = jnp.dot(o.astype(jnp.bfloat16), wo_ref[0],
                       preferred_element_type=jnp.float32) + bo_ref[0]
        x = attn + x                                                 # residual

        # ---------------- PreNorm FeedForward ----------------
        xn2 = _ln(x, fg_ref[0], fb_ref[0])
        h1 = jnp.dot(xn2.astype(jnp.bfloat16), w1_ref[0],
                     preferred_element_type=jnp.float32) + b1_ref[0]
        # TODO(synk): PyTorch nn.GELU() default is the exact erf form; tanh approximation used here.
        h1 = 0.5 * h1 * (1.0 + jnp.tanh(0.7978845608028654 *
                                        (h1 + 0.044715 * h1 * h1 * h1)))
        x = jnp.dot(h1.astype(jnp.bfloat16), w2_ref[0],
                    preferred_element_type=jnp.float32) + b2_ref[0] + x

        x = x.reshape(bt, npad, d)
        xs_ref[...] = x

        @pl.when(layer == pl.num_programs(1) - 1)
        def _():
            o_ref[...] = x

    return kernel


# ----------------------------- pallas_call wrappers -------------------------

def patch_embed(x2d, gamma, beta, w, bias, *, tile_m=512):
    """Row-tiled fused LayerNorm + Linear over (M, F) -> (M, D), lane-padded F."""
    M, F = x2d.shape
    D = w.shape[1]
    Fp = _round_up(F, 128)
    if Fp != F:
        x2d = jnp.pad(x2d, ((0, 0), (0, Fp - F)))
        gamma = jnp.pad(gamma, (0, Fp - F))
        beta = jnp.pad(beta, (0, Fp - F))
        w = jnp.pad(w, ((0, Fp - F), (0, 0)))
    # row tile: keep >= 2 grid steps when possible (v7x megacore), multiples of 8
    if M > 8:
        tm = min(tile_m, _round_up((M + 1) // 2, 8))
    else:
        tm = _round_up(M, 8)
    Mp = _round_up(M, tm)
    if Mp != M:
        x2d = jnp.pad(x2d, ((0, Mp - M), (0, 0)))

    out = pl.pallas_call(
        make_patch_embed_kernel(F),
        out_shape=jax.ShapeDtypeStruct((Mp, D), jnp.float32),
        grid=(Mp // tm,),
        in_specs=[
            pl.BlockSpec((tm, Fp), lambda i: (i, 0)),
            pl.BlockSpec((1, Fp), lambda i: (0, 0)),
            pl.BlockSpec((1, Fp), lambda i: (0, 0)),
            pl.BlockSpec((Fp, D), lambda i: (0, 0)),
            pl.BlockSpec((1, D), lambda i: (0, 0)),
        ],
        out_specs=pl.BlockSpec((tm, D), lambda i: (i, 0)),
        compiler_params=pltpu.CompilerParams(
            dimension_semantics=("parallel",),
            vmem_limit_bytes=VMEM_LIMIT),
    )(x2d, gamma.reshape(1, Fp), beta.reshape(1, Fp),
      w.astype(jnp.bfloat16), bias.reshape(1, D))
    return out[:M]


def time_mlp(t_emb, p):
    """Tiny (set_b, dim) MLP: plain JAX — kernel dispatch would dwarf the compute."""
    h = t_emb @ p["w1"] + p["b1"]
    h = h * jax.nn.sigmoid(h)                 # SiLU
    return h @ p["w2"] + p["b2"]


def transformer(x, layers, *, heads, dim_head, n_real):
    """All layers in one pallas_call: grid=(batch_tiles, depth), x resident in VMEM."""
    B, Npad, D = x.shape
    depth = len(layers)
    hd = heads * dim_head
    mlp = layers[0]["ff"]["w1"].shape[1]
    bf = jnp.bfloat16
    stk = lambda f: jnp.stack([f(l) for l in layers], axis=0)

    wqkv = stk(lambda l: l["attn"]["wqkv"]).astype(bf)              # (depth, D, 3*hd)
    wo = stk(lambda l: l["attn"]["wo"]).astype(bf)                  # (depth, hd, D)
    bo = stk(lambda l: l["attn"]["bo"].reshape(1, D))               # (depth, 1, D)
    ag = stk(lambda l: l["attn"]["ln_g"].reshape(1, D))
    ab = stk(lambda l: l["attn"]["ln_b"].reshape(1, D))
    fg = stk(lambda l: l["ff"]["ln_g"].reshape(1, D))
    fb = stk(lambda l: l["ff"]["ln_b"].reshape(1, D))
    w1 = stk(lambda l: l["ff"]["w1"]).astype(bf)                    # (depth, D, mlp)
    b1 = stk(lambda l: l["ff"]["b1"].reshape(1, mlp))
    w2 = stk(lambda l: l["ff"]["w2"]).astype(bf)                    # (depth, mlp, D)
    b2 = stk(lambda l: l["ff"]["b2"].reshape(1, D))

    b_tile = _choose_b_tile(B)
    grid = (B // b_tile, depth)

    x_spec = pl.BlockSpec((b_tile, Npad, D), lambda i, l: (i, 0, 0))
    wspec = lambda s: pl.BlockSpec((1,) + s, lambda i, l: (l, 0, 0))

    return pl.pallas_call(
        make_layers_kernel(heads, dim_head, n_real),
        out_shape=jax.ShapeDtypeStruct((B, Npad, D), jnp.float32),
        grid=grid,
        in_specs=[
            x_spec,
            wspec((1, D)), wspec((1, D)),                           # attn LN gamma/beta
            wspec((D, 3 * hd)), wspec((hd, D)), wspec((1, D)),      # wqkv, wo, bo
            wspec((1, D)), wspec((1, D)),                           # ff LN gamma/beta
            wspec((D, mlp)), wspec((1, mlp)),                       # w1, b1
            wspec((mlp, D)), wspec((1, D)),                         # w2, b2
        ],
        out_specs=x_spec,
        scratch_shapes=[pltpu.VMEM((b_tile, Npad, D), jnp.float32)],
        input_output_aliases={0: 0},                                # reuse x's HBM buffer
        compiler_params=pltpu.CompilerParams(
            dimension_semantics=("parallel", "arbitrary"),
            vmem_limit_bytes=VMEM_LIMIT),
    )(x, ag, ab, wqkv, wo, bo, fg, fb, w1, b1, w2, b2)


# ----------------------------- model (glue in plain JAX) --------------------

def timestep_embedding(timesteps, dim, max_period=10000.0):
    half = dim // 2
    freqs = jnp.exp(-math.log(max_period) * jnp.arange(half, dtype=jnp.float32) / half)
    args = timesteps.astype(jnp.float32)[:, None] * freqs[None, :]
    return jnp.concatenate([jnp.cos(args), jnp.sin(args)], axis=-1)


def init_params(key, *, dim, depth, heads, dim_head, mlp_dim, patch_dim, num_patches):
    inner = heads * dim_head
    keys = iter(jax.random.split(key, 5 + depth * 4))
    nrm = lambda k, s, std=0.02: (std * jax.random.normal(k, s)).astype(jnp.float32)

    params = {
        "patch": {
            "ln_g": jnp.ones((patch_dim,), jnp.float32),
            "ln_b": jnp.zeros((patch_dim,), jnp.float32),
            "w": nrm(next(keys), (patch_dim, dim)),
            "b": jnp.zeros((dim,), jnp.float32),
        },
        "pos_embedding": jax.random.normal(next(keys), (1, num_patches + 1, dim), jnp.float32),
        "cls_token": jax.random.normal(next(keys), (1, 1, dim), jnp.float32),
        "time": {
            "w1": nrm(next(keys), (dim, dim)), "b1": jnp.zeros((dim,), jnp.float32),
            "w2": nrm(next(keys), (dim, dim)), "b2": jnp.zeros((dim,), jnp.float32),
        },
        "layers": [],
    }
    for _ in range(depth):
        params["layers"].append({
            "attn": {
                "ln_g": jnp.ones((dim,), jnp.float32),
                "ln_b": jnp.zeros((dim,), jnp.float32),
                "wqkv": nrm(next(keys), (dim, 3 * inner)),   # fused Q|K|V (head-major lanes)
                "wo": nrm(next(keys), (inner, dim)),
                "bo": jnp.zeros((dim,), jnp.float32),
            },
            "ff": {
                "ln_g": jnp.ones((dim,), jnp.float32),
                "ln_b": jnp.zeros((dim,), jnp.float32),
                "w1": nrm(next(keys), (dim, mlp_dim)),
                "b1": jnp.zeros((mlp_dim,), jnp.float32),
                "w2": nrm(next(keys), (mlp_dim, dim)),
                "b2": jnp.zeros((dim,), jnp.float32),
            },
        })
    return params


def svit_forward(params, imgs, timestep, *, dim, patch_size, heads, dim_head, pool="cls"):
    set_b, b, C, H, W = imgs.shape
    p = patch_size

    # timestep embedding + time MLP (plain JAX)
    t_emb = timestep_embedding(timestep, dim)                       # (set_b, dim)
    timestep_embed = time_mlp(t_emb, params["time"])                # (set_b, dim)

    # patchify: 'b c (h p1) (w p2) -> b (h w) (p1 p2 c)'
    x = imgs.reshape(set_b * b, C, H, W)
    hh, ww = H // p, W // p
    x = x.reshape(set_b * b, C, hh, p, ww, p)
    x = x.transpose(0, 2, 4, 3, 5, 1)
    x = x.reshape(set_b * b, hh * ww, p * p * C)                    # (B, n, patch_dim)

    B, n, F = x.shape
    pp = params["patch"]
    tokens = patch_embed(x.reshape(B * n, F), pp["ln_g"], pp["ln_b"], pp["w"], pp["b"])
    tokens = tokens.reshape(B, n, dim)

    cls = jnp.broadcast_to(params["cls_token"], (B, 1, dim))
    x = jnp.concatenate([cls, tokens], axis=1)                      # (B, n+1, dim)
    n1 = n + 1

    x = x.reshape(set_b, b * n1, dim) + timestep_embed[:, None, :]
    x = x.reshape(set_b * b, n1, dim) + params["pos_embedding"][:, :n1]
    # dropout(p=0.0) -> identity

    # pad tokens to a sublane multiple; padded keys are masked inside the kernel
    n_pad = _round_up(n1, 8)
    if n_pad != n1:
        x = jnp.pad(x, ((0, 0), (0, n_pad - n1), (0, 0)))

    x = transformer(x, params["layers"], heads=heads, dim_head=dim_head, n_real=n1)

    x = x[:, :n1]
    x = x.reshape(set_b, b, n1, dim)
    x = x.mean(axis=1) if pool == "mean" else x[:, 0]
    return x.reshape(set_b, n1, dim)


# ----------------------------- demo ------------------------------------------

if __name__ == "__main__":
    # small but lane-dense config: dim is a multiple of 128, dim_head = 64
    image_size, patch_size, channels = 16, 4, 3
    dim, depth, heads, dim_head, mlp_dim = 128, 2, 2, 64, 256
    set_b, b = 2, 2
    num_patches = (image_size // patch_size) ** 2
    patch_dim = channels * patch_size * patch_size

    key = jax.random.PRNGKey(0)
    k_param, k_img = jax.random.split(key)
    params = init_params(k_param, dim=dim, depth=depth, heads=heads, dim_head=dim_head,
                         mlp_dim=mlp_dim, patch_dim=patch_dim, num_patches=num_patches)

    imgs = jax.random.normal(k_img, (set_b, b, channels, image_size, image_size), jnp.float32)
    timestep = jnp.array([0.0, 10.0], dtype=jnp.float32)

    fwd = jax.jit(lambda pr, im, ts: svit_forward(
        pr, im, ts, dim=dim, patch_size=patch_size, heads=heads, dim_head=dim_head, pool="cls"))

    out = fwd(params, imgs, timestep)
    out = jax.block_until_ready(out)

    assert out.shape == (set_b, num_patches + 1, dim), out.shape
    assert jnp.all(jnp.isfinite(out))
    print("KERNEL_OK")
</pallas_src>

<mosaic_0001>
module attributes {stable_mosaic.version = 11 : i64} {
  func.func @kernel(%arg0: i32, %arg1: memref<32x128xf32, #tpu.memory_space<vmem>>, %arg2: memref<1x128xf32, #tpu.memory_space<vmem>>, %arg3: memref<1x128xf32, #tpu.memory_space<vmem>>, %arg4: memref<128x128xbf16, #tpu.memory_space<vmem>>, %arg5: memref<1x128xf32, #tpu.memory_space<vmem>>, %arg6: memref<32x128xf32, #tpu.memory_space<vmem>>) attributes {dimension_semantics = [#tpu.dimension_semantics<parallel>], iteration_bounds = array<i64: 2>, scalar_prefetch = 0 : i64, scratch_operands = 0 : i64, tpu.core_type = #tpu.core_type<tc>, window_params = [{transform_indices = @transform_0, window_bounds = array<i64: 32, 128>}, {pipeline_mode = #tpu.pipeline_mode<synchronous>, transform_indices = @transform_1, window_bounds = array<i64: 1, 128>}, {pipeline_mode = #tpu.pipeline_mode<synchronous>, transform_indices = @transform_2, window_bounds = array<i64: 1, 128>}, {pipeline_mode = #tpu.pipeline_mode<synchronous>, transform_indices = @transform_3, window_bounds = array<i64: 128, 128>}, {pipeline_mode = #tpu.pipeline_mode<synchronous>, transform_indices = @transform_4, window_bounds = array<i64: 1, 128>}, {transform_indices = @transform_5, window_bounds = array<i64: 32, 128>}]} {
    %c0 = arith.constant 0 : index
    %c0_0 = arith.constant 0 : index
    %0 = vector.load %arg1[%c0, %c0_0] : memref<32x128xf32, #tpu.memory_space<vmem>>, vector<32x128xf32>
    %cst = arith.constant dense<0.000000e+00> : vector<32xf32>
    %1 = vector.multi_reduction <add>, %0, %cst [1] : vector<32x128xf32> to vector<32xf32>
    %2 = vector.shape_cast %1 : vector<32xf32> to vector<32x1xf32>
    %cst_1 = arith.constant 0.020833334 : f32
    %3 = vector.broadcast %cst_1 : f32 to vector<32x1xf32>
    %4 = arith.mulf %2, %3 : vector<32x1xf32>
    %5 = arith.mulf %0, %0 : vector<32x128xf32>
    %cst_2 = arith.constant dense<0.000000e+00> : vector<32xf32>
    %6 = vector.multi_reduction <add>, %5, %cst_2 [1] : vector<32x128xf32> to vector<32xf32>
    %7 = vector.shape_cast %6 : vector<32xf32> to vector<32x1xf32>
    %cst_3 = arith.constant 0.020833334 : f32
    %8 = vector.broadcast %cst_3 : f32 to vector<32x1xf32>
    %9 = arith.mulf %7, %8 : vector<32x1xf32>
    %10 = arith.mulf %4, %4 : vector<32x1xf32>
    %11 = arith.subf %9, %10 : vector<32x1xf32>
    %12 = vector.broadcast %4 : vector<32x1xf32> to vector<32x128xf32>
    %13 = arith.subf %0, %12 : vector<32x128xf32>
    %cst_4 = arith.constant 9.99999974E-6 : f32
    %14 = vector.broadcast %cst_4 : f32 to vector<32x1xf32>
    %15 = arith.addf %11, %14 : vector<32x1xf32>
    %16 = math.rsqrt %15 : vector<32x1xf32>
    %17 = vector.broadcast %16 : vector<32x1xf32> to vector<32x128xf32>
    %18 = arith.mulf %13, %17 : vector<32x128xf32>
    %c0_5 = arith.constant 0 : index
    %c0_6 = arith.constant 0 : index
    %19 = vector.load %arg2[%c0_5, %c0_6] : memref<1x128xf32, #tpu.memory_space<vmem>>, vector<1x128xf32>
    %20 = vector.broadcast %19 : vector<1x128xf32> to vector<32x128xf32>
    %21 = arith.mulf %18, %20 : vector<32x128xf32>
    %c0_7 = arith.constant 0 : index
    %c0_8 = arith.constant 0 : index
    %22 = vector.load %arg3[%c0_7, %c0_8] : memref<1x128xf32, #tpu.memory_space<vmem>>, vector<1x128xf32>
    %23 = vector.broadcast %22 : vector<1x128xf32> to vector<32x128xf32>
    %24 = arith.addf %21, %23 : vector<32x128xf32>
    %25 = arith.truncf %24 : vector<32x128xf32> to vector<32x128xbf16>
    %c0_9 = arith.constant 0 : index
    %c0_10 = arith.constant 0 : index
    %26 = vector.load %arg4[%c0_9, %c0_10] : memref<128x128xbf16, #tpu.memory_space<vmem>>, vector<128x128xbf16>
    %cst_11 = arith.constant dense<0.000000e+00> : vector<32x128xf32>
    %27 = tpu.matmul %25, %26, %cst_11 {dimension_numbers = #tpu.dot_dimension_numbers<[1], [0], [0], [1], [0, 0, 1, 1], [], []>} : vector<32x128xbf16>, vector<128x128xbf16>, vector<32x128xf32> -> vector<32x128xf32>
    %c0_12 = arith.constant 0 : index
    %c0_13 = arith.constant 0 : index
    %28 = vector.load %arg5[%c0_12, %c0_13] : memref<1x128xf32, #tpu.memory_space<vmem>>, vector<1x128xf32>
    %29 = vector.broadcast %28 : vector<1x128xf32> to vector<32x128xf32>
    %30 = arith.addf %27, %29 : vector<32x128xf32>
    %c0_14 = arith.constant 0 : index
    %c0_15 = arith.constant 0 : index
    %31 = vector.load %arg6[%c0_14, %c0_15] : memref<32x128xf32, #tpu.memory_space<vmem>>, vector<32x128xf32>
    tpu.vector_store %arg6[%c0_14, %c0_15], %30 {strides = array<i32>} : memref<32x128xf32, #tpu.memory_space<vmem>>, vector<32x128xf32>,
    return
  }
  func.func @transform_0(%arg0: i32) -> (i32, i32) {
    %c0_i32 = arith.constant 0 : i32
    %c0_i32_0 = arith.constant 0 : i32
    return %arg0, %c0_i32 : i32, i32
  }
  func.func @transform_1(%arg0: i32) -> (i32, i32) {
    %c0_i32 = arith.constant 0 : i32
    %c0_i32_0 = arith.constant 0 : i32
    %c0_i32_1 = arith.constant 0 : i32
    return %c0_i32, %c0_i32_0 : i32, i32
  }
  func.func @transform_2(%arg0: i32) -> (i32, i32) {
    %c0_i32 = arith.constant 0 : i32
    %c0_i32_0 = arith.constant 0 : i32
    %c0_i32_1 = arith.constant 0 : i32
    return %c0_i32, %c0_i32_0 : i32, i32
  }
  func.func @transform_3(%arg0: i32) -> (i32, i32) {
    %c0_i32 = arith.constant 0 : i32
    %c0_i32_0 = arith.constant 0 : i32
    %c0_i32_1 = arith.constant 0 : i32
    return %c0_i32, %c0_i32_0 : i32, i32
  }
  func.func @transform_4(%arg0: i32) -> (i32, i32) {
    %c0_i32 = arith.constant 0 : i32
    %c0_i32_0 = arith.constant 0 : i32
    %c0_i32_1 = arith.constant 0 : i32
    return %c0_i32, %c0_i32_0 : i32, i32
  }
  func.func @transform_5(%arg0: i32) -> (i32, i32) {
    %c0_i32 = arith.constant 0 : i32
    %c0_i32_0 = arith.constant 0 : i32
    return %arg0, %c0_i32 : i32, i32
  }
}

module attributes {stable_mosaic.version = 11 : i64} {
  func.func @kernel(%arg0: i32, %arg1: i32, %arg2: memref<2x24x128xf32, #tpu.memory_space<vmem>>, %arg3: memref<1x1x128xf32, #tpu.memory_space<vmem>>, %arg4: memref<1x1x128xf32, #tpu.memory_space<vmem>>, %arg5: memref<1x128x384xbf16, #tpu.memory_space<vmem>>, %arg6: memref<1x128x128xbf16, #tpu.memory_space<vmem>>, %arg7: memref<1x1x128xf32, #tpu.memory_space<vmem>>, %arg8: memref<1x1x128xf32, #tpu.memory_space<vmem>>, %arg9: memref<1x1x128xf32, #tpu.memory_space<vmem>>, %arg10: memref<1x128x256xbf16, #tpu.memory_space<vmem>>, %arg11: memref<1x1x256xf32, #tpu.memory_space<vmem>>, %arg12: memref<1x256x128xbf16, #tpu.memory_space<vmem>>, %arg13: memref<1x1x128xf32, #tpu.memory_space<vmem>>, %arg14: memref<2x24x128xf32, #tpu.memory_space<vmem>>, %arg15: memref<2x24x128xf32, #tpu.memory_space<vmem>>) attributes {dimension_semantics = [#tpu.dimension_semantics<parallel>, #tpu.dimension_semantics<arbitrary>], iteration_bounds = array<i64: 2, 2>, scalar_prefetch = 0 : i64, scratch_operands = 1 : i64, tpu.core_type = #tpu.core_type<tc>, window_params = [{transform_indices = @transform_0, window_bounds = array<i64: 2, 24, 128>}, {transform_indices = @transform_1, window_bounds = array<i64: 1, 1, 128>}, {transform_indices = @transform_2, window_bounds = array<i64: 1, 1, 128>}, {transform_indices = @transform_3, window_bounds = array<i64: 1, 128, 384>}, {transform_indices = @transform_4, window_bounds = array<i64: 1, 128, 128>}, {transform_indices = @transform_5, window_bounds = array<i64: 1, 1, 128>}, {transform_indices = @transform_6, window_bounds = array<i64: 1, 1, 128>}, {transform_indices = @transform_7, window_bounds = array<i64: 1, 1, 128>}, {transform_indices = @transform_8, window_bounds = array<i64: 1, 128, 256>}, {transform_indices = @transform_9, window_bounds = array<i64: 1, 1, 256>}, {transform_indices = @transform_10, window_bounds = array<i64: 1, 256, 128>}, {transform_indices = @transform_11, window_bounds = array<i64: 1, 1, 128>}, {transform_indices = @transform_12, window_bounds = array<i64: 2, 24, 128>}]} {
    %c0_i32 = arith.constant 0 : i32
    %0 = arith.cmpi eq, %arg1, %c0_i32 : i32
    %1 = arith.extui %0 : i1 to i32
    %c0_i32_0 = arith.constant 0 : i32
    %2 = arith.cmpi ne, %1, %c0_i32_0 : i32
    scf.if %2 {
      %c0_64 = arith.constant 0 : index
      %c0_65 = arith.constant 0 : index
      %c0_66 = arith.constant 0 : index
      %152 = vector.load %arg2[%c0_64, %c0_65, %c0_66] : memref<2x24x128xf32, #tpu.memory_space<vmem>>, vector<2x24x128xf32>
      %c0_67 = arith.constant 0 : index
      %c0_68 = arith.constant 0 : index
      %c0_69 = arith.constant 0 : index
      %153 = vector.load %arg15[%c0_67, %c0_68, %c0_69] : memref<2x24x128xf32, #tpu.memory_space<vmem>>, vector<2x24x128xf32>
      tpu.vector_store %arg15[%c0_67, %c0_68, %c0_69], %152 {strides = array<i32>} : memref<2x24x128xf32, #tpu.memory_space<vmem>>, vector<2x24x128xf32>,
    } else {
    }
    %c0 = arith.constant 0 : index
    %c0_1 = arith.constant 0 : index
    %c0_2 = arith.constant 0 : index
    %3 = vector.load %arg15[%c0, %c0_1, %c0_2] : memref<2x24x128xf32, #tpu.memory_space<vmem>>, vector<2x24x128xf32>
    %4 = vector.shape_cast %3 : vector<2x24x128xf32> to vector<48x128xf32>
    %c0_3 = arith.constant 0 : index
    %c0_4 = arith.constant 0 : index
    %c0_5 = arith.constant 0 : index
    %5 = vector.load %arg3[%c0_3, %c0_4, %c0_5] : memref<1x1x128xf32, #tpu.memory_space<vmem>>, vector<1x1x128xf32>
    %6 = vector.shape_cast %5 : vector<1x1x128xf32> to vector<1x128xf32>
    %c0_6 = arith.constant 0 : index
    %c0_7 = arith.constant 0 : index
    %c0_8 = arith.constant 0 : index
    %7 = vector.load %arg4[%c0_6, %c0_7, %c0_8] : memref<1x1x128xf32, #tpu.memory_space<vmem>>, vector<1x1x128xf32>
    %8 = vector.shape_cast %7 : vector<1x1x128xf32> to vector<1x128xf32>
    %cst = arith.constant dense<0.000000e+00> : vector<48xf32>
    %9 = vector.multi_reduction <add>, %4, %cst [1] : vector<48x128xf32> to vector<48xf32>
    %10 = vector.shape_cast %9 : vector<48xf32> to vector<48x1xf32>
    %cst_9 = arith.constant 1.280000e+02 : f32
    %11 = vector.broadcast %cst_9 : f32 to vector<48x1xf32>
    %12 = arith.divf %10, %11 : vector<48x1xf32>
    %13 = vector.broadcast %12 : vector<48x1xf32> to vector<48x128xf32>
    %14 = arith.subf %4, %13 : vector<48x128xf32>
    %15 = arith.mulf %14, %14 : vector<48x128xf32>
    %cst_10 = arith.constant dense<0.000000e+00> : vector<48xf32>
    %16 = vector.multi_reduction <add>, %15, %cst_10 [1] : vector<48x128xf32> to vector<48xf32>
    %17 = vector.shape_cast %16 : vector<48xf32> to vector<48x1xf32>
    %cst_11 = arith.constant 1.280000e+02 : f32
    %18 = vector.broadcast %cst_11 : f32 to vector<48x1xf32>
    %19 = arith.divf %17, %18 : vector<48x1xf32>
    %20 = vector.broadcast %12 : vector<48x1xf32> to vector<48x128xf32>
    %21 = arith.subf %4, %20 : vector<48x128xf32>
    %cst_12 = arith.constant 9.99999974E-6 : f32
    %22 = vector.broadcast %cst_12 : f32 to vector<48x1xf32>
    %23 = arith.addf %19, %22 : vector<48x1xf32>
    %24 = math.rsqrt %23 : vector<48x1xf32>
    %25 = vector.broadcast %24 : vector<48x1xf32> to vector<48x128xf32>
    %26 = arith.mulf %21, %25 : vector<48x128xf32>
    %27 = vector.broadcast %6 : vector<1x128xf32> to vector<48x128xf32>
    %28 = arith.mulf %26, %27 : vector<48x128xf32>
    %29 = vector.broadcast %8 : vector<1x128xf32> to vector<48x128xf32>
    %30 = arith.addf %28, %29 : vector<48x128xf32>
    %31 = arith.truncf %30 : vector<48x128xf32> to vector<48x128xbf16>
    %c0_13 = arith.constant 0 : index
    %c0_14 = arith.constant 0 : index
    %c0_15 = arith.constant 0 : index
    %32 = vector.load %arg5[%c0_13, %c0_14, %c0_15] : memref<1x128x384xbf16, #tpu.memory_space<vmem>>, vector<1x128x384xbf16>
    %33 = vector.shape_cast %32 : vector<1x128x384xbf16> to vector<128x384xbf16>
    %cst_16 = arith.constant dense<0.000000e+00> : vector<48x384xf32>
    %34 = tpu.matmul %31, %33, %cst_16 {dimension_numbers = #tpu.dot_dimension_numbers<[1], [0], [0], [1], [0, 0, 1, 1], [], []>} : vector<48x128xbf16>, vector<128x384xbf16>, vector<48x384xf32> -> vector<48x384xf32>
    %35 = vector.extract_strided_slice %34 {offsets = [0, 0], sizes = [48, 64], strides = [1, 1]} : vector<48x384xf32> to vector<48x64xf32>
    %cst_17 = arith.constant 1.250000e-01 : f32
    %36 = vector.broadcast %cst_17 : f32 to vector<48x64xf32>
    %37 = arith.mulf %35, %36 : vector<48x64xf32>
    %38 = vector.shape_cast %37 : vector<48x64xf32> to vector<2x24x64xf32>
    %39 = vector.extract_strided_slice %34 {offsets = [0, 128], sizes = [48, 64], strides = [1, 1]} : vector<48x384xf32> to vector<48x64xf32>
    %40 = vector.shape_cast %39 : vector<48x64xf32> to vector<2x24x64xf32>
    %41 = vector.extract_strided_slice %34 {offsets = [0, 256], sizes = [48, 64], strides = [1, 1]} : vector<48x384xf32> to vector<48x64xf32>
    %42 = vector.shape_cast %41 : vector<48x64xf32> to vector<2x24x64xf32>
    %43 = vector.extract_strided_slice %34 {offsets = [0, 64], sizes = [48, 64], strides = [1, 1]} : vector<48x384xf32> to vector<48x64xf32>
    %cst_18 = arith.constant 1.250000e-01 : f32
    %44 = vector.broadcast %cst_18 : f32 to vector<48x64xf32>
    %45 = arith.mulf %43, %44 : vector<48x64xf32>
    %46 = vector.shape_cast %45 : vector<48x64xf32> to vector<2x24x64xf32>
    %47 = vector.extract_strided_slice %34 {offsets = [0, 192], sizes = [48, 64], strides = [1, 1]} : vector<48x384xf32> to vector<48x64xf32>
    %48 = vector.shape_cast %47 : vector<48x64xf32> to vector<2x24x64xf32>
    %49 = vector.extract_strided_slice %34 {offsets = [0, 320], sizes = [48, 64], strides = [1, 1]} : vector<48x384xf32> to vector<48x64xf32>
    %50 = vector.shape_cast %49 : vector<48x64xf32> to vector<2x24x64xf32>
    %51 = tpu.concatenate %38, %46 in 0 : vector<2x24x64xf32>, vector<2x24x64xf32> -> vector<4x24x64xf32>
    %52 = arith.truncf %51 : vector<4x24x64xf32> to vector<4x24x64xbf16>
    %53 = tpu.concatenate %40, %48 in 0 : vector<2x24x64xf32>, vector<2x24x64xf32> -> vector<4x24x64xf32>
    %54 = arith.truncf %53 : vector<4x24x64xf32> to vector<4x24x64xbf16>
    %55 = tpu.concatenate %42, %50 in 0 : vector<2x24x64xf32>, vector<2x24x64xf32> -> vector<4x24x64xf32>
    %56 = arith.truncf %55 : vector<4x24x64xf32> to vector<4x24x64xbf16>
    "tpu.trace_start"() <{level = 10 : i32, message = "bqe,bke->bqk"}> : () -> ()
    %cst_19 = arith.constant dense<0.000000e+00> : vector<4x24x24xf32>
    %57 = tpu.matmul %52, %54, %cst_19 {dimension_numbers = #tpu.dot_dimension_numbers<[2], [2], [1], [1], [0, 0, 0, 1, 1, 1], [0], [0]>} : vector<4x24x64xbf16>, vector<4x24x64xbf16>, vector<4x24x24xf32> -> vector<4x24x24xf32>
    "tpu.trace_stop"() : () -> ()
    %58 = tpu.iota {dimensions = array<i32: 2>} : vector<1x1x24xi32>
    %c17_i32 = arith.constant 17 : i32
    %59 = vector.broadcast %c17_i32 : i32 to vector<1x1x24xi32>
    %60 = arith.cmpi slt, %58, %59 : vector<1x1x24xi32>
    %cst_20 = arith.constant -1.000000e+30 : f32
    %61 = vector.shape_cast %60 : vector<1x1x24xi1> to vector<1x1x24xi1>
    %62 = vector.broadcast %61 : vector<1x1x24xi1> to vector<4x24x24xi1>
    %63 = vector.broadcast %cst_20 : f32 to vector<4x24x24xf32>
    %64 = arith.select %62, %57, %63 : vector<4x24x24xi1>, vector<4x24x24xf32>
    %cst_21 = arith.constant dense<0xFF800000> : vector<4x24xf32>
    %65 = vector.multi_reduction <maximumf>, %64, %cst_21 [2] : vector<4x24x24xf32> to vector<4x24xf32>
    %66 = vector.shape_cast %65 : vector<4x24xf32> to vector<4x24x1xf32>
    %67 = vector.broadcast %66 : vector<4x24x1xf32> to vector<4x24x24xf32>
    %68 = arith.subf %64, %67 : vector<4x24x24xf32>
    %69 = math.exp %68 : vector<4x24x24xf32>
    %cst_22 = arith.constant dense<0.000000e+00> : vector<4x24xf32>
    %70 = vector.multi_reduction <add>, %69, %cst_22 [2] : vector<4x24x24xf32> to vector<4x24xf32>
    %71 = vector.shape_cast %70 : vector<4x24xf32> to vector<4x24x1xf32>
    %72 = tpu.reciprocal %71 {approx = true} : vector<4x24x1xf32> -> vector<4x24x1xf32>
    %73 = vector.broadcast %72 : vector<4x24x1xf32> to vector<4x24x24xf32>
    %74 = arith.mulf %69, %73 : vector<4x24x24xf32>
    %75 = arith.truncf %74 : vector<4x24x24xf32> to vector<4x24x24xbf16>
    "tpu.trace_start"() <{level = 10 : i32, message = "bqk,bke->bqe"}> : () -> ()
    %cst_23 = arith.constant dense<0.000000e+00> : vector<4x24x64xf32>
    %76 = tpu.matmul %75, %56, %cst_23 {dimension_numbers = #tpu.dot_dimension_numbers<[2], [1], [1], [2], [0, 0, 0, 1, 1, 2], [0], [0]>} : vector<4x24x24xbf16>, vector<4x24x64xbf16>, vector<4x24x64xf32> -> vector<4x24x64xf32>
    "tpu.trace_stop"() : () -> ()
    %77 = vector.extract_strided_slice %76 {offsets = [0, 0, 0], sizes = [2, 24, 64], strides = [1, 1, 1]} : vector<4x24x64xf32> to vector<2x24x64xf32>
    %78 = vector.shape_cast %77 : vector<2x24x64xf32> to vector<48x64xf32>
    %79 = vector.extract_strided_slice %76 {offsets = [2, 0, 0], sizes = [2, 24, 64], strides = [1, 1, 1]} : vector<4x24x64xf32> to vector<2x24x64xf32>
    %80 = vector.shape_cast %79 : vector<2x24x64xf32> to vector<48x64xf32>
    %81 = tpu.concatenate %78, %80 in 1 : vector<48x64xf32>, vector<48x64xf32> -> vector<48x128xf32>
    %82 = arith.truncf %81 : vector<48x128xf32> to vector<48x128xbf16>
    %c0_24 = arith.constant 0 : index
    %c0_25 = arith.constant 0 : index
    %c0_26 = arith.constant 0 : index
    %83 = vector.load %arg6[%c0_24, %c0_25, %c0_26] : memref<1x128x128xbf16, #tpu.memory_space<vmem>>, vector<1x128x128xbf16>
    %84 = vector.shape_cast %83 : vector<1x128x128xbf16> to vector<128x128xbf16>
    %cst_27 = arith.constant dense<0.000000e+00> : vector<48x128xf32>
    %85 = tpu.matmul %82, %84, %cst_27 {dimension_numbers = #tpu.dot_dimension_numbers<[1], [0], [0], [1], [0, 0, 1, 1], [], []>} : vector<48x128xbf16>, vector<128x128xbf16>, vector<48x128xf32> -> vector<48x128xf32>
    %c0_28 = arith.constant 0 : index
    %c0_29 = arith.constant 0 : index
    %c0_30 = arith.constant 0 : index
    %86 = vector.load %arg7[%c0_28, %c0_29, %c0_30] : memref<1x1x128xf32, #tpu.memory_space<vmem>>, vector<1x1x128xf32>
    %87 = vector.shape_cast %86 : vector<1x1x128xf32> to vector<1x128xf32>
    %88 = vector.broadcast %87 : vector<1x128xf32> to vector<48x128xf32>
    %89 = arith.addf %85, %88 : vector<48x128xf32>
    %90 = arith.addf %89, %4 : vector<48x128xf32>
    %c0_31 = arith.constant 0 : index
    %c0_32 = arith.constant 0 : index
    %c0_33 = arith.constant 0 : index
    %91 = vector.load %arg8[%c0_31, %c0_32, %c0_33] : memref<1x1x128xf32, #tpu.memory_space<vmem>>, vector<1x1x128xf32>
    %92 = vector.shape_cast %91 : vector<1x1x128xf32> to vector<1x128xf32>
    %c0_34 = arith.constant 0 : index
    %c0_35 = arith.constant 0 : index
    %c0_36 = arith.constant 0 : index
    %93 = vector.load %arg9[%c0_34, %c0_35, %c0_36] : memref<1x1x128xf32, #tpu.memory_space<vmem>>, vector<1x1x128xf32>
    %94 = vector.shape_cast %93 : vector<1x1x128xf32> to vector<1x128xf32>
    %cst_37 = arith.constant dense<0.000000e+00> : vector<48xf32>
    %95 = vector.multi_reduction <add>, %90, %cst_37 [1] : vector<48x128xf32> to vector<48xf32>
    %96 = vector.shape_cast %95 : vector<48xf32> to vector<48x1xf32>
    %cst_38 = arith.constant 1.280000e+02 : f32
    %97 = vector.broadcast %cst_38 : f32 to vector<48x1xf32>
    %98 = arith.divf %96, %97 : vector<48x1xf32>
    %99 = vector.broadcast %98 : vector<48x1xf32> to vector<48x128xf32>
    %100 = arith.subf %90, %99 : vector<48x128xf32>
    %101 = arith.mulf %100, %100 : vector<48x128xf32>
    %cst_39 = arith.constant dense<0.000000e+00> : vector<48xf32>
    %102 = vector.multi_reduction <add>, %101, %cst_39 [1] : vector<48x128xf32> to vector<48xf32>
    %103 = vector.shape_cast %102 : vector<48xf32> to vector<48x1xf32>
    %cst_40 = arith.constant 1.280000e+02 : f32
    %104 = vector.broadcast %cst_40 : f32 to vector<48x1xf32>
    %105 = arith.divf %103, %104 : vector<48x1xf32>
    %106 = vector.broadcast %98 : vector<48x1xf32> to vector<48x128xf32>
    %107 = arith.subf %90, %106 : vector<48x128xf32>
    %cst_41 = arith.constant 9.99999974E-6 : f32
    %108 = vector.broadcast %cst_41 : f32 to vector<48x1xf32>
    %109 = arith.addf %105, %108 : vector<48x1xf32>
    %110 = math.rsqrt %109 : vector<48x1xf32>
    %111 = vector.broadcast %110 : vector<48x1xf32> to vector<48x128xf32>
    %112 = arith.mulf %107, %111 : vector<48x128xf32>
    %113 = vector.broadcast %92 : vector<1x128xf32> to vector<48x128xf32>
    %114 = arith.mulf %112, %113 : vector<48x128xf32>
    %115 = vector.broadcast %94 : vector<1x128xf32> to vector<48x128xf32>
    %116 = arith.addf %114, %115 : vector<48x128xf32>
    %117 = arith.truncf %116 : vector<48x128xf32> to vector<48x128xbf16>
    %c0_42 = arith.constant 0 : index
    %c0_43 = arith.constant 0 : index
    %c0_44 = arith.constant 0 : index
    %118 = vector.load %arg10[%c0_42, %c0_43, %c0_44] : memref<1x128x256xbf16, #tpu.memory_space<vmem>>, vector<1x128x256xbf16>
    %119 = vector.shape_cast %118 : vector<1x128x256xbf16> to vector<128x256xbf16>
    %cst_45 = arith.constant dense<0.000000e+00> : vector<48x256xf32>
    %120 = tpu.matmul %117, %119, %cst_45 {dimension_numbers = #tpu.dot_dimension_numbers<[1], [0], [0], [1], [0, 0, 1, 1], [], []>} : vector<48x128xbf16>, vector<128x256xbf16>, vector<48x256xf32> -> vector<48x256xf32>
    %c0_46 = arith.constant 0 : index
    %c0_47 = arith.constant 0 : index
    %c0_48 = arith.constant 0 : index
    %121 = vector.load %arg11[%c0_46, %c0_47, %c0_48] : memref<1x1x256xf32, #tpu.memory_space<vmem>>, vector<1x1x256xf32>
    %122 = vector.shape_cast %121 : vector<1x1x256xf32> to vector<1x256xf32>
    %123 = vector.broadcast %122 : vector<1x256xf32> to vector<48x256xf32>
    %124 = arith.addf %120, %123 : vector<48x256xf32>
    %cst_49 = arith.constant 5.000000e-01 : f32
    %125 = vector.broadcast %cst_49 : f32 to vector<48x256xf32>
    %126 = arith.mulf %125, %124 : vector<48x256xf32>
    %cst_50 = arith.constant 4.471500e-02 : f32
    %127 = vector.broadcast %cst_50 : f32 to vector<48x256xf32>
    %128 = arith.mulf %127, %124 : vector<48x256xf32>
    %129 = arith.mulf %128, %124 : vector<48x256xf32>
    %130 = arith.mulf %129, %124 : vector<48x256xf32>
    %131 = arith.addf %124, %130 : vector<48x256xf32>
    %cst_51 = arith.constant 0.797884583 : f32
    %132 = vector.broadcast %cst_51 : f32 to vector<48x256xf32>
    %133 = arith.mulf %132, %131 : vector<48x256xf32>
    %134 = math.tanh %133 : vector<48x256xf32>
    %cst_52 = arith.constant 1.000000e+00 : f32
    %135 = vector.broadcast %cst_52 : f32 to vector<48x256xf32>
    %136 = arith.addf %135, %134 : vector<48x256xf32>
    %137 = arith.mulf %126, %136 : vector<48x256xf32>
    %138 = arith.truncf %137 : vector<48x256xf32> to vector<48x256xbf16>
    %c0_53 = arith.constant 0 : index
    %c0_54 = arith.constant 0 : index
    %c0_55 = arith.constant 0 : index
    %139 = vector.load %arg12[%c0_53, %c0_54, %c0_55] : memref<1x256x128xbf16, #tpu.memory_space<vmem>>, vector<1x256x128xbf16>
    %140 = vector.shape_cast %139 : vector<1x256x128xbf16> to vector<256x128xbf16>
    %cst_56 = arith.constant dense<0.000000e+00> : vector<48x128xf32>
    %141 = tpu.matmul %138, %140, %cst_56 {dimension_numbers = #tpu.dot_dimension_numbers<[1], [0], [0], [1], [0, 0, 1, 1], [], []>} : vector<48x256xbf16>, vector<256x128xbf16>, vector<48x128xf32> -> vector<48x128xf32>
    %c0_57 = arith.constant 0 : index
    %c0_58 = arith.constant 0 : index
    %c0_59 = arith.constant 0 : index
    %142 = vector.load %arg13[%c0_57, %c0_58, %c0_59] : memref<1x1x128xf32, #tpu.memory_space<vmem>>, vector<1x1x128xf32>
    %143 = vector.shape_cast %142 : vector<1x1x128xf32> to vector<1x128xf32>
    %144 = vector.broadcast %143 : vector<1x128xf32> to vector<48x128xf32>
    %145 = arith.addf %141, %144 : vector<48x128xf32>
    %146 = arith.addf %145, %90 : vector<48x128xf32>
    %147 = vector.shape_cast %146 : vector<48x128xf32> to vector<2x24x128xf32>
    %c0_60 = arith.constant 0 : index
    %c0_61 = arith.constant 0 : index
    %c0_62 = arith.constant 0 : index
    %148 = vector.load %arg15[%c0_60, %c0_61, %c0_62] : memref<2x24x128xf32, #tpu.memory_space<vmem>>, vector<2x24x128xf32>
    tpu.vector_store %arg15[%c0_60, %c0_61, %c0_62], %147 {strides = array<i32>} : memref<2x24x128xf32, #tpu.memory_space<vmem>>, vector<2x24x128xf32>,
    %c1_i32 = arith.constant 1 : i32
    %149 = arith.cmpi eq, %arg1, %c1_i32 : i32
    %150 = arith.extui %149 : i1 to i32
    %c0_i32_63 = arith.constant 0 : i32
    %151 = arith.cmpi ne, %150, %c0_i32_63 : i32
    scf.if %151 {
      %c0_64 = arith.constant 0 : index
      %c0_65 = arith.constant 0 : index
      %c0_66 = arith.constant 0 : index
      %152 = vector.load %arg14[%c0_64, %c0_65, %c0_66] : memref<2x24x128xf32, #tpu.memory_space<vmem>>, vector<2x24x128xf32>
      tpu.vector_store %arg14[%c0_64, %c0_65, %c0_66], %147 {strides = array<i32>} : memref<2x24x128xf32, #tpu.memory_space<vmem>>, vector<2x24x128xf32>,
    } else {
    }
    return
  }
  func.func @transform_0(%arg0: i32, %arg1: i32) -> (i32, i32, i32) {
    %c0_i32 = arith.constant 0 : i32
    %c0_i32_0 = arith.constant 0 : i32
    %c0_i32_1 = arith.constant 0 : i32
    return %arg0, %c0_i32, %c0_i32_0 : i32, i32, i32
  }
  func.func @transform_1(%arg0: i32, %arg1: i32) -> (i32, i32, i32) {
    %c0_i32 = arith.constant 0 : i32
    %c0_i32_0 = arith.constant 0 : i32
    %c0_i32_1 = arith.constant 0 : i32
    return %arg1, %c0_i32, %c0_i32_0 : i32, i32, i32
  }
  func.func @transform_2(%arg0: i32, %arg1: i32) -> (i32, i32, i32) {
    %c0_i32 = arith.constant 0 : i32
    %c0_i32_0 = arith.constant 0 : i32
    %c0_i32_1 = arith.constant 0 : i32
    return %arg1, %c0_i32, %c0_i32_0 : i32, i32, i32
  }
  func.func @transform_3(%arg0: i32, %arg1: i32) -> (i32, i32, i32) {
    %c0_i32 = arith.constant 0 : i32
    %c0_i32_0 = arith.constant 0 : i32
    %c0_i32_1 = arith.constant 0 : i32
    return %arg1, %c0_i32, %c0_i32_0 : i32, i32, i32
  }
  func.func @transform_4(%arg0: i32, %arg1: i32) -> (i32, i32, i32) {
    %c0_i32 = arith.constant 0 : i32
    %c0_i32_0 = arith.constant 0 : i32
    %c0_i32_1 = arith.constant 0 : i32
    return %arg1, %c0_i32, %c0_i32_0 : i32, i32, i32
  }
  func.func @transform_5(%arg0: i32, %arg1: i32) -> (i32, i32, i32) {
    %c0_i32 = arith.constant 0 : i32
    %c0_i32_0 = arith.constant 0 : i32
    %c0_i32_1 = arith.constant 0 : i32
    return %arg1, %c0_i32, %c0_i32_0 : i32, i32, i32
  }
  func.func @transform_6(%arg0: i32, %arg1: i32) -> (i32, i32, i32) {
    %c0_i32 = arith.constant 0 : i32
    %c0_i32_0 = arith.constant 0 : i32
    %c0_i32_1 = arith.constant 0 : i32
    return %arg1, %c0_i32, %c0_i32_0 : i32, i32, i32
  }
  func.func @transform_7(%arg0: i32, %arg1: i32) -> (i32, i32, i32) {
    %c0_i32 = arith.constant 0 : i32
    %c0_i32_0 = arith.constant 0 : i32
    %c0_i32_1 = arith.constant 0 : i32
    return %arg1, %c0_i32, %c0_i32_0 : i32, i32, i32
  }
  func.func @transform_8(%arg0: i32, %arg1: i32) -> (i32, i32, i32) {
    %c0_i32 = arith.constant 0 : i32
    %c0_i32_0 = arith.constant 0 : i32
    %c0_i32_1 = arith.constant 0 : i32
    return %arg1, %c0_i32, %c0_i32_0 : i32, i32, i32
  }
  func.func @transform_9(%arg0: i32, %arg1: i32) -> (i32, i32, i32) {
    %c0_i32 = arith.constant 0 : i32
    %c0_i32_0 = arith.constant 0 : i32
    %c0_i32_1 = arith.constant 0 : i32
    return %arg1, %c0_i32, %c0_i32_0 : i32, i32, i32
  }
  func.func @transform_10(%arg0: i32, %arg1: i32) -> (i32, i32, i32) {
    %c0_i32 = arith.constant 0 : i32
    %c0_i32_0 = arith.constant 0 : i32
    %c0_i32_1 = arith.constant 0 : i32
    return %arg1, %c0_i32, %c0_i32_0 : i32, i32, i32
  }
  func.func @transform_11(%arg0: i32, %arg1: i32) -> (i32, i32, i32) {
    %c0_i32 = arith.constant 0 : i32
    %c0_i32_0 = arith.constant 0 : i32
    %c0_i32_1 = arith.constant 0 : i32
    return %arg1, %c0_i32, %c0_i32_0 : i32, i32, i32
  }
  func.func @transform_12(%arg0: i32, %arg1: i32) -> (i32, i32, i32) {
    %c0_i32 = arith.constant 0 : i32
    %c0_i32_0 = arith.constant 0 : i32
    %c0_i32_1 = arith.constant 0 : i32
    return %arg0, %c0_i32, %c0_i32_0 : i32, i32, i32
  }
}

</mosaic_0001>

<llo_original>
// kernel: _lambda_.2
$region0: #{_lambda_.2}
  #allocation0 [shape = 'u32[]', space=smem, size = 0x4, offset = 0x4, fixed_abs, tag = 'smem constant byte address 0x4 - core index']
  #allocation1 [shape = 'u32[144,128]{1,0:T(1,128)}', space=vmem, size = 0x12000, scoped, tag = 'internal scratch']
  %s0 = inlined_call_operand.vmem [shape: f32[64,128], index: 0, kind: input, shape index: {}]
  %s1 = inlined_call_operand.vmem [shape: f32[1,128], index: 1, kind: input, shape index: {}]
  %s2 = inlined_call_operand.vmem [shape: f32[1,128], index: 2, kind: input, shape index: {}]
  %s3 = inlined_call_operand.vmem [shape: bf16[128,128], index: 3, kind: input, shape index: {}]
  %s4 = inlined_call_operand.vmem [shape: f32[1,128], index: 4, kind: input, shape index: {}]
  %s5 = inlined_call_operand.vmem [shape: f32[64,128], index: 5, kind: output, shape index: {}]
  %s6 = sld [smem:[#allocation0]]
  $region53: #{_lambda_.2} parent=0
    _
  %s8 = ssub.s32 1, %s6
  %s9 = scalar_select 0, %s8, %s6
  loop: start=0, step=1, limit=4
  $region2: #{_lambda_.2} parent=0 // loop_pre_header
    _
  $region3: #{_lambda_.2} parent=0 // loop_header
    %s11 = sphi 0, %s15
    %p12 = scmp.ge.s32.totalorder %s11, 4
    %s21 = sphi 0, %s23
    %s24 = sphi 0, %s21
    %s25 = sphi 0, %s24
    %s41 = sphi 0, %s25
    %s45 = sphi 0, %s45
    %s47 = sphi 0, %s45
    %s48 = sphi 0, %s47
    %s62 = sphi 0, %s48
    %s66 = sphi 0, %s66
    %s68 = sphi 0, %s66
    %s69 = sphi 0, %s68
    %s83 = sphi 0, %s69
    %s87 = sphi 0, %s87
    %s89 = sphi 0, %s87
    %s90 = sphi 0, %s89
    %s104 = sphi 0, %s90
    %s108 = sphi 0, %s108
    %s110 = sphi 0, %s108
    %s111 = sphi 0, %s110
    %s125 = sphi 0, %s111
    %s131 = sphi 0, %s133
    %s134 = sphi 0, %s131
    %s135 = sphi 0, %s134
    %s151 = sphi 0, %s135
  $region4: #{_lambda_.2} parent=0 // loop_header_branch
    %14 = sbr.rel (%p12) target = $region8
  $region5: #{_lambda_.2} parent=0 // loop_body
    %s16 = ssub.s32 %s11, 1
    %s17 = ssub.s32 %s11, 2
    %s18 = sadd.s32 %s11, 1
    %s19 = ssub.s32 %s11, %s18
    %p20 = scmp.eq.s32.totalorder %s19, 0
    %s22 = sadd.s32 %s21, 1
    %s23 = scalar_select %p20, %s21, %s22
    %p26 = pneg %p20
    %p27 = scmp.eq.s32.totalorder %s11, 1
    %p28 = por %p26, %p27
    %p29 = scmp.ne.s32.totalorder %s21, %s24
    %p30 = scmp.eq.s32.totalorder %s11, 0
    %p31 = por %p29, %p30
    %p32 = scmp.ne.s32.totalorder %s21, %s24
    %p33 = scmp.eq.s32.totalorder %s16, 1
    %p34 = por %p32, %p33
    %p35 = scmp.ne.s32.totalorder %s24, %s25
    %p36 = scmp.eq.s32.totalorder %s16, 0
    %p37 = por %p35, %p36
    %p38 = scmp.ne.s32.totalorder %s24, %s25
    %p39 = scmp.eq.s32.totalorder %s17, 1
    %p40 = por %p38, %p39
    %p42 = scmp.ne.s32.totalorder %s25, %s41
    %p43 = scmp.eq.s32.totalorder %s17, 0
    %p44 = por %p42, %p43
    %s46 = sadd.s32 %s45, 1
    %p49 = scmp.eq.s32.totalorder %s11, 1
    %p50 = scmp.ne.s32.totalorder %s45, %s47
    %p51 = scmp.eq.s32.totalorder %s11, 0
    %p52 = por %p50, %p51
    %p53 = scmp.ne.s32.totalorder %s45, %s47
    %p54 = scmp.eq.s32.totalorder %s16, 1
    %p55 = por %p53, %p54
    %p56 = scmp.ne.s32.totalorder %s47, %s48
    %p57 = scmp.eq.s32.totalorder %s16, 0
    %p58 = por %p56, %p57
    %p59 = scmp.ne.s32.totalorder %s47, %s48
    %p60 = scmp.eq.s32.totalorder %s17, 1
    %p61 = por %p59, %p60
    %p63 = scmp.ne.s32.totalorder %s48, %s62
    %p64 = scmp.eq.s32.totalorder %s17, 0
    %p65 = por %p63, %p64
    %s67 = sadd.s32 %s66, 1
    %p70 = scmp.eq.s32.totalorder %s11, 1
    %p71 = scmp.ne.s32.totalorder %s66, %s68
    %p72 = scmp.eq.s32.totalorder %s11, 0
    %p73 = por %p71, %p72
    %p74 = scmp.ne.s32.totalorder %s66, %s68
    %p75 = scmp.eq.s32.totalorder %s16, 1
    %p76 = por %p74, %p75
    %p77 = scmp.ne.s32.totalorder %s68, %s69
    %p78 = scmp.eq.s32.totalorder %s16, 0
    %p79 = por %p77, %p78
    %p80 = scmp.ne.s32.totalorder %s68, %s69
    %p81 = scmp.eq.s32.totalorder %s17, 1
    %p82 = por %p80, %p81
    %p84 = scmp.ne.s32.totalorder %s69, %s83
    %p85 = scmp.eq.s32.totalorder %s17, 0
    %p86 = por %p84, %p85
    %s88 = sadd.s32 %s87, 1
    %p91 = scmp.eq.s32.totalorder %s11, 1
    %p92 = scmp.ne.s32.totalorder %s87, %s89
    %p93 = scmp.eq.s32.totalorder %s11, 0
    %p94 = por %p92, %p93
    %p95 = scmp.ne.s32.totalorder %s87, %s89
    %p96 = scmp.eq.s32.totalorder %s16, 1
    %p97 = por %p95, %p96
    %p98 = scmp.ne.s32.totalorder %s89, %s90
    %p99 = scmp.eq.s32.totalorder %s16, 0
    %p100 = por %p98, %p99
    %p101 = scmp.ne.s32.totalorder %s89, %s90
    %p102 = scmp.eq.s32.totalorder %s17, 1
    %p103 = por %p101, %p102
    %p105 = scmp.ne.s32.totalorder %s90, %s104
    %p106 = scmp.eq.s32.totalorder %s17, 0
    %p107 = por %p105, %p106
    %s109 = sadd.s32 %s108, 1
    %p112 = scmp.eq.s32.totalorder %s11, 1
    %p113 = scmp.ne.s32.totalorder %s108, %s110
    %p114 = scmp.eq.s32.totalorder %s11, 0
    %p115 = por %p113, %p114
    %p116 = scmp.ne.s32.totalorder %s108, %s110
    %p117 = scmp.eq.s32.totalorder %s16, 1
    %p118 = por %p116, %p117
    %p119 = scmp.ne.s32.totalorder %s110, %s111
    %p120 = scmp.eq.s32.totalorder %s16, 0
    %p121 = por %p119, %p120
    %p122 = scmp.ne.s32.totalorder %s110, %s111
    %p123 = scmp.eq.s32.totalorder %s17, 1
    %p124 = por %p122, %p123
    %p126 = scmp.ne.s32.totalorder %s111, %s125
    %p127 = scmp.eq.s32.totalorder %s17, 0
    %p128 = por %p126, %p127
    %s129 = ssub.s32 %s11, %s18
    %p130 = scmp.eq.s32.totalorder %s129, 0
    %s132 = sadd.s32 %s131, 1
    %s133 = scalar_select %p130, %s131, %s132
    %p136 = pneg %p130
    %p137 = scmp.eq.s32.totalorder %s11, 1
    %p138 = por %p136, %p137
    %p139 = scmp.ne.s32.totalorder %s131, %s134
    %p140 = scmp.eq.s32.totalorder %s11, 0
    %p141 = por %p139, %p140
    %p142 = scmp.ne.s32.totalorder %s131, %s134
    %p143 = scmp.eq.s32.totalorder %s16, 1
    %p144 = por %p142, %p143
    %p145 = scmp.ne.s32.totalorder %s134, %s135
    %p146 = scmp.eq.s32.totalorder %s16, 0
    %p147 = por %p145, %p146
    %p148 = scmp.ne.s32.totalorder %s134, %s135
    %p149 = scmp.eq.s32.totalorder %s17, 1
    %p150 = por %p148, %p149
    %p152 = scmp.ne.s32.totalorder %s135, %s151
    %p153 = scmp.eq.s32.totalorder %s17, 0
    %p154 = por %p152, %p153
    %p155 = scmp.le.s32.totalorder 1, %s11
    %p156 = scmp.lt.s32.totalorder %s11, 3
    %p157 = pnand %p155, %p156
    %p158 = pneg %p157
    // Predicated region
    $region9: #{_lambda_.2} parent=5 // pred_check
      _
    $region10: #{_lambda_.2} parent=5 // pred_check_branch
      %160 = sbr.rel (%p157) target = $region12
    $region11: #{_lambda_.2} parent=5 // pred_region
      %s161 = ssub.s32 %s11, 1
      // Predicated region
      $region13: #{_lambda_.2} parent=11 // pred_check
        %p162 = pneg %p58
      $region14: #{_lambda_.2} parent=11 // pred_check_branch
        %164 = sbr.rel (%p162) target = $region16
      $region15: #{_lambda_.2} parent=11 // pred_region
        _
      $region16: #{_lambda_.2} parent=11 // pred_fallthru
        _
      // Predicated region
      $region17: #{_lambda_.2} parent=11 // pred_check
        %p165 = pneg %p79
      $region18: #{_lambda_.2} parent=11 // pred_check_branch
        %167 = sbr.rel (%p165) target = $region20
      $region19: #{_lambda_.2} parent=11 // pred_region
        _
      $region20: #{_lambda_.2} parent=11 // pred_fallthru
        _
      // Predicated region
      $region21: #{_lambda_.2} parent=11 // pred_check
        %p168 = pneg %p100
      $region22: #{_lambda_.2} parent=11 // pred_check_branch
        %170 = sbr.rel (%p168) target = $region24
      $region23: #{_lambda_.2} parent=11 // pred_region
        _
      $region24: #{_lambda_.2} parent=11 // pred_fallthru
        _
      // Predicated region
      $region25: #{_lambda_.2} parent=11 // pred_check
        %p171 = pneg %p121
      $region26: #{_lambda_.2} parent=11 // pred_check_branch
        %173 = sbr.rel (%p171) target = $region28
      $region27: #{_lambda_.2} parent=11 // pred_region
        _
      $region28: #{_lambda_.2} parent=11 // pred_fallthru
        _
    $region12: #{_lambda_.2} parent=5 // pred_fallthru
      _
    %p174 = scmp.lt.s32.totalorder %s11, 2
    // Predicated region
    $region29: #{_lambda_.2} parent=5 // pred_check
      %p175 = pneg %p174
    $region30: #{_lambda_.2} parent=5 // pred_check_branch
      %177 = sbr.rel (%p175) target = $region32
    $region31: #{_lambda_.2} parent=5 // pred_region
      // Predicated region
      $region33: #{_lambda_.2} parent=31 // pred_check
        %p178 = pneg %p31
      $region34: #{_lambda_.2} parent=31 // pred_check_branch
        %180 = sbr.rel (%p178) target = $region36
      $region35: #{_lambda_.2} parent=31 // pred_region
        %s181 = smul.u32 4, %s11
        %p182 = scmp.lt.s32.totalorder %s181, 7
        %s183 = scalar_select %p182, %s181, 7
        %s184 = smul.addr %s183, 8
        %s185 = scalar_lea.vmem %s0, %s184
        %s186 = smul.u32 4, %s11
      $region36: #{_lambda_.2} parent=31 // pred_fallthru
        _
    $region32: #{_lambda_.2} parent=5 // pred_fallthru
      _
    %p187 = scmp.le.s32.totalorder 1, %s11
    %p188 = scmp.lt.s32.totalorder %s11, 3
    %p189 = pnand %p187, %p188
    %p190 = pneg %p189
    // Predicated region
    $region37: #{_lambda_.2} parent=5 // pred_check
      _
    $region38: #{_lambda_.2} parent=5 // pred_check_branch
      %192 = sbr.rel (%p189) target = $region40
    $region39: #{_lambda_.2} parent=5 // pred_region
      %s193 = ssub.s32 %s11, 1
      %s194 = smul.u32 4, %s16
      %p195 = scmp.lt.s32.totalorder %s194, 7
      %s196 = scalar_select %p195, %s194, 7
      %s197 = smul.addr %s196, 8
      %s198 = scalar_lea.vmem %s0, %s197
      %p199 = pneg %p37
      %p200 = pneg %p34
      %p201 = pneg %p58
      %p202 = pneg %p55
      %p203 = pneg %p79
      %p204 = pneg %p76
      %p205 = pneg %p100
      %p206 = pneg %p97
      %p207 = pneg %p121
      %p208 = pneg %p118
      %p209 = pneg %p147
      %p210 = pneg %p144
      %s211 = smul.u32 4, %s16
      %p212 = scmp.lt.s32.totalorder %s211, 7
      %s213 = scalar_select %p212, %s211, 7
      %s214 = smul.addr %s213, 8
      %s215 = scalar_lea.vmem %s5, %s214
      %s216 = smul.u32 4, %s16
      %p217 = scmp.lt.s32.totalorder %s216, 7
      %s218 = scalar_select %p217, %s216, 7
      %s219 = smul.addr %s218, 8
      %s220 = scalar_lea.vmem %s0, %s219
      %s221 = smul.u32 4, %s16
      %s222 = smul.u32 4, %s16
      %p223 = scmp.lt.s32.totalorder %s222, 7
      %s224 = scalar_select %p223, %s222, 7
      %s225 = smul.addr %s224, 8
      %s226 = scalar_lea.vmem %s5, %s225
      %s227 = smul.u32 4, %s16
      %v229 = vld [vmem:[%s220] sm:$0xff]
      %v230 = vld [vmem:[%s220 + $0x8] sm:$0xff]
      %v231 = vld [vmem:[%s220 + $0x10] sm:$0xff]
      %v232 = vld [vmem:[%s220 + $0x18] sm:$0xff]
      %233 = vadd.xlane.f32.xlu0 %v229
      %v234 = vpop.xlane.xlu0 %233
      %235 = vadd.xlane.f32.xlu0 %v230
      %v236 = vpop.xlane.xlu0 %235
      %237 = vadd.xlane.f32.xlu0 %v231
      %v238 = vpop.xlane.xlu0 %237
      %239 = vadd.xlane.f32.xlu0 %v232
      %v240 = vpop.xlane.xlu0 %239
      %v241 = vmul.f32 %v234, 0.020833334
      %v242 = vmul.f32 %v236, 0.020833334
      %v243 = vmul.f32 %v238, 0.020833334
      %v244 = vmul.f32 %v240, 0.020833334
      %v245 = vmul.f32 %v229, %v229
      %v246 = vmul.f32 %v230, %v230
      %v247 = vmul.f32 %v231, %v231
      %v248 = vmul.f32 %v232, %v232
      %249 = vadd.xlane.f32.xlu0 %v245
      %v250 = vpop.xlane.xlu0 %249
      %251 = vadd.xlane.f32.xlu0 %v246
      %v252 = vpop.xlane.xlu0 %251
      %253 = vadd.xlane.f32.xlu0 %v247
      %v254 = vpop.xlane.xlu0 %253
      %255 = vadd.xlane.f32.xlu0 %v248
      %v256 = vpop.xlane.xlu0 %255
      %v257 = vmul.f32 %v250, 0.020833334
      %v258 = vmul.f32 %v252, 0.020833334
      %v259 = vmul.f32 %v254, 0.020833334
      %v260 = vmul.f32 %v256, 0.020833334
      %v261 = vmul.f32 %v241, %v241
      %v262 = vmul.f32 %v242, %v242
      %v263 = vmul.f32 %v243, %v243
      %v264 = vmul.f32 %v244, %v244
      %v265 = vsub.f32 %v257, %v261
      %v266 = vsub.f32 %v258, %v262
      %v267 = vsub.f32 %v259, %v263
      %v268 = vsub.f32 %v260, %v264
      %v269 = vsub.f32 %v229, %v241
      %v270 = vsub.f32 %v230, %v242
      %v271 = vsub.f32 %v231, %v243
      %v272 = vsub.f32 %v232, %v244
      %v273 = vadd.f32 %v265, 1e-05
      %v274 = vadd.f32 %v266, 1e-05
      %v275 = vadd.f32 %v267, 1e-05
      %v276 = vadd.f32 %v268, 1e-05
      %v277 = vrsqrt.pop %v273
      %v278 = vrsqrt.pop %v274
      %v279 = vrsqrt.pop %v275
      %v280 = vrsqrt.pop %v276
      %v281 = vmul.f32 %v269, %v277
      %v282 = vmul.f32 %v270, %v278
      %v283 = vmul.f32 %v271, %v279
      %v284 = vmul.f32 %v272, %v280
      %v285 = vld [vmem:[%s1] sm:$0x1]
      %v287 = vlaneseq
      %v288 = vshrl.u32 %v287, 7
      %v289 = vsub.s32 0, %v288
      %v290 = vrot.slane %v285, %v289
      %v292 = vmul.f32 %v281, %v290
      %v293 = vmul.f32 %v282, %v290
      %v294 = vmul.f32 %v283, %v290
      %v295 = vmul.f32 %v284, %v290
      %v296 = vld [vmem:[%s2] sm:$0x1]
      %v298 = vlaneseq
      %v299 = vshrl.u32 %v298, 7
      %v300 = vsub.s32 0, %v299
      %v301 = vrot.slane %v296, %v300
      %v303 = vadd.f32 %v292, %v301
      %v304 = vadd.f32 %v293, %v301
      %v305 = vadd.f32 %v294, %v301
      %v306 = vadd.f32 %v295, %v301
      %v307 = vpack.c.bf16 %v304, %v303
      %v308 = vpack.c.bf16 %v306, %v305
      %v309 = vld [vmem:[%s3] sm:$0xf]
      %v310 = vld [vmem:[%s3 + $0x4] sm:$0xf]
      %v311 = vld [vmem:[%s3 + $0x8] sm:$0xf]
      %v312 = vld [vmem:[%s3 + $0xc] sm:$0xf]
      %v313 = vld [vmem:[%s3 + $0x10] sm:$0xf]
      %v314 = vld [vmem:[%s3 + $0x14] sm:$0xf]
      %v315 = vld [vmem:[%s3 + $0x18] sm:$0xf]
      %v316 = vld [vmem:[%s3 + $0x1c] sm:$0xf]
      %v317 = vld [vmem:[%s3 + $0x20] sm:$0xf]
      %v318 = vld [vmem:[%s3 + $0x24] sm:$0xf]
      %v319 = vld [vmem:[%s3 + $0x28] sm:$0xf]
      %v320 = vld [vmem:[%s3 + $0x2c] sm:$0xf]
      %v321 = vld [vmem:[%s3 + $0x30] sm:$0xf]
      %v322 = vld [vmem:[%s3 + $0x34] sm:$0xf]
      %v323 = vld [vmem:[%s3 + $0x38] sm:$0xf]
      %v324 = vld [vmem:[%s3 + $0x3c] sm:$0xf]
      %v325 = vld [vmem:[%s4] sm:$0x1]
      %v327 = vlaneseq
      %v328 = vshrl.u32 %v327, 7
      %v329 = vsub.s32 0, %v328
      %v330 = vrot.slane %v325, %v329
      %v348 = vunpack.c.l.b16 %v309
      %v349 = vunpack.c.l.b16 %v310
      %v350 = vunpack.c.l.b16 %v311
      %v351 = vunpack.c.l.b16 %v312
      %v352 = vunpack.c.l.b16 %v313
      %v353 = vunpack.c.l.b16 %v314
      %v354 = vunpack.c.l.b16 %v315
      %v355 = vunpack.c.l.b16 %v316
      %v356 = vunpack.c.l.b16 %v317
      %v357 = vunpack.c.l.b16 %v318
      %v358 = vunpack.c.l.b16 %v319
      %v359 = vunpack.c.l.b16 %v320
      %v360 = vunpack.c.l.b16 %v321
      %v361 = vunpack.c.l.b16 %v322
      %v362 = vunpack.c.l.b16 %v323
      %v363 = vunpack.c.l.b16 %v324
      %v364 = vpack.c.b16 %v349, %v348
      %v365 = vpack.c.b16 %v351, %v350
      %v366 = vpack.c.b16 %v353, %v352
      %v367 = vpack.c.b16 %v355, %v354
      %v368 = vpack.c.b16 %v357, %v356
      %v369 = vpack.c.b16 %v359, %v358
      %v370 = vpack.c.b16 %v361, %v360
      %v371 = vpack.c.b16 %v363, %v362
      %380 = vmatprep.subr.bf16.mxu0 0
      %381 = vmatpush1.bf16.msra.mxu0 %v364
      %382 = vmatprep.subr.bf16.mxu0 0
      %383 = vmatpush1.bf16.msra.mxu0 %v365
      %384 = vmatprep.subr.bf16.mxu0 0
      %385 = vmatpush1.bf16.msra.mxu0 %v366
      %386 = vmatprep.subr.bf16.mxu0 0
      %387 = vmatpush1.bf16.msra.mxu0 %v367
      %388 = vmatprep.subr.bf16.mxu0 0
      %389 = vmatpush1.bf16.msra.mxu0 %v368
      %390 = vmatprep.subr.bf16.mxu0 0
      %391 = vmatpush1.bf16.msra.mxu0 %v369
      %392 = vmatprep.subr.bf16.mxu0 0
      %393 = vmatpush1.bf16.msra.mxu0 %v370
      %394 = vmatprep.subr.bf16.mxu0 0
      %395 = vmatpush1.bf16.msra.mxu0 %v371
      %396 = vmatprep.subr.bf16.mxu0 0
      %397 = vmatpush1.bf16.msra.mxu0 0
      %398 = vmatprep.subr.bf16.mxu0 0
      %399 = vmatpush1.bf16.msra.mxu0 0
      %400 = vmatprep.subr.bf16.mxu0 0
      %401 = vmatpush1.bf16.msra.mxu0 0
      %402 = vmatprep.subr.bf16.mxu0 0
      %403 = vmatpush1.bf16.msra.mxu0 0
      %404 = vmatprep.subr.bf16.mxu0 0
      %405 = vmatpush1.bf16.msra.mxu0 0
      %406 = vmatprep.subr.bf16.mxu0 0
      %407 = vmatpush1.bf16.msra.mxu0 0
      %408 = vmatprep.subr.bf16.mxu0 0
      %409 = vmatpush1.bf16.msra.mxu0 0
      %410 = vmatprep.subr.bf16.mxu0 0
      %411 = vmatpush1.bf16.msra.mxu0 0
      %412 = vmatprep.mubr.bf16.mxu0 0
      %413 = vmatmul.mubr.bf16.gmra.mrb[0].mxu0 %v307
      %v414 = vpop.f32.mrb[0].mxu0
      %v415 = vadd.f32 %v330, %v414
      %v416 = vpop.f32.mrb[0].mxu0
      %v417 = vpop.f32.mrb[0].mxu0
      %v418 = vadd.f32 %v330, %v417
      %v419 = vpop.f32.mrb[0].mxu0
      %420 = vmatprep.mubr.bf16.mxu0 0
      %421 = vmatmul.mubr.bf16.gmra.mrb[0].mxu0 %v308
      %v422 = vpop.f32.mrb[0].mxu0
      %v423 = vadd.f32 %v330, %v422
      %v424 = vpop.f32.mrb[0].mxu0
      %v425 = vpop.f32.mrb[0].mxu0
      %v426 = vadd.f32 %v330, %v425
      %v427 = vpop.f32.mrb[0].mxu0
      %428 = vdwg.mxu0
      %429 = vst [vmem:[%s226] sm:$0xff] %v415
      %430 = vst [vmem:[%s226 + $0x8] sm:$0xff] %v418
      %431 = vst [vmem:[%s226 + $0x10] sm:$0xff] %v423
      %432 = vst [vmem:[%s226 + $0x18] sm:$0xff] %v426
      %s433 = smul.u32 4, %s16
      %p434 = scmp.lt.s32.totalorder %s433, 7
      %s435 = scalar_select %p434, %s433, 7
      %s436 = smul.addr %s435, 8
      %s437 = scalar_lea.vmem %s5, %s436
      // Predicated region
      $region41: #{_lambda_.2} parent=39 // pred_check
        %p438 = pneg %p144
      $region42: #{_lambda_.2} parent=39 // pred_check_branch
        %440 = sbr.rel (%p438) target = $region44
      $region43: #{_lambda_.2} parent=39 // pred_region
        %s441 = smul.u32 4, %s16
      $region44: #{_lambda_.2} parent=39 // pred_fallthru
        _
    $region40: #{_lambda_.2} parent=5 // pred_fallthru
      _
    %p442 = scmp.le.s32.totalorder 2, %s11
    // Predicated region
    $region45: #{_lambda_.2} parent=5 // pred_check
      %p443 = pneg %p442
    $region46: #{_lambda_.2} parent=5 // pred_check_branch
      %445 = sbr.rel (%p443) target = $region48
    $region47: #{_lambda_.2} parent=5 // pred_region
      %s446 = ssub.s32 %s11, 2
      // Predicated region
      $region49: #{_lambda_.2} parent=47 // pred_check
        %p447 = pneg %p150
      $region50: #{_lambda_.2} parent=47 // pred_check_branch
        %449 = sbr.rel (%p447) target = $region52
      $region51: #{_lambda_.2} parent=47 // pred_region
        %s450 = smul.u32 4, %s17
        %p451 = scmp.lt.s32.totalorder %s450, 7
        %s452 = scalar_select %p451, %s450, 7
        %s453 = smul.addr %s452, 8
        %s454 = scalar_lea.vmem %s5, %s453
      $region52: #{_lambda_.2} parent=47 // pred_fallthru
        _
    $region48: #{_lambda_.2} parent=5 // pred_fallthru
      _
  $region6: #{_lambda_.2} parent=0 // loop_footer
    %s15 = sadd.s32 1, %s11
  $region7: #{_lambda_.2} parent=0 // loop_footer_branch
    %10 = sbr.rel target = $region3
  $region8: #{_lambda_.2} parent=0 // loop_exit
    _

// kernel: _lambda_.3
$region0: #{_lambda_.3}
  #allocation0 [shape = 'u32[]', space=smem, size = 0x4, offset = 0x4, fixed_abs, tag = 'smem constant byte address 0x4 - core index']
  #allocation1 [shape = 'u32[144,128]{1,0:T(1,128)}', space=vmem, size = 0x12000, scoped, tag = 'internal scratch']
  #allocation2 [shape = 'f32[2,24,128]{2,1,0:T(8,128)}', space=vmem, size = 0x6000, scoped, tag = 'scratch operand']
  %s0 = inlined_call_operand.vmem [shape: f32[4,24,128], index: 0, kind: input, shape index: {}, may-alias: {0,12}]
  %s1 = inlined_call_operand.vmem [shape: f32[2,1,128], index: 1, kind: input, shape index: {}]
  %s2 = inlined_call_operand.vmem [shape: f32[2,1,128], index: 2, kind: input, shape index: {}]
  %s3 = inlined_call_operand.vmem [shape: bf16[2,128,384], index: 3, kind: input, shape index: {}]
  %s4 = inlined_call_operand.vmem [shape: bf16[2,128,128], index: 4, kind: input, shape index: {}]
  %s5 = inlined_call_operand.vmem [shape: f32[2,1,128], index: 5, kind: input, shape index: {}]
  %s6 = inlined_call_operand.vmem [shape: f32[2,1,128], index: 6, kind: input, shape index: {}]
  %s7 = inlined_call_operand.vmem [shape: f32[2,1,128], index: 7, kind: input, shape index: {}]
  %s8 = inlined_call_operand.vmem [shape: bf16[2,128,256], index: 8, kind: input, shape index: {}]
  %s9 = inlined_call_operand.vmem [shape: f32[2,1,256], index: 9, kind: input, shape index: {}]
  %s10 = inlined_call_operand.vmem [shape: bf16[2,256,128], index: 10, kind: input, shape index: {}]
  %s11 = inlined_call_operand.vmem [shape: f32[2,1,128], index: 11, kind: input, shape index: {}]
  %s12 = inlined_call_operand.vmem [shape: f32[4,24,128], index: 12, kind: output, shape index: {}, may-alias: {0,12}]
  %s13 = sld [smem:[#allocation0]]
  $region89: #{_lambda_.3} parent=0
    _
  %s15 = ssub.s32 1, %s13
  %s16 = scalar_select 0, %s15, %s13
  loop: start=0, step=1, limit=6
  $region2: #{_lambda_.3} parent=0 // loop_pre_header
    _
  $region3: #{_lambda_.3} parent=0 // loop_header
    %s18 = sphi 0, %s22
    %p19 = scmp.ge.s32.totalorder %s18, 6
    %s25 = sphi 0, %s37
    %s26 = sphi 0, %s33
    %s27 = sphi 0, %s25
    %s28 = sphi 0, %s26
    %s29 = sphi 0, %s27
    %s30 = sphi 0, %s28
    %s40 = sphi 0, %s42
    %s43 = sphi 0, %s40
    %s44 = sphi 0, %s43
    %s60 = sphi 0, %s44
    %s66 = sphi 0, %s68
    %s69 = sphi 0, %s66
    %s70 = sphi 0, %s69
    %s86 = sphi 0, %s70
    %s92 = sphi 0, %s94
    %s95 = sphi 0, %s92
    %s96 = sphi 0, %s95
    %s112 = sphi 0, %s96
    %s118 = sphi 0, %s120
    %s121 = sphi 0, %s118
    %s122 = sphi 0, %s121
    %s138 = sphi 0, %s122
    %s144 = sphi 0, %s146
    %s147 = sphi 0, %s144
    %s148 = sphi 0, %s147
    %s164 = sphi 0, %s148
    %s170 = sphi 0, %s172
    %s173 = sphi 0, %s170
    %s174 = sphi 0, %s173
    %s190 = sphi 0, %s174
    %s196 = sphi 0, %s198
    %s199 = sphi 0, %s196
    %s200 = sphi 0, %s199
    %s216 = sphi 0, %s200
    %s222 = sphi 0, %s224
    %s225 = sphi 0, %s222
    %s226 = sphi 0, %s225
    %s242 = sphi 0, %s226
    %s248 = sphi 0, %s250
    %s251 = sphi 0, %s248
    %s252 = sphi 0, %s251
    %s268 = sphi 0, %s252
    %s274 = sphi 0, %s276
    %s277 = sphi 0, %s274
    %s278 = sphi 0, %s277
    %s294 = sphi 0, %s278
    %s300 = sphi 0, %s302
    %s303 = sphi 0, %s300
    %s304 = sphi 0, %s303
    %s320 = sphi 0, %s304
    %s326 = sphi 0, %s328
    %s329 = sphi 0, %s326
    %s330 = sphi 0, %s329
    %s346 = sphi 0, %s330
    %s352 = sphi 0, %s354
    %s355 = sphi 0, %s352
    %s356 = sphi 0, %s355
    %s372 = sphi 0, %s356
  $region4: #{_lambda_.3} parent=0 // loop_header_branch
    %21 = sbr.rel (%p19) target = $region8
  $region5: #{_lambda_.3} parent=0 // loop_body
    %s23 = ssub.s32 %s18, 1
    %s24 = ssub.s32 %s18, 2
    %s31 = sadd.s32 1, %s26
    %p32 = scmp.ge.s32.totalorder %s31, 2
    %s33 = scalar_select %p32, 0, %s31
    %s34 = sadd.s32 1, %s25
    %s35 = scalar_select %p32, %s34, %s25
    %p36 = scmp.ge.s32.totalorder %s35, 2
    %s37 = scalar_select %p36, 0, %s35
    %s38 = ssub.s32 %s25, %s37
    %p39 = scmp.eq.s32.totalorder %s38, 0
    %s41 = sadd.s32 %s40, 1
    %s42 = scalar_select %p39, %s40, %s41
    %p45 = pneg %p39
    %p46 = scmp.eq.s32.totalorder %s18, 3
    %p47 = por %p45, %p46
    %p48 = scmp.ne.s32.totalorder %s40, %s43
    %p49 = scmp.eq.s32.totalorder %s18, 0
    %p50 = por %p48, %p49
    %p51 = scmp.ne.s32.totalorder %s40, %s43
    %p52 = scmp.eq.s32.totalorder %s23, 3
    %p53 = por %p51, %p52
    %p54 = scmp.ne.s32.totalorder %s43, %s44
    %p55 = scmp.eq.s32.totalorder %s23, 0
    %p56 = por %p54, %p55
    %p57 = scmp.ne.s32.totalorder %s43, %s44
    %p58 = scmp.eq.s32.totalorder %s24, 3
    %p59 = por %p57, %p58
    %p61 = scmp.ne.s32.totalorder %s44, %s60
    %p62 = scmp.eq.s32.totalorder %s24, 0
    %p63 = por %p61, %p62
    %s64 = ssub.s32 %s26, %s33
    %p65 = scmp.eq.s32.totalorder %s64, 0
    %s67 = sadd.s32 %s66, 1
    %s68 = scalar_select %p65, %s66, %s67
    %p71 = pneg %p65
    %p72 = scmp.eq.s32.totalorder %s18, 3
    %p73 = por %p71, %p72
    %p74 = scmp.ne.s32.totalorder %s66, %s69
    %p75 = scmp.eq.s32.totalorder %s18, 0
    %p76 = por %p74, %p75
    %p77 = scmp.ne.s32.totalorder %s66, %s69
    %p78 = scmp.eq.s32.totalorder %s23, 3
    %p79 = por %p77, %p78
    %p80 = scmp.ne.s32.totalorder %s69, %s70
    %p81 = scmp.eq.s32.totalorder %s23, 0
    %p82 = por %p80, %p81
    %p83 = scmp.ne.s32.totalorder %s69, %s70
    %p84 = scmp.eq.s32.totalorder %s24, 3
    %p85 = por %p83, %p84
    %p87 = scmp.ne.s32.totalorder %s70, %s86
    %p88 = scmp.eq.s32.totalorder %s24, 0
    %p89 = por %p87, %p88
    %s90 = ssub.s32 %s26, %s33
    %p91 = scmp.eq.s32.totalorder %s90, 0
    %s93 = sadd.s32 %s92, 1
    %s94 = scalar_select %p91, %s92, %s93
    %p97 = pneg %p91
    %p98 = scmp.eq.s32.totalorder %s18, 3
    %p99 = por %p97, %p98
    %p100 = scmp.ne.s32.totalorder %s92, %s95
    %p101 = scmp.eq.s32.totalorder %s18, 0
    %p102 = por %p100, %p101
    %p103 = scmp.ne.s32.totalorder %s92, %s95
    %p104 = scmp.eq.s32.totalorder %s23, 3
    %p105 = por %p103, %p104
    %p106 = scmp.ne.s32.totalorder %s95, %s96
    %p107 = scmp.eq.s32.totalorder %s23, 0
    %p108 = por %p106, %p107
    %p109 = scmp.ne.s32.totalorder %s95, %s96
    %p110 = scmp.eq.s32.totalorder %s24, 3
    %p111 = por %p109, %p110
    %p113 = scmp.ne.s32.totalorder %s96, %s112
    %p114 = scmp.eq.s32.totalorder %s24, 0
    %p115 = por %p113, %p114
    %s116 = ssub.s32 %s26, %s33
    %p117 = scmp.eq.s32.totalorder %s116, 0
    %s119 = sadd.s32 %s118, 1
    %s120 = scalar_select %p117, %s118, %s119
    %p123 = pneg %p117
    %p124 = scmp.eq.s32.totalorder %s18, 3
    %p125 = por %p123, %p124
    %p126 = scmp.ne.s32.totalorder %s118, %s121
    %p127 = scmp.eq.s32.totalorder %s18, 0
    %p128 = por %p126, %p127
    %p129 = scmp.ne.s32.totalorder %s118, %s121
    %p130 = scmp.eq.s32.totalorder %s23, 3
    %p131 = por %p129, %p130
    %p132 = scmp.ne.s32.totalorder %s121, %s122
    %p133 = scmp.eq.s32.totalorder %s23, 0
    %p134 = por %p132, %p133
    %p135 = scmp.ne.s32.totalorder %s121, %s122
    %p136 = scmp.eq.s32.totalorder %s24, 3
    %p137 = por %p135, %p136
    %p139 = scmp.ne.s32.totalorder %s122, %s138
    %p140 = scmp.eq.s32.totalorder %s24, 0
    %p141 = por %p139, %p140
    %s142 = ssub.s32 %s26, %s33
    %p143 = scmp.eq.s32.totalorder %s142, 0
    %s145 = sadd.s32 %s144, 1
    %s146 = scalar_select %p143, %s144, %s145
    %p149 = pneg %p143
    %p150 = scmp.eq.s32.totalorder %s18, 3
    %p151 = por %p149, %p150
    %p152 = scmp.ne.s32.totalorder %s144, %s147
    %p153 = scmp.eq.s32.totalorder %s18, 0
    %p154 = por %p152, %p153
    %p155 = scmp.ne.s32.totalorder %s144, %s147
    %p156 = scmp.eq.s32.totalorder %s23, 3
    %p157 = por %p155, %p156
    %p158 = scmp.ne.s32.totalorder %s147, %s148
    %p159 = scmp.eq.s32.totalorder %s23, 0
    %p160 = por %p158, %p159
    %p161 = scmp.ne.s32.totalorder %s147, %s148
    %p162 = scmp.eq.s32.totalorder %s24, 3
    %p163 = por %p161, %p162
    %p165 = scmp.ne.s32.totalorder %s148, %s164
    %p166 = scmp.eq.s32.totalorder %s24, 0
    %p167 = por %p165, %p166
    %s168 = ssub.s32 %s26, %s33
    %p169 = scmp.eq.s32.totalorder %s168, 0
    %s171 = sadd.s32 %s170, 1
    %s172 = scalar_select %p169, %s170, %s171
    %p175 = pneg %p169
    %p176 = scmp.eq.s32.totalorder %s18, 3
    %p177 = por %p175, %p176
    %p178 = scmp.ne.s32.totalorder %s170, %s173
    %p179 = scmp.eq.s32.totalorder %s18, 0
    %p180 = por %p178, %p179
    %p181 = scmp.ne.s32.totalorder %s170, %s173
    %p182 = scmp.eq.s32.totalorder %s23, 3
    %p183 = por %p181, %p182
    %p184 = scmp.ne.s32.totalorder %s173, %s174
    %p185 = scmp.eq.s32.totalorder %s23, 0
    %p186 = por %p184, %p185
    %p187 = scmp.ne.s32.totalorder %s173, %s174
    %p188 = scmp.eq.s32.totalorder %s24, 3
    %p189 = por %p187, %p188
    %p191 = scmp.ne.s32.totalorder %s174, %s190
    %p192 = scmp.eq.s32.totalorder %s24, 0
    %p193 = por %p191, %p192
    %s194 = ssub.s32 %s26, %s33
    %p195 = scmp.eq.s32.totalorder %s194, 0
    %s197 = sadd.s32 %s196, 1
    %s198 = scalar_select %p195, %s196, %s197
    %p201 = pneg %p195
    %p202 = scmp.eq.s32.totalorder %s18, 3
    %p203 = por %p201, %p202
    %p204 = scmp.ne.s32.totalorder %s196, %s199
    %p205 = scmp.eq.s32.totalorder %s18, 0
    %p206 = por %p204, %p205
    %p207 = scmp.ne.s32.totalorder %s196, %s199
    %p208 = scmp.eq.s32.totalorder %s23, 3
    %p209 = por %p207, %p208
    %p210 = scmp.ne.s32.totalorder %s199, %s200
    %p211 = scmp.eq.s32.totalorder %s23, 0
    %p212 = por %p210, %p211
    %p213 = scmp.ne.s32.totalorder %s199, %s200
    %p214 = scmp.eq.s32.totalorder %s24, 3
    %p215 = por %p213, %p214
    %p217 = scmp.ne.s32.totalorder %s200, %s216
    %p218 = scmp.eq.s32.totalorder %s24, 0
    %p219 = por %p217, %p218
    %s220 = ssub.s32 %s26, %s33
    %p221 = scmp.eq.s32.totalorder %s220, 0
    %s223 = sadd.s32 %s222, 1
    %s224 = scalar_select %p221, %s222, %s223
    %p227 = pneg %p221
    %p228 = scmp.eq.s32.totalorder %s18, 3
    %p229 = por %p227, %p228
    %p230 = scmp.ne.s32.totalorder %s222, %s225
    %p231 = scmp.eq.s32.totalorder %s18, 0
    %p232 = por %p230, %p231
    %p233 = scmp.ne.s32.totalorder %s222, %s225
    %p234 = scmp.eq.s32.totalorder %s23, 3
    %p235 = por %p233, %p234
    %p236 = scmp.ne.s32.totalorder %s225, %s226
    %p237 = scmp.eq.s32.totalorder %s23, 0
    %p238 = por %p236, %p237
    %p239 = scmp.ne.s32.totalorder %s225, %s226
    %p240 = scmp.eq.s32.totalorder %s24, 3
    %p241 = por %p239, %p240
    %p243 = scmp.ne.s32.totalorder %s226, %s242
    %p244 = scmp.eq.s32.totalorder %s24, 0
    %p245 = por %p243, %p244
    %s246 = ssub.s32 %s26, %s33
    %p247 = scmp.eq.s32.totalorder %s246, 0
    %s249 = sadd.s32 %s248, 1
    %s250 = scalar_select %p247, %s248, %s249
    %p253 = pneg %p247
    %p254 = scmp.eq.s32.totalorder %s18, 3
    %p255 = por %p253, %p254
    %p256 = scmp.ne.s32.totalorder %s248, %s251
    %p257 = scmp.eq.s32.totalorder %s18, 0
    %p258 = por %p256, %p257
    %p259 = scmp.ne.s32.totalorder %s248, %s251
    %p260 = scmp.eq.s32.totalorder %s23, 3
    %p261 = por %p259, %p260
    %p262 = scmp.ne.s32.totalorder %s251, %s252
    %p263 = scmp.eq.s32.totalorder %s23, 0
    %p264 = por %p262, %p263
    %p265 = scmp.ne.s32.totalorder %s251, %s252
    %p266 = scmp.eq.s32.totalorder %s24, 3
    %p267 = por %p265, %p266
    %p269 = scmp.ne.s32.totalorder %s252, %s268
    %p270 = scmp.eq.s32.totalorder %s24, 0
    %p271 = por %p269, %p270
    %s272 = ssub.s32 %s26, %s33
    %p273 = scmp.eq.s32.totalorder %s272, 0
    %s275 = sadd.s32 %s274, 1
    %s276 = scalar_select %p273, %s274, %s275
    %p279 = pneg %p273
    %p280 = scmp.eq.s32.totalorder %s18, 3
    %p281 = por %p279, %p280
    %p282 = scmp.ne.s32.totalorder %s274, %s277
    %p283 = scmp.eq.s32.totalorder %s18, 0
    %p284 = por %p282, %p283
    %p285 = scmp.ne.s32.totalorder %s274, %s277
    %p286 = scmp.eq.s32.totalorder %s23, 3
    %p287 = por %p285, %p286
    %p288 = scmp.ne.s32.totalorder %s277, %s278
    %p289 = scmp.eq.s32.totalorder %s23, 0
    %p290 = por %p288, %p289
    %p291 = scmp.ne.s32.totalorder %s277, %s278
    %p292 = scmp.eq.s32.totalorder %s24, 3
    %p293 = por %p291, %p292
    %p295 = scmp.ne.s32.totalorder %s278, %s294
    %p296 = scmp.eq.s32.totalorder %s24, 0
    %p297 = por %p295, %p296
    %s298 = ssub.s32 %s26, %s33
    %p299 = scmp.eq.s32.totalorder %s298, 0
    %s301 = sadd.s32 %s300, 1
    %s302 = scalar_select %p299, %s300, %s301
    %p305 = pneg %p299
    %p306 = scmp.eq.s32.totalorder %s18, 3
    %p307 = por %p305, %p306
    %p308 = scmp.ne.s32.totalorder %s300, %s303
    %p309 = scmp.eq.s32.totalorder %s18, 0
    %p310 = por %p308, %p309
    %p311 = scmp.ne.s32.totalorder %s300, %s303
    %p312 = scmp.eq.s32.totalorder %s23, 3
    %p313 = por %p311, %p312
    %p314 = scmp.ne.s32.totalorder %s303, %s304
    %p315 = scmp.eq.s32.totalorder %s23, 0
    %p316 = por %p314, %p315
    %p317 = scmp.ne.s32.totalorder %s303, %s304
    %p318 = scmp.eq.s32.totalorder %s24, 3
    %p319 = por %p317, %p318
    %p321 = scmp.ne.s32.totalorder %s304, %s320
    %p322 = scmp.eq.s32.totalorder %s24, 0
    %p323 = por %p321, %p322
    %s324 = ssub.s32 %s26, %s33
    %p325 = scmp.eq.s32.totalorder %s324, 0
    %s327 = sadd.s32 %s326, 1
    %s328 = scalar_select %p325, %s326, %s327
    %p331 = pneg %p325
    %p332 = scmp.eq.s32.totalorder %s18, 3
    %p333 = por %p331, %p332
    %p334 = scmp.ne.s32.totalorder %s326, %s329
    %p335 = scmp.eq.s32.totalorder %s18, 0
    %p336 = por %p334, %p335
    %p337 = scmp.ne.s32.totalorder %s326, %s329
    %p338 = scmp.eq.s32.totalorder %s23, 3
    %p339 = por %p337, %p338
    %p340 = scmp.ne.s32.totalorder %s329, %s330
    %p341 = scmp.eq.s32.totalorder %s23, 0
    %p342 = por %p340, %p341
    %p343 = scmp.ne.s32.totalorder %s329, %s330
    %p344 = scmp.eq.s32.totalorder %s24, 3
    %p345 = por %p343, %p344
    %p347 = scmp.ne.s32.totalorder %s330, %s346
    %p348 = scmp.eq.s32.totalorder %s24, 0
    %p349 = por %p347, %p348
    %s350 = ssub.s32 %s25, %s37
    %p351 = scmp.eq.s32.totalorder %s350, 0
    %s353 = sadd.s32 %s352, 1
    %s354 = scalar_select %p351, %s352, %s353
    %p357 = pneg %p351
    %p358 = scmp.eq.s32.totalorder %s18, 3
    %p359 = por %p357, %p358
    %p360 = scmp.ne.s32.totalorder %s352, %s355
    %p361 = scmp.eq.s32.totalorder %s18, 0
    %p362 = por %p360, %p361
    %p363 = scmp.ne.s32.totalorder %s352, %s355
    %p364 = scmp.eq.s32.totalorder %s23, 3
    %p365 = por %p363, %p364
    %p366 = scmp.ne.s32.totalorder %s355, %s356
    %p367 = scmp.eq.s32.totalorder %s23, 0
    %p368 = por %p366, %p367
    %p369 = scmp.ne.s32.totalorder %s355, %s356
    %p370 = scmp.eq.s32.totalorder %s24, 3
    %p371 = por %p369, %p370
    %p373 = scmp.ne.s32.totalorder %s356, %s372
    %p374 = scmp.eq.s32.totalorder %s24, 0
    %p375 = por %p373, %p374
    %p376 = scmp.le.s32.totalorder 1, %s18
    %p377 = scmp.lt.s32.totalorder %s18, 5
    %p378 = pnand %p376, %p377
    %p379 = pneg %p378
    // Predicated region
    $region9: #{_lambda_.3} parent=5 // pred_check
      _
    $region10: #{_lambda_.3} parent=5 // pred_check_branch
      %381 = sbr.rel (%p378) target = $region12
    $region11: #{_lambda_.3} parent=5 // pred_region
      %s382 = ssub.s32 %s18, 1
    $region12: #{_lambda_.3} parent=5 // pred_fallthru
      _
    %p383 = scmp.lt.s32.totalorder %s18, 4
    // Predicated region
    $region13: #{_lambda_.3} parent=5 // pred_check
      %p384 = pneg %p383
    $region14: #{_lambda_.3} parent=5 // pred_check_branch
      %386 = sbr.rel (%p384) target = $region16
    $region15: #{_lambda_.3} parent=5 // pred_region
      // Predicated region
      $region17: #{_lambda_.3} parent=15 // pred_check
        %p387 = pneg %p50
      $region18: #{_lambda_.3} parent=15 // pred_check_branch
        %389 = sbr.rel (%p387) target = $region20
      $region19: #{_lambda_.3} parent=15 // pred_region
        %s390 = smul.u32 2, %s25
        %p391 = scmp.lt.s32.totalorder %s390, 3
        %s392 = scalar_select %p391, %s390, 3
        %s393 = smul.addr %s392, 3
        %s394 = smul.addr %s393, 8
        %s395 = scalar_lea.vmem %s0, %s394
        %s396 = smul.u32 2, %s25
      $region20: #{_lambda_.3} parent=15 // pred_fallthru
        _
      // Predicated region
      $region21: #{_lambda_.3} parent=15 // pred_check
        %p397 = pneg %p76
      $region22: #{_lambda_.3} parent=15 // pred_check_branch
        %399 = sbr.rel (%p397) target = $region24
      $region23: #{_lambda_.3} parent=15 // pred_region
        %p400 = scmp.lt.s32.totalorder %s26, 1
        %s401 = scalar_select %p400, %s26, 1
        %s402 = scalar_lea.vmem %s1, %s401
      $region24: #{_lambda_.3} parent=15 // pred_fallthru
        _
      // Predicated region
      $region25: #{_lambda_.3} parent=15 // pred_check
        %p403 = pneg %p102
      $region26: #{_lambda_.3} parent=15 // pred_check_branch
        %405 = sbr.rel (%p403) target = $region28
      $region27: #{_lambda_.3} parent=15 // pred_region
        %p406 = scmp.lt.s32.totalorder %s26, 1
        %s407 = scalar_select %p406, %s26, 1
        %s408 = scalar_lea.vmem %s2, %s407
      $region28: #{_lambda_.3} parent=15 // pred_fallthru
        _
      // Predicated region
      $region29: #{_lambda_.3} parent=15 // pred_check
        %p409 = pneg %p128
      $region30: #{_lambda_.3} parent=15 // pred_check_branch
        %411 = sbr.rel (%p409) target = $region32
      $region31: #{_lambda_.3} parent=15 // pred_region
        %p412 = scmp.lt.s32.totalorder %s26, 1
        %s413 = scalar_select %p412, %s26, 1
        %s414 = smul.addr %s413, 48
        %s415 = smul.addr %s414, 4
        %s416 = scalar_lea.vmem %s3, %s415
      $region32: #{_lambda_.3} parent=15 // pred_fallthru
        _
      // Predicated region
      $region33: #{_lambda_.3} parent=15 // pred_check
        %p417 = pneg %p154
      $region34: #{_lambda_.3} parent=15 // pred_check_branch
        %419 = sbr.rel (%p417) target = $region36
      $region35: #{_lambda_.3} parent=15 // pred_region
        %p420 = scmp.lt.s32.totalorder %s26, 1
        %s421 = scalar_select %p420, %s26, 1
        %s422 = smul.addr %s421, 16
        %s423 = smul.addr %s422, 4
        %s424 = scalar_lea.vmem %s4, %s423
      $region36: #{_lambda_.3} parent=15 // pred_fallthru
        _
      // Predicated region
      $region37: #{_lambda_.3} parent=15 // pred_check
        %p425 = pneg %p180
      $region38: #{_lambda_.3} parent=15 // pred_check_branch
        %427 = sbr.rel (%p425) target = $region40
      $region39: #{_lambda_.3} parent=15 // pred_region
        %p428 = scmp.lt.s32.totalorder %s26, 1
        %s429 = scalar_select %p428, %s26, 1
        %s430 = scalar_lea.vmem %s5, %s429
      $region40: #{_lambda_.3} parent=15 // pred_fallthru
        _
      // Predicated region
      $region41: #{_lambda_.3} parent=15 // pred_check
        %p431 = pneg %p206
      $region42: #{_lambda_.3} parent=15 // pred_check_branch
        %433 = sbr.rel (%p431) target = $region44
      $region43: #{_lambda_.3} parent=15 // pred_region
        %p434 = scmp.lt.s32.totalorder %s26, 1
        %s435 = scalar_select %p434, %s26, 1
        %s436 = scalar_lea.vmem %s6, %s435
      $region44: #{_lambda_.3} parent=15 // pred_fallthru
        _
      // Predicated region
      $region45: #{_lambda_.3} parent=15 // pred_check
        %p437 = pneg %p232
      $region46: #{_lambda_.3} parent=15 // pred_check_branch
        %439 = sbr.rel (%p437) target = $region48
      $region47: #{_lambda_.3} parent=15 // pred_region
        %p440 = scmp.lt.s32.totalorder %s26, 1
        %s441 = scalar_select %p440, %s26, 1
        %s442 = scalar_lea.vmem %s7, %s441
      $region48: #{_lambda_.3} parent=15 // pred_fallthru
        _
      // Predicated region
      $region49: #{_lambda_.3} parent=15 // pred_check
        %p443 = pneg %p258
      $region50: #{_lambda_.3} parent=15 // pred_check_branch
        %445 = sbr.rel (%p443) target = $region52
      $region51: #{_lambda_.3} parent=15 // pred_region
        %p446 = scmp.lt.s32.totalorder %s26, 1
        %s447 = scalar_select %p446, %s26, 1
        %s448 = smul.addr %s447, 32
        %s449 = smul.addr %s448, 4
        %s450 = scalar_lea.vmem %s8, %s449
      $region52: #{_lambda_.3} parent=15 // pred_fallthru
        _
      // Predicated region
      $region53: #{_lambda_.3} parent=15 // pred_check
        %p451 = pneg %p284
      $region54: #{_lambda_.3} parent=15 // pred_check_branch
        %453 = sbr.rel (%p451) target = $region56
      $region55: #{_lambda_.3} parent=15 // pred_region
        %p454 = scmp.lt.s32.totalorder %s26, 1
        %s455 = scalar_select %p454, %s26, 1
        %s456 = smul.addr %s455, 2
        %s457 = scalar_lea.vmem %s9, %s456
      $region56: #{_lambda_.3} parent=15 // pred_fallthru
        _
      // Predicated region
      $region57: #{_lambda_.3} parent=15 // pred_check
        %p458 = pneg %p310
      $region58: #{_lambda_.3} parent=15 // pred_check_branch
        %460 = sbr.rel (%p458) target = $region60
      $region59: #{_lambda_.3} parent=15 // pred_region
        %p461 = scmp.lt.s32.totalorder %s26, 1
        %s462 = scalar_select %p461, %s26, 1
        %s463 = smul.addr %s462, 32
        %s464 = smul.addr %s463, 4
        %s465 = scalar_lea.vmem %s10, %s464
      $region60: #{_lambda_.3} parent=15 // pred_fallthru
        _
      // Predicated region
      $region61: #{_lambda_.3} parent=15 // pred_check
        %p466 = pneg %p336
      $region62: #{_lambda_.3} parent=15 // pred_check_branch
        %468 = sbr.rel (%p466) target = $region64
      $region63: #{_lambda_.3} parent=15 // pred_region
        %p469 = scmp.lt.s32.totalorder %s26, 1
        %s470 = scalar_select %p469, %s26, 1
        %s471 = scalar_lea.vmem %s11, %s470
      $region64: #{_lambda_.3} parent=15 // pred_fallthru
        _
    $region16: #{_lambda_.3} parent=5 // pred_fallthru
      _
    %p472 = scmp.le.s32.totalorder 1, %s18
    %p473 = scmp.lt.s32.totalorder %s18, 5
    %p474 = pnand %p472, %p473
    %p475 = pneg %p474
    // Predicated region
    $region65: #{_lambda_.3} parent=5 // pred_check
      _
    $region66: #{_lambda_.3} parent=5 // pred_check_branch
      %477 = sbr.rel (%p474) target = $region68
    $region67: #{_lambda_.3} parent=5 // pred_region
      %s478 = ssub.s32 %s18, 1
      %s479 = smul.u32 2, %s27
      %p480 = scmp.lt.s32.totalorder %s479, 3
      %s481 = scalar_select %p480, %s479, 3
      %s482 = smul.addr %s481, 3
      %s483 = smul.addr %s482, 8
      %s484 = scalar_lea.vmem %s0, %s483
      %p485 = pneg %p56
      %p486 = pneg %p53
      %p487 = scmp.lt.s32.totalorder %s28, 1
      %s488 = scalar_select %p487, %s28, 1
      %s489 = scalar_lea.vmem %s1, %s488
      %p490 = pneg %p82
      %p491 = pneg %p79
      %p492 = scmp.lt.s32.totalorder %s28, 1
      %s493 = scalar_select %p492, %s28, 1
      %s494 = scalar_lea.vmem %s2, %s493
      %p495 = pneg %p108
      %p496 = pneg %p105
      %p497 = scmp.lt.s32.totalorder %s28, 1
      %s498 = scalar_select %p497, %s28, 1
      %s499 = smul.addr %s498, 48
      %s500 = smul.addr %s499, 4
      %s501 = scalar_lea.vmem %s3, %s500
      %p502 = pneg %p134
      %p503 = pneg %p131
      %p504 = scmp.lt.s32.totalorder %s28, 1
      %s505 = scalar_select %p504, %s28, 1
      %s506 = smul.addr %s505, 16
      %s507 = smul.addr %s506, 4
      %s508 = scalar_lea.vmem %s4, %s507
      %p509 = pneg %p160
      %p510 = pneg %p157
      %p511 = scmp.lt.s32.totalorder %s28, 1
      %s512 = scalar_select %p511, %s28, 1
      %s513 = scalar_lea.vmem %s5, %s512
      %p514 = pneg %p186
      %p515 = pneg %p183
      %p516 = scmp.lt.s32.totalorder %s28, 1
      %s517 = scalar_select %p516, %s28, 1
      %s518 = scalar_lea.vmem %s6, %s517
      %p519 = pneg %p212
      %p520 = pneg %p209
      %p521 = scmp.lt.s32.totalorder %s28, 1
      %s522 = scalar_select %p521, %s28, 1
      %s523 = scalar_lea.vmem %s7, %s522
      %p524 = pneg %p238
      %p525 = pneg %p235
      %p526 = scmp.lt.s32.totalorder %s28, 1
      %s527 = scalar_select %p526, %s28, 1
      %s528 = smul.addr %s527, 32
      %s529 = smul.addr %s528, 4
      %s530 = scalar_lea.vmem %s8, %s529
      %p531 = pneg %p264
      %p532 = pneg %p261
      %p533 = scmp.lt.s32.totalorder %s28, 1
      %s534 = scalar_select %p533, %s28, 1
      %s535 = smul.addr %s534, 2
      %s536 = scalar_lea.vmem %s9, %s535
      %p537 = pneg %p290
      %p538 = pneg %p287
      %p539 = scmp.lt.s32.totalorder %s28, 1
      %s540 = scalar_select %p539, %s28, 1
      %s541 = smul.addr %s540, 32
      %s542 = smul.addr %s541, 4
      %s543 = scalar_lea.vmem %s10, %s542
      %p544 = pneg %p316
      %p545 = pneg %p313
      %p546 = scmp.lt.s32.totalorder %s28, 1
      %s547 = scalar_select %p546, %s28, 1
      %s548 = scalar_lea.vmem %s11, %s547
      %p549 = pneg %p342
      %p550 = pneg %p339
      %p551 = pneg %p368
      %p552 = pneg %p365
      %s553 = smul.u32 2, %s27
      %p554 = scmp.lt.s32.totalorder %s553, 3
      %s555 = scalar_select %p554, %s553, 3
      %s556 = smul.addr %s555, 3
      %s557 = smul.addr %s556, 8
      %s558 = scalar_lea.vmem %s12, %s557
      %s559 = smul.u32 2, %s27
      %p560 = scmp.lt.s32.totalorder %s559, 3
      %s561 = scalar_select %p560, %s559, 3
      %s562 = smul.addr %s561, 3
      %s563 = smul.addr %s562, 8
      %s564 = scalar_lea.vmem %s0, %s563
      %s565 = smul.u32 2, %s27
      %p566 = scmp.lt.s32.totalorder %s28, 1
      %s567 = scalar_select %p566, %s28, 1
      %s568 = scalar_lea.vmem %s1, %s567
      %p569 = scmp.lt.s32.totalorder %s28, 1
      %s570 = scalar_select %p569, %s28, 1
      %s571 = scalar_lea.vmem %s2, %s570
      %p572 = scmp.lt.s32.totalorder %s28, 1
      %s573 = scalar_select %p572, %s28, 1
      %s574 = smul.addr %s573, 48
      %s575 = smul.addr %s574, 4
      %s576 = scalar_lea.vmem %s3, %s575
      %p577 = scmp.lt.s32.totalorder %s28, 1
      %s578 = scalar_select %p577, %s28, 1
      %s579 = smul.addr %s578, 16
      %s580 = smul.addr %s579, 4
      %s581 = scalar_lea.vmem %s4, %s580
      %p582 = scmp.lt.s32.totalorder %s28, 1
      %s583 = scalar_select %p582, %s28, 1
      %s584 = scalar_lea.vmem %s5, %s583
      %p585 = scmp.lt.s32.totalorder %s28, 1
      %s586 = scalar_select %p585, %s28, 1
      %s587 = scalar_lea.vmem %s6, %s586
      %p588 = scmp.lt.s32.totalorder %s28, 1
      %s589 = scalar_select %p588, %s28, 1
      %s590 = scalar_lea.vmem %s7, %s589
      %p591 = scmp.lt.s32.totalorder %s28, 1
      %s592 = scalar_select %p591, %s28, 1
      %s593 = smul.addr %s592, 32
      %s594 = smul.addr %s593, 4
      %s595 = scalar_lea.vmem %s8, %s594
      %p596 = scmp.lt.s32.totalorder %s28, 1
      %s597 = scalar_select %p596, %s28, 1
      %s598 = smul.addr %s597, 2
      %s599 = scalar_lea.vmem %s9, %s598
      %p600 = scmp.lt.s32.totalorder %s28, 1
      %s601 = scalar_select %p600, %s28, 1
      %s602 = smul.addr %s601, 32
      %s603 = smul.addr %s602, 4
      %s604 = scalar_lea.vmem %s10, %s603
      %p605 = scmp.lt.s32.totalorder %s28, 1
      %s606 = scalar_select %p605, %s28, 1
      %s607 = scalar_lea.vmem %s11, %s606
      %s608 = smul.u32 2, %s27
      %p609 = scmp.lt.s32.totalorder %s608, 3
      %s610 = scalar_select %p609, %s608, 3
      %s611 = smul.addr %s610, 3
      %s612 = smul.addr %s611, 8
      %s613 = scalar_lea.vmem %s12, %s612
      %s614 = smul.u32 2, %s27
      %p616 = scmp.eq.s32.totalorder %s28, 0
      // Predicated region
      $region69: #{_lambda_.3} parent=67 // pred_check
        %p617 = pneg %p616
      $region70: #{_lambda_.3} parent=67 // pred_check_branch
        %619 = sbr.rel (%p617) target = $region72
      $region71: #{_lambda_.3} parent=67 // pred_region
        %v620 = vld [vmem:[%s564] sm:$0xff]
        %v621 = vld [vmem:[%s564 + $0x8] sm:$0xff]
        %v622 = vld [vmem:[%s564 + $0x10] sm:$0xff]
        %v623 = vld [vmem:[%s564 + $0x18] sm:$0xff]
        %v624 = vld [vmem:[%s564 + $0x20] sm:$0xff]
        %v625 = vld [vmem:[%s564 + $0x28] sm:$0xff]
        %626 = vst [vmem:[#allocation2] sm:$0xff] %v620
        %627 = vst [vmem:[#allocation2 + $0x8] sm:$0xff] %v621
        %628 = vst [vmem:[#allocation2 + $0x10] sm:$0xff] %v622
        %629 = vst [vmem:[#allocation2 + $0x18] sm:$0xff] %v623
        %630 = vst [vmem:[#allocation2 + $0x20] sm:$0xff] %v624
        %631 = vst [vmem:[#allocation2 + $0x28] sm:$0xff] %v625
      $region72: #{_lambda_.3} parent=67 // pred_fallthru
        _
      %v632 = vld [vmem:[#allocation2] sm:$0xff]
      %v633 = vld [vmem:[#allocation2 + $0x8] sm:$0xff]
      %v634 = vld [vmem:[#allocation2 + $0x10] sm:$0xff]
      %v635 = vld [vmem:[#allocation2 + $0x18] sm:$0xff]
      %v636 = vld [vmem:[#allocation2 + $0x20] sm:$0xff]
      %v637 = vld [vmem:[#allocation2 + $0x28] sm:$0xff]
      %v638 = vld [vmem:[%s568] sm:$0x1]
      %v639 = vld [vmem:[%s571] sm:$0x1]
      %640 = vadd.xlane.f32.xlu0 %v632
      %v641 = vpop.xlane.xlu0 %640
      %642 = vadd.xlane.f32.xlu0 %v633
      %v643 = vpop.xlane.xlu0 %642
      %644 = vadd.xlane.f32.xlu0 %v634
      %v645 = vpop.xlane.xlu0 %644
      %646 = vadd.xlane.f32.xlu0 %v635
      %v647 = vpop.xlane.xlu0 %646
      %648 = vadd.xlane.f32.xlu0 %v636
      %v649 = vpop.xlane.xlu0 %648
      %650 = vadd.xlane.f32.xlu0 %v637
      %v651 = vpop.xlane.xlu0 %650
      %v652 = vrcp.pop 128.0
      %v653 = vmul.f32 %v641, %v652
      %v654 = vmul.f32 %v643, %v652
      %v655 = vmul.f32 %v645, %v652
      %v656 = vmul.f32 %v647, %v652
      %v657 = vmul.f32 %v649, %v652
      %v658 = vmul.f32 %v651, %v652
      %v659 = vsub.f32 %v632, %v653
      %v660 = vsub.f32 %v633, %v654
      %v661 = vsub.f32 %v634, %v655
      %v662 = vsub.f32 %v635, %v656
      %v663 = vsub.f32 %v636, %v657
      %v664 = vsub.f32 %v637, %v658
      %v665 = vmul.f32 %v659, %v659
      %v666 = vmul.f32 %v660, %v660
      %v667 = vmul.f32 %v661, %v661
      %v668 = vmul.f32 %v662, %v662
      %v669 = vmul.f32 %v663, %v663
      %v670 = vmul.f32 %v664, %v664
      %671 = vadd.xlane.f32.xlu0 %v665
      %v672 = vpop.xlane.xlu0 %671
      %673 = vadd.xlane.f32.xlu0 %v666
      %v674 = vpop.xlane.xlu0 %673
      %675 = vadd.xlane.f32.xlu0 %v667
      %v676 = vpop.xlane.xlu0 %675
      %677 = vadd.xlane.f32.xlu0 %v668
      %v678 = vpop.xlane.xlu0 %677
      %679 = vadd.xlane.f32.xlu0 %v669
      %v680 = vpop.xlane.xlu0 %679
      %681 = vadd.xlane.f32.xlu0 %v670
      %v682 = vpop.xlane.xlu0 %681
      %v683 = vmul.f32 %v672, %v652
      %v684 = vmul.f32 %v674, %v652
      %v685 = vmul.f32 %v676, %v652
      %v686 = vmul.f32 %v678, %v652
      %v687 = vmul.f32 %v680, %v652
      %v688 = vmul.f32 %v682, %v652
      %v689 = vadd.f32 %v683, 1e-05
      %v690 = vadd.f32 %v684, 1e-05
      %v691 = vadd.f32 %v685, 1e-05
      %v692 = vadd.f32 %v686, 1e-05
      %v693 = vadd.f32 %v687, 1e-05
      %v694 = vadd.f32 %v688, 1e-05
      %v695 = vrsqrt.pop %v689
      %v696 = vrsqrt.pop %v690
      %v697 = vrsqrt.pop %v691
      %v698 = vrsqrt.pop %v692
      %v699 = vrsqrt.pop %v693
      %v700 = vrsqrt.pop %v694
      %v701 = vmul.f32 %v659, %v695
      %v702 = vmul.f32 %v660, %v696
      %v703 = vmul.f32 %v661, %v697
      %v704 = vmul.f32 %v662, %v698
      %v705 = vmul.f32 %v663, %v699
      %v706 = vmul.f32 %v664, %v700
      %v708 = vlaneseq
      %v709 = vshrl.u32 %v708, 7
      %v710 = vsub.s32 0, %v709
      %v711 = vrot.slane %v638, %v710
      %v713 = vmul.f32 %v701, %v711
      %v714 = vmul.f32 %v702, %v711
      %v715 = vmul.f32 %v703, %v711
      %v716 = vmul.f32 %v704, %v711
      %v717 = vmul.f32 %v705, %v711
      %v718 = vmul.f32 %v706, %v711
      %v720 = vlaneseq
      %v721 = vshrl.u32 %v720, 7
      %v722 = vsub.s32 0, %v721
      %v723 = vrot.slane %v639, %v722
      %v725 = vadd.f32 %v713, %v723
      %v726 = vadd.f32 %v714, %v723
      %v727 = vadd.f32 %v715, %v723
      %v728 = vadd.f32 %v716, %v723
      %v729 = vadd.f32 %v717, %v723
      %v730 = vadd.f32 %v718, %v723
      %v731 = vpack.c.bf16 %v726, %v725
      %v732 = vpack.c.bf16 %v728, %v727
      %v733 = vpack.c.bf16 %v730, %v729
      %v734 = vld [vmem:[%s576] sm:$0xff]
      %v735 = vld [vmem:[%s576 + $0x8] sm:$0xf]
      %v736 = vld [vmem:[%s576 + $0xc] sm:$0xff]
      %v737 = vld [vmem:[%s576 + $0x14] sm:$0xf]
      %v738 = vld [vmem:[%s576 + $0x18] sm:$0xff]
      %v739 = vld [vmem:[%s576 + $0x20] sm:$0xf]
      %v740 = vld [vmem:[%s576 + $0x24] sm:$0xff]
      %v741 = vld [vmem:[%s576 + $0x2c] sm:$0xf]
      %v742 = vld [vmem:[%s576 + $0x30] sm:$0xff]
      %v743 = vld [vmem:[%s576 + $0x38] sm:$0xf]
      %v744 = vld [vmem:[%s576 + $0x3c] sm:$0xff]
      %v745 = vld [vmem:[%s576 + $0x44] sm:$0xf]
      %v746 = vld [vmem:[%s576 + $0x48] sm:$0xff]
      %v747 = vld [vmem:[%s576 + $0x50] sm:$0xf]
      %v748 = vld [vmem:[%s576 + $0x54] sm:$0xff]
      %v749 = vld [vmem:[%s576 + $0x5c] sm:$0xf]
      %v750 = vld [vmem:[%s576 + $0x60] sm:$0xff]
      %v751 = vld [vmem:[%s576 + $0x68] sm:$0xf]
      %v752 = vld [vmem:[%s576 + $0x6c] sm:$0xff]
      %v753 = vld [vmem:[%s576 + $0x74] sm:$0xf]
      %v754 = vld [vmem:[%s576 + $0x78] sm:$0xff]
      %v755 = vld [vmem:[%s576 + $0x80] sm:$0xf]
      %v756 = vld [vmem:[%s576 + $0x84] sm:$0xff]
      %v757 = vld [vmem:[%s576 + $0x8c] sm:$0xf]
      %v758 = vld [vmem:[%s576 + $0x90] sm:$0xff]
      %v759 = vld [vmem:[%s576 + $0x98] sm:$0xf]
      %v760 = vld [vmem:[%s576 + $0x9c] sm:$0xff]
      %v761 = vld [vmem:[%s576 + $0xa4] sm:$0xf]
      %v762 = vld [vmem:[%s576 + $0xa8] sm:$0xff]
      %v763 = vld [vmem:[%s576 + $0xb0] sm:$0xf]
      %v764 = vld [vmem:[%s576 + $0xb4] sm:$0xff]
      %v765 = vld [vmem:[%s576 + $0xbc] sm:$0xf]
      %v798 = vunpack.c.l.b16 %v734
      %v799 = vunpack.c.h.b16 %v734
      %v800 = vunpack.c.l.b16 %v735
      %v801 = vunpack.c.l.b16 %v736
      %v802 = vunpack.c.h.b16 %v736
      %v803 = vunpack.c.l.b16 %v737
      %v804 = vunpack.c.l.b16 %v738
      %v805 = vunpack.c.h.b16 %v738
      %v806 = vunpack.c.l.b16 %v739
      %v807 = vunpack.c.l.b16 %v740
      %v808 = vunpack.c.h.b16 %v740
      %v809 = vunpack.c.l.b16 %v741
      %v810 = vunpack.c.l.b16 %v742
      %v811 = vunpack.c.h.b16 %v742
      %v812 = vunpack.c.l.b16 %v743
      %v813 = vunpack.c.l.b16 %v744
      %v814 = vunpack.c.h.b16 %v744
      %v815 = vunpack.c.l.b16 %v745
      %v816 = vunpack.c.l.b16 %v746
      %v817 = vunpack.c.h.b16 %v746
      %v818 = vunpack.c.l.b16 %v747
      %v819 = vunpack.c.l.b16 %v748
      %v820 = vunpack.c.h.b16 %v748
      %v821 = vunpack.c.l.b16 %v749
      %v822 = vunpack.c.l.b16 %v750
      %v823 = vunpack.c.h.b16 %v750
      %v824 = vunpack.c.l.b16 %v751
      %v825 = vunpack.c.l.b16 %v752
      %v826 = vunpack.c.h.b16 %v752
      %v827 = vunpack.c.l.b16 %v753
      %v828 = vunpack.c.l.b16 %v754
      %v829 = vunpack.c.h.b16 %v754
      %v830 = vunpack.c.l.b16 %v755
      %v831 = vunpack.c.l.b16 %v756
      %v832 = vunpack.c.h.b16 %v756
      %v833 = vunpack.c.l.b16 %v757
      %v834 = vunpack.c.l.b16 %v758
      %v835 = vunpack.c.h.b16 %v758
      %v836 = vunpack.c.l.b16 %v759
      %v837 = vunpack.c.l.b16 %v760
      %v838 = vunpack.c.h.b16 %v760
      %v839 = vunpack.c.l.b16 %v761
      %v840 = vunpack.c.l.b16 %v762
      %v841 = vunpack.c.h.b16 %v762
      %v842 = vunpack.c.l.b16 %v763
      %v843 = vunpack.c.l.b16 %v764
      %v844 = vunpack.c.h.b16 %v764
      %v845 = vunpack.c.l.b16 %v765
      %v846 = vpack.c.b16 %v801, %v798
      %v847 = vpack.c.b16 %v802, %v799
      %v848 = vpack.c.b16 %v803, %v800
      %v849 = vpack.c.b16 %v807, %v804
      %v850 = vpack.c.b16 %v808, %v805
      %v851 = vpack.c.b16 %v809, %v806
      %v852 = vpack.c.b16 %v813, %v810
      %v853 = vpack.c.b16 %v814, %v811
      %v854 = vpack.c.b16 %v815, %v812
      %v855 = vpack.c.b16 %v819, %v816
      %v856 = vpack.c.b16 %v820, %v817
      %v857 = vpack.c.b16 %v821, %v818
      %v858 = vpack.c.b16 %v825, %v822
      %v859 = vpack.c.b16 %v826, %v823
      %v860 = vpack.c.b16 %v827, %v824
      %v861 = vpack.c.b16 %v831, %v828
      %v862 = vpack.c.b16 %v832, %v829
      %v863 = vpack.c.b16 %v833, %v830
      %v864 = vpack.c.b16 %v837, %v834
      %v865 = vpack.c.b16 %v838, %v835
      %v866 = vpack.c.b16 %v839, %v836
      %v867 = vpack.c.b16 %v843, %v840
      %v868 = vpack.c.b16 %v844, %v841
      %v869 = vpack.c.b16 %v845, %v842
      %894 = vmatprep.subr.bf16.mxu0 %v847
      %895 = vmatpush1.bf16.msra.mxu0 %v846
      %896 = vmatprep.subr.bf16.mxu0 %v850
      %897 = vmatpush1.bf16.msra.mxu0 %v849
      %898 = vmatprep.subr.bf16.mxu0 %v853
      %899 = vmatpush1.bf16.msra.mxu0 %v852
      %900 = vmatprep.subr.bf16.mxu0 %v856
      %901 = vmatpush1.bf16.msra.mxu0 %v855
      %902 = vmatprep.subr.bf16.mxu0 %v859
      %903 = vmatpush1.bf16.msra.mxu0 %v858
      %904 = vmatprep.subr.bf16.mxu0 %v862
      %905 = vmatpush1.bf16.msra.mxu0 %v861
      %906 = vmatprep.subr.bf16.mxu0 %v865
      %907 = vmatpush1.bf16.msra.mxu0 %v864
      %908 = vmatprep.subr.bf16.mxu0 %v868
      %909 = vmatpush1.bf16.msra.mxu0 %v867
      %910 = vmatprep.subr.bf16.mxu0 0
      %911 = vmatpush1.bf16.msra.mxu0 0
      %912 = vmatprep.subr.bf16.mxu0 0
      %913 = vmatpush1.bf16.msra.mxu0 0
      %914 = vmatprep.subr.bf16.mxu0 0
      %915 = vmatpush1.bf16.msra.mxu0 0
      %916 = vmatprep.subr.bf16.mxu0 0
      %917 = vmatpush1.bf16.msra.mxu0 0
      %918 = vmatprep.subr.bf16.mxu0 0
      %919 = vmatpush1.bf16.msra.mxu0 0
      %920 = vmatprep.subr.bf16.mxu0 0
      %921 = vmatpush1.bf16.msra.mxu0 0
      %922 = vmatprep.subr.bf16.mxu0 0
      %923 = vmatpush1.bf16.msra.mxu0 0
      %924 = vmatprep.subr.bf16.mxu0 0
      %925 = vmatpush1.bf16.msra.mxu0 0
      %926 = vmatprep.mubr.bf16.mxu0 0
      %927 = vmatmul.mubr.bf16.gmra.mrb[0].mxu0 %v731
      %v928 = vpop.f32.mrb[0].mxu0
      %v929 = vadd.f32 0.0, %v928
      %v930 = vpop.f32.mrb[0].mxu0
      %v931 = vadd.f32 0.0, %v930
      %v932 = vpop.f32.mrb[0].mxu0
      %v933 = vadd.f32 0.0, %v932
      %v934 = vpop.f32.mrb[0].mxu0
      %v935 = vadd.f32 0.0, %v934
      %936 = vmatprep.mubr.bf16.mxu0 0
      %937 = vmatmul.mubr.bf16.gmra.mrb[0].mxu0 %v732
      %v938 = vpop.f32.mrb[0].mxu0
      %v939 = vadd.f32 0.0, %v938
      %v940 = vpop.f32.mrb[0].mxu0
      %v941 = vadd.f32 0.0, %v940
      %v942 = vpop.f32.mrb[0].mxu0
      %v943 = vadd.f32 0.0, %v942
      %v944 = vpop.f32.mrb[0].mxu0
      %v945 = vadd.f32 0.0, %v944
      %946 = vmatprep.mubr.bf16.mxu0 0
      %947 = vmatmul.mubr.bf16.gmra.mrb[0].mxu0 %v733
      %v948 = vpop.f32.mrb[0].mxu0
      %v949 = vadd.f32 0.0, %v948
      %v950 = vpop.f32.mrb[0].mxu0
      %v951 = vadd.f32 0.0, %v950
      %v952 = vpop.f32.mrb[0].mxu0
      %v953 = vadd.f32 0.0, %v952
      %v954 = vpop.f32.mrb[0].mxu0
      %v955 = vadd.f32 0.0, %v954
      %956 = vdwg.mxu0
      %957 = vmatprep.subr.bf16.mxu0 0
      %958 = vmatpush1.bf16.msra.mxu0 %v848
      %959 = vmatprep.subr.bf16.mxu0 0
      %960 = vmatpush1.bf16.msra.mxu0 %v851
      %961 = vmatprep.subr.bf16.mxu0 0
      %962 = vmatpush1.bf16.msra.mxu0 %v854
      %963 = vmatprep.subr.bf16.mxu0 0
      %964 = vmatpush1.bf16.msra.mxu0 %v857
      %965 = vmatprep.subr.bf16.mxu0 0
      %966 = vmatpush1.bf16.msra.mxu0 %v860
      %967 = vmatprep.subr.bf16.mxu0 0
      %968 = vmatpush1.bf16.msra.mxu0 %v863
      %969 = vmatprep.subr.bf16.mxu0 0
      %970 = vmatpush1.bf16.msra.mxu0 %v866
      %971 = vmatprep.subr.bf16.mxu0 0
      %972 = vmatpush1.bf16.msra.mxu0 %v869
      %973 = vmatprep.subr.bf16.mxu0 0
      %974 = vmatpush1.bf16.msra.mxu0 0
      %975 = vmatprep.subr.bf16.mxu0 0
      %976 = vmatpush1.bf16.msra.mxu0 0
      %977 = vmatprep.subr.bf16.mxu0 0
      %978 = vmatpush1.bf16.msra.mxu0 0
      %979 = vmatprep.subr.bf16.mxu0 0
      %980 = vmatpush1.bf16.msra.mxu0 0
      %981 = vmatprep.subr.bf16.mxu0 0
      %982 = vmatpush1.bf16.msra.mxu0 0
      %983 = vmatprep.subr.bf16.mxu0 0
      %984 = vmatpush1.bf16.msra.mxu0 0
      %985 = vmatprep.subr.bf16.mxu0 0
      %986 = vmatpush1.bf16.msra.mxu0 0
      %987 = vmatprep.subr.bf16.mxu0 0
      %988 = vmatpush1.bf16.msra.mxu0 0
      %989 = vmatprep.mubr.bf16.mxu0 0
      %990 = vmatmul.mubr.bf16.gmra.mrb[0].mxu0 %v731
      %v991 = vpop.f32.mrb[0].mxu0
      %v992 = vadd.f32 0.0, %v991
      %v993 = vpop.f32.mrb[0].mxu0
      %v994 = vpop.f32.mrb[0].mxu0
      %v995 = vadd.f32 0.0, %v994
      %v996 = vpop.f32.mrb[0].mxu0
      %997 = vmatprep.mubr.bf16.mxu0 0
      %998 = vmatmul.mubr.bf16.gmra.mrb[0].mxu0 %v732
      %v999 = vpop.f32.mrb[0].mxu0
      %v1000 = vadd.f32 0.0, %v999
      %v1001 = vpop.f32.mrb[0].mxu0
      %v1002 = vpop.f32.mrb[0].mxu0
      %v1003 = vadd.f32 0.0, %v1002
      %v1004 = vpop.f32.mrb[0].mxu0
      %1005 = vmatprep.mubr.bf16.mxu0 0
      %1006 = vmatmul.mubr.bf16.gmra.mrb[0].mxu0 %v733
      %v1007 = vpop.f32.mrb[0].mxu0
      %v1008 = vadd.f32 0.0, %v1007
      %v1009 = vpop.f32.mrb[0].mxu0
      %v1010 = vpop.f32.mrb[0].mxu0
      %v1011 = vadd.f32 0.0, %v1010
      %v1012 = vpop.f32.mrb[0].mxu0
      %1013 = vdwg.mxu0
      %v1014 = vmul.f32 %v929, 0.125
      %v1015 = vmul.f32 %v933, 0.125
      %v1016 = vmul.f32 %v939, 0.125
      %v1017 = vmul.f32 %v943, 0.125
      %v1018 = vmul.f32 %v949, 0.125
      %v1019 = vmul.f32 %v953, 0.125
      %1026 = vrot.lane.b32.xlu0 %v1014, 64
      %v1027 = vpop.permute.xlu0 %1026
      %1028 = vrot.lane.b32.xlu0 %v1015, 64
      %v1029 = vpop.permute.xlu0 %1028
      %1030 = vrot.lane.b32.xlu0 %v1016, 64
      %v1031 = vpop.permute.xlu0 %1030
      %1032 = vrot.lane.b32.xlu0 %v1017, 64
      %v1033 = vpop.permute.xlu0 %1032
      %1034 = vrot.lane.b32.xlu0 %v1018, 64
      %v1035 = vpop.permute.xlu0 %1034
      %1036 = vrot.lane.b32.xlu0 %v1019, 64
      %v1037 = vpop.permute.xlu0 %1036
      %v1044 = vpack.c.bf16 %v1015, %v1014
      %v1045 = vpack.c.bf16 %v1016, %v1016
      %v1046 = vpack.c.bf16 %v1018, %v1017
      %v1047 = vpack.c.bf16 %v1019, %v1019
      %v1048 = vpack.c.bf16 %v1029, %v1027
      %v1049 = vpack.c.bf16 %v1031, %v1031
      %v1050 = vpack.c.bf16 %v1035, %v1033
      %v1051 = vpack.c.bf16 %v1037, %v1037
      %1058 = vrot.lane.b32.xlu0 %v931, 64
      %v1059 = vpop.permute.xlu0 %1058
      %1060 = vrot.lane.b32.xlu0 %v935, 64
      %v1061 = vpop.permute.xlu0 %1060
      %1062 = vrot.lane.b32.xlu0 %v941, 64
      %v1063 = vpop.permute.xlu0 %1062
      %1064 = vrot.lane.b32.xlu0 %v945, 64
      %v1065 = vpop.permute.xlu0 %1064
      %1066 = vrot.lane.b32.xlu0 %v951, 64
      %v1067 = vpop.permute.xlu0 %1066
      %1068 = vrot.lane.b32.xlu0 %v955, 64
      %v1069 = vpop.permute.xlu0 %1068
      %v1076 = vpack.c.bf16 %v935, %v931
      %v1077 = vpack.c.bf16 %v941, %v941
      %v1078 = vpack.c.bf16 %v951, %v945
      %v1079 = vpack.c.bf16 %v955, %v955
      %v1080 = vpack.c.bf16 %v1061, %v1059
      %v1081 = vpack.c.bf16 %v1063, %v1063
      %v1082 = vpack.c.bf16 %v1067, %v1065
      %v1083 = vpack.c.bf16 %v1069, %v1069
      %1090 = vrot.lane.b32.xlu0 %v992, 64
      %v1091 = vpop.permute.xlu0 %1090
      %1092 = vrot.lane.b32.xlu0 %v995, 64
      %v1093 = vpop.permute.xlu0 %1092
      %1094 = vrot.lane.b32.xlu0 %v1000, 64
      %v1095 = vpop.permute.xlu0 %1094
      %1096 = vrot.lane.b32.xlu0 %v1003, 64
      %v1097 = vpop.permute.xlu0 %1096
      %1098 = vrot.lane.b32.xlu0 %v1008, 64
      %v1099 = vpop.permute.xlu0 %1098
      %1100 = vrot.lane.b32.xlu0 %v1011, 64
      %v1101 = vpop.permute.xlu0 %1100
      %v1108 = vpack.c.bf16 %v995, %v992
      %v1109 = vpack.c.bf16 %v1000, %v1000
      %v1110 = vpack.c.bf16 %v1008, %v1003
      %v1111 = vpack.c.bf16 %v1011, %v1011
      %v1112 = vpack.c.bf16 %v1093, %v1091
      %v1113 = vpack.c.bf16 %v1095, %v1095
      %v1114 = vpack.c.bf16 %v1099, %v1097
      %v1115 = vpack.c.bf16 %v1101, %v1101
      %vm1116 = vcmask 523264
      %v1118 = vsel %vm1116, %v1044, 0
      %v1121 = vsel %vm1116, %v1045, 0
      %v1124 = vsel %vm1116, %v1076, 0
      %v1127 = vsel %vm1116, %v1077, 0
      %1129 = vmatprep.subr.bf16.mxu0 0
      %1130 = vmatpush1.bf16.xpose.msra.mxu0 %v1124
      %1131 = vmatprep.subr.bf16.mxu0 0
      %1132 = vmatpush1.bf16.xpose.msra.mxu0 %v1127
      %1133 = vmatprep.subr.bf16.mxu0 0
      %1134 = vmatpush1.bf16.xpose.msra.mxu0 0
      %1135 = vmatprep.subr.bf16.mxu0 0
      %1136 = vmatpush1.bf16.xpose.msra.mxu0 0
      %1137 = vmatprep.subr.bf16.mxu0 0
      %1138 = vmatpush1.bf16.xpose.msra.mxu0 0
      %1139 = vmatprep.subr.bf16.mxu0 0
      %1140 = vmatpush1.bf16.xpose.msra.mxu0 0
      %1141 = vmatprep.subr.bf16.mxu0 0
      %1142 = vmatpush1.bf16.xpose.msra.mxu0 0
      %1143 = vmatprep.subr.bf16.mxu0 0
      %1144 = vmatpush1.bf16.xpose.msra.mxu0 0
      %1145 = vmatprep.subr.bf16.mxu0 0
      %1146 = vmatpush1.bf16.xpose.msra.mxu0 0
      %1147 = vmatprep.subr.bf16.mxu0 0
      %1148 = vmatpush1.bf16.xpose.msra.mxu0 0
      %1149 = vmatprep.subr.bf16.mxu0 0
      %1150 = vmatpush1.bf16.xpose.msra.mxu0 0
      %1151 = vmatprep.subr.bf16.mxu0 0
      %1152 = vmatpush1.bf16.xpose.msra.mxu0 0
      %1153 = vmatprep.subr.bf16.mxu0 0
      %1154 = vmatpush1.bf16.xpose.msra.mxu0 0
      %1155 = vmatprep.subr.bf16.mxu0 0
      %1156 = vmatpush1.bf16.xpose.msra.mxu0 0
      %1157 = vmatprep.subr.bf16.mxu0 0
      %1158 = vmatpush1.bf16.xpose.msra.mxu0 0
      %1159 = vmatprep.subr.bf16.mxu0 0
      %1160 = vmatpush1.bf16.xpose.msra.mxu0 0
      %1161 = vmatprep.mubr.bf16.mxu0 0
      %1162 = vmatmul.mubr.bf16.gmra.mrb[0].mxu0 %v1118
      %v1163 = vpop.f32.mrb[0].mxu0
      %v1164 = vadd.f32 0.0, %v1163
      %v1165 = vpop.f32.mrb[0].mxu0
      %v1166 = vpop.f32.mrb[0].mxu0
      %v1167 = vadd.f32 0.0, %v1166
      %v1168 = vpop.f32.mrb[0].mxu0
      %1169 = vmatprep.mubr.bf16.mxu0 0
      %1170 = vmatmul.mubr.bf16.gmra.mrb[0].mxu0 %v1121
      %v1171 = vpop.f32.mrb[0].mxu0
      %v1172 = vadd.f32 0.0, %v1171
      %v1173 = vpop.f32.mrb[0].mxu0
      %v1174 = vpop.f32.mrb[0].mxu0
      %v1175 = vpop.f32.mrb[0].mxu0
      %1176 = vdwg.mxu0
      %v1178 = vsel %vm1116, %v1046, 0
      %v1181 = vsel %vm1116, %v1047, 0
      %v1184 = vsel %vm1116, %v1078, 0
      %v1187 = vsel %vm1116, %v1079, 0
      %1189 = vmatprep.subr.bf16.mxu0 0
      %1190 = vmatpush1.bf16.xpose.msra.mxu0 %v1184
      %1191 = vmatprep.subr.bf16.mxu0 0
      %1192 = vmatpush1.bf16.xpose.msra.mxu0 %v1187
      %1193 = vmatprep.subr.bf16.mxu0 0
      %1194 = vmatpush1.bf16.xpose.msra.mxu0 0
      %1195 = vmatprep.subr.bf16.mxu0 0
      %1196 = vmatpush1.bf16.xpose.msra.mxu0 0
      %1197 = vmatprep.subr.bf16.mxu0 0
      %1198 = vmatpush1.bf16.xpose.msra.mxu0 0
      %1199 = vmatprep.subr.bf16.mxu0 0
      %1200 = vmatpush1.bf16.xpose.msra.mxu0 0
      %1201 = vmatprep.subr.bf16.mxu0 0
      %1202 = vmatpush1.bf16.xpose.msra.mxu0 0
      %1203 = vmatprep.subr.bf16.mxu0 0
      %1204 = vmatpush1.bf16.xpose.msra.mxu0 0
      %1205 = vmatprep.subr.bf16.mxu0 0
      %1206 = vmatpush1.bf16.xpose.msra.mxu0 0
      %1207 = vmatprep.subr.bf16.mxu0 0
      %1208 = vmatpush1.bf16.xpose.msra.mxu0 0
      %1209 = vmatprep.subr.bf16.mxu0 0
      %1210 = vmatpush1.bf16.xpose.msra.mxu0 0
      %1211 = vmatprep.subr.bf16.mxu0 0
      %1212 = vmatpush1.bf16.xpose.msra.mxu0 0
      %1213 = vmatprep.subr.bf16.mxu0 0
      %1214 = vmatpush1.bf16.xpose.msra.mxu0 0
      %1215 = vmatprep.subr.bf16.mxu0 0
      %1216 = vmatpush1.bf16.xpose.msra.mxu0 0
      %1217 = vmatprep.subr.bf16.mxu0 0
      %1218 = vmatpush1.bf16.xpose.msra.mxu0 0
      %1219 = vmatprep.subr.bf16.mxu0 0
      %1220 = vmatpush1.bf16.xpose.msra.mxu0 0
      %1221 = vmatprep.mubr.bf16.mxu0 0
      %1222 = vmatmul.mubr.bf16.gmra.mrb[0].mxu0 %v1178
      %v1223 = vpop.f32.mrb[0].mxu0
      %v1224 = vadd.f32 0.0, %v1223
      %v1225 = vpop.f32.mrb[0].mxu0
      %v1226 = vpop.f32.mrb[0].mxu0
      %v1227 = vadd.f32 0.0, %v1226
      %v1228 = vpop.f32.mrb[0].mxu0
      %1229 = vmatprep.mubr.bf16.mxu0 0
      %1230 = vmatmul.mubr.bf16.gmra.mrb[0].mxu0 %v1181
      %v1231 = vpop.f32.mrb[0].mxu0
      %v1232 = vadd.f32 0.0, %v1231
      %v1233 = vpop.f32.mrb[0].mxu0
      %v1234 = vpop.f32.mrb[0].mxu0
      %v1235 = vpop.f32.mrb[0].mxu0
      %1236 = vdwg.mxu0
      %v1238 = vsel %vm1116, %v1048, 0
      %v1241 = vsel %vm1116, %v1049, 0
      %v1244 = vsel %vm1116, %v1080, 0
      %v1247 = vsel %vm1116, %v1081, 0
      %1249 = vmatprep.subr.bf16.mxu0 0
      %1250 = vmatpush1.bf16.xpose.msra.mxu0 %v1244
      %1251 = vmatprep.subr.bf16.mxu0 0
      %1252 = vmatpush1.bf16.xpose.msra.mxu0 %v1247
      %1253 = vmatprep.subr.bf16.mxu0 0
      %1254 = vmatpush1.bf16.xpose.msra.mxu0 0
      %1255 = vmatprep.subr.bf16.mxu0 0
      %1256 = vmatpush1.bf16.xpose.msra.mxu0 0
      %1257 = vmatprep.subr.bf16.mxu0 0
      %1258 = vmatpush1.bf16.xpose.msra.mxu0 0
      %1259 = vmatprep.subr.bf16.mxu0 0
      %1260 = vmatpush1.bf16.xpose.msra.mxu0 0
      %1261 = vmatprep.subr.bf16.mxu0 0
      %1262 = vmatpush1.bf16.xpose.msra.mxu0 0
      %1263 = vmatprep.subr.bf16.mxu0 0
      %1264 = vmatpush1.bf16.xpose.msra.mxu0 0
      %1265 = vmatprep.subr.bf16.mxu0 0
      %1266 = vmatpush1.bf16.xpose.msra.mxu0 0
      %1267 = vmatprep.subr.bf16.mxu0 0
      %1268 = vmatpush1.bf16.xpose.msra.mxu0 0
      %1269 = vmatprep.subr.bf16.mxu0 0
      %1270 = vmatpush1.bf16.xpose.msra.mxu0 0
      %1271 = vmatprep.subr.bf16.mxu0 0
      %1272 = vmatpush1.bf16.xpose.msra.mxu0 0
      %1273 = vmatprep.subr.bf16.mxu0 0
      %1274 = vmatpush1.bf16.xpose.msra.mxu0 0
      %1275 = vmatprep.subr.bf16.mxu0 0
      %1276 = vmatpush1.bf16.xpose.msra.mxu0 0
      %1277 = vmatprep.subr.bf16.mxu0 0
      %1278 = vmatpush1.bf16.xpose.msra.mxu0 0
      %1279 = vmatprep.subr.bf16.mxu0 0
      %1280 = vmatpush1.bf16.xpose.msra.mxu0 0
      %1281 = vmatprep.mubr.bf16.mxu0 0
      %1282 = vmatmul.mubr.bf16.gmra.mrb[0].mxu0 %v1238
      %v1283 = vpop.f32.mrb[0].mxu0
      %v1284 = vadd.f32 0.0, %v1283
      %v1285 = vpop.f32.mrb[0].mxu0
      %v1286 = vpop.f32.mrb[0].mxu0
      %v1287 = vadd.f32 0.0, %v1286
      %v1288 = vpop.f32.mrb[0].mxu0
      %1289 = vmatprep.mubr.bf16.mxu0 0
      %1290 = vmatmul.mubr.bf16.gmra.mrb[0].mxu0 %v1241
      %v1291 = vpop.f32.mrb[0].mxu0
      %v1292 = vadd.f32 0.0, %v1291
      %v1293 = vpop.f32.mrb[0].mxu0
      %v1294 = vpop.f32.mrb[0].mxu0
      %v1295 = vpop.f32.mrb[0].mxu0
      %1296 = vdwg.mxu0
      %v1298 = vsel %vm1116, %v1050, 0
      %v1301 = vsel %vm1116, %v1051, 0
      %v1304 = vsel %vm1116, %v1082, 0
      %v1307 = vsel %vm1116, %v1083, 0
      %1309 = vmatprep.subr.bf16.mxu0 0
      %1310 = vmatpush1.bf16.xpose.msra.mxu0 %v1304
      %1311 = vmatprep.subr.bf16.mxu0 0
      %1312 = vmatpush1.bf16.xpose.msra.mxu0 %v1307
      %1313 = vmatprep.subr.bf16.mxu0 0
      %1314 = vmatpush1.bf16.xpose.msra.mxu0 0
      %1315 = vmatprep.subr.bf16.mxu0 0
      %1316 = vmatpush1.bf16.xpose.msra.mxu0 0
      %1317 = vmatprep.subr.bf16.mxu0 0
      %1318 = vmatpush1.bf16.xpose.msra.mxu0 0
      %1319 = vmatprep.subr.bf16.mxu0 0
      %1320 = vmatpush1.bf16.xpose.msra.mxu0 0
      %1321 = vmatprep.subr.bf16.mxu0 0
      %1322 = vmatpush1.bf16.xpose.msra.mxu0 0
      %1323 = vmatprep.subr.bf16.mxu0 0
      %1324 = vmatpush1.bf16.xpose.msra.mxu0 0
      %1325 = vmatprep.subr.bf16.mxu0 0
      %1326 = vmatpush1.bf16.xpose.msra.mxu0 0
      %1327 = vmatprep.subr.bf16.mxu0 0
      %1328 = vmatpush1.bf16.xpose.msra.mxu0 0
      %1329 = vmatprep.subr.bf16.mxu0 0
      %1330 = vmatpush1.bf16.xpose.msra.mxu0 0
      %1331 = vmatprep.subr.bf16.mxu0 0
      %1332 = vmatpush1.bf16.xpose.msra.mxu0 0
      %1333 = vmatprep.subr.bf16.mxu0 0
      %1334 = vmatpush1.bf16.xpose.msra.mxu0 0
      %1335 = vmatprep.subr.bf16.mxu0 0
      %1336 = vmatpush1.bf16.xpose.msra.mxu0 0
      %1337 = vmatprep.subr.bf16.mxu0 0
      %1338 = vmatpush1.bf16.xpose.msra.mxu0 0
      %1339 = vmatprep.subr.bf16.mxu0 0
      %1340 = vmatpush1.bf16.xpose.msra.mxu0 0
      %1341 = vmatprep.mubr.bf16.mxu0 0
      %1342 = vmatmul.mubr.bf16.gmra.mrb[0].mxu0 %v1298
      %v1343 = vpop.f32.mrb[0].mxu0
      %v1344 = vadd.f32 0.0, %v1343
      %v1345 = vpop.f32.mrb[0].mxu0
      %v1346 = vpop.f32.mrb[0].mxu0
      %v1347 = vadd.f32 0.0, %v1346
      %v1348 = vpop.f32.mrb[0].mxu0
      %1349 = vmatprep.mubr.bf16.mxu0 0
      %1350 = vmatmul.mubr.bf16.gmra.mrb[0].mxu0 %v1301
      %v1351 = vpop.f32.mrb[0].mxu0
      %v1352 = vadd.f32 0.0, %v1351
      %v1353 = vpop.f32.mrb[0].mxu0
      %v1354 = vpop.f32.mrb[0].mxu0
      %v1355 = vpop.f32.mrb[0].mxu0
      %1356 = vdwg.mxu0
      %v1357 = vlaneseq
      %v1358 = vand.u32 %v1357, 127
      %vm1359 = vcmp.lt.s32.totalorder %v1358, 17
      %v1360 = vsel %vm1359, 1, 0
      %vm1361 = vcmp.eq.s32.totalorder %v1360, 1
      %v1362 = vsel %vm1361, %v1164, -1e+30
      %v1363 = vsel %vm1361, %v1167, -1e+30
      %v1364 = vsel %vm1361, %v1172, -1e+30
      %v1365 = vsel %vm1361, %v1224, -1e+30
      %v1366 = vsel %vm1361, %v1227, -1e+30
      %v1367 = vsel %vm1361, %v1232, -1e+30
      %v1368 = vsel %vm1361, %v1284, -1e+30
      %v1369 = vsel %vm1361, %v1287, -1e+30
      %v1370 = vsel %vm1361, %v1292, -1e+30
      %v1371 = vsel %vm1361, %v1344, -1e+30
      %v1372 = vsel %vm1361, %v1347, -1e+30
      %v1373 = vsel %vm1361, %v1352, -1e+30
      %vm1374 = vcmask 195584
      %v1375 = vsel %vm1374, %v1362, -inf
      %1376 = vmax.xlane.f32.xlu0 %v1375
      %v1377 = vpop.xlane.xlu0 %1376
      %v1378 = vsel %vm1374, %v1363, -inf
      %1379 = vmax.xlane.f32.xlu0 %v1378
      %v1380 = vpop.xlane.xlu0 %1379
      %v1381 = vsel %vm1374, %v1364, -inf
      %1382 = vmax.xlane.f32.xlu0 %v1381
      %v1383 = vpop.xlane.xlu0 %1382
      %v1384 = vsel %vm1374, %v1365, -inf
      %1385 = vmax.xlane.f32.xlu0 %v1384
      %v1386 = vpop.xlane.xlu0 %1385
      %v1387 = vsel %vm1374, %v1366, -inf
      %1388 = vmax.xlane.f32.xlu0 %v1387
      %v1389 = vpop.xlane.xlu0 %1388
      %v1390 = vsel %vm1374, %v1367, -inf
      %1391 = vmax.xlane.f32.xlu0 %v1390
      %v1392 = vpop.xlane.xlu0 %1391
      %v1393 = vsel %vm1374, %v1368, -inf
      %1394 = vmax.xlane.f32.xlu0 %v1393
      %v1395 = vpop.xlane.xlu0 %1394
      %v1396 = vsel %vm1374, %v1369, -inf
      %1397 = vmax.xlane.f32.xlu0 %v1396
      %v1398 = vpop.xlane.xlu0 %1397
      %v1399 = vsel %vm1374, %v1370, -inf
      %1400 = vmax.xlane.f32.xlu0 %v1399
      %v1401 = vpop.xlane.xlu0 %1400
      %v1402 = vsel %vm1374, %v1371, -inf
      %1403 = vmax.xlane.f32.xlu0 %v1402
      %v1404 = vpop.xlane.xlu0 %1403
      %v1405 = vsel %vm1374, %v1372, -inf
      %1406 = vmax.xlane.f32.xlu0 %v1405
      %v1407 = vpop.xlane.xlu0 %1406
      %v1408 = vsel %vm1374, %v1373, -inf
      %1409 = vmax.xlane.f32.xlu0 %v1408
      %v1410 = vpop.xlane.xlu0 %1409
      %v1411 = vsub.f32 %v1362, %v1377
      %v1412 = vsub.f32 %v1363, %v1380
      %v1413 = vsub.f32 %v1364, %v1383
      %v1414 = vsub.f32 %v1365, %v1386
      %v1415 = vsub.f32 %v1366, %v1389
      %v1416 = vsub.f32 %v1367, %v1392
      %v1417 = vsub.f32 %v1368, %v1395
      %v1418 = vsub.f32 %v1369, %v1398
      %v1419 = vsub.f32 %v1370, %v1401
      %v1420 = vsub.f32 %v1371, %v1404
      %v1421 = vsub.f32 %v1372, %v1407
      %v1422 = vsub.f32 %v1373, %v1410
      %v1423 = vmul.f32 %v1411, 1.442695
      %v1424 = vpow.pop %v1423
      %v1425 = vmul.f32 %v1412, 1.442695
      %v1426 = vpow.pop %v1425
      %v1427 = vmul.f32 %v1413, 1.442695
      %v1428 = vpow.pop %v1427
      %v1429 = vmul.f32 %v1414, 1.442695
      %v1430 = vpow.pop %v1429
      %v1431 = vmul.f32 %v1415, 1.442695
      %v1432 = vpow.pop %v1431
      %v1433 = vmul.f32 %v1416, 1.442695
      %v1434 = vpow.pop %v1433
      %v1435 = vmul.f32 %v1417, 1.442695
      %v1436 = vpow.pop %v1435
      %v1437 = vmul.f32 %v1418, 1.442695
      %v1438 = vpow.pop %v1437
      %v1439 = vmul.f32 %v1419, 1.442695
      %v1440 = vpow.pop %v1439
      %v1441 = vmul.f32 %v1420, 1.442695
      %v1442 = vpow.pop %v1441
      %v1443 = vmul.f32 %v1421, 1.442695
      %v1444 = vpow.pop %v1443
      %v1445 = vmul.f32 %v1422, 1.442695
      %v1446 = vpow.pop %v1445
      %v1447 = vsel %vm1374, %v1424, 0.0
      %1448 = vadd.xlane.f32.xlu0 %v1447
      %v1449 = vpop.xlane.xlu0 %1448
      %v1450 = vsel %vm1374, %v1426, 0.0
      %1451 = vadd.xlane.f32.xlu0 %v1450
      %v1452 = vpop.xlane.xlu0 %1451
      %v1453 = vsel %vm1374, %v1428, 0.0
      %1454 = vadd.xlane.f32.xlu0 %v1453
      %v1455 = vpop.xlane.xlu0 %1454
      %v1456 = vsel %vm1374, %v1430, 0.0
      %1457 = vadd.xlane.f32.xlu0 %v1456
      %v1458 = vpop.xlane.xlu0 %1457
      %v1459 = vsel %vm1374, %v1432, 0.0
      %1460 = vadd.xlane.f32.xlu0 %v1459
      %v1461 = vpop.xlane.xlu0 %1460
      %v1462 = vsel %vm1374, %v1434, 0.0
      %1463 = vadd.xlane.f32.xlu0 %v1462
      %v1464 = vpop.xlane.xlu0 %1463
      %v1465 = vsel %vm1374, %v1436, 0.0
      %1466 = vadd.xlane.f32.xlu0 %v1465
      %v1467 = vpop.xlane.xlu0 %1466
      %v1468 = vsel %vm1374, %v1438, 0.0
      %1469 = vadd.xlane.f32.xlu0 %v1468
      %v1470 = vpop.xlane.xlu0 %1469
      %v1471 = vsel %vm1374, %v1440, 0.0
      %1472 = vadd.xlane.f32.xlu0 %v1471
      %v1473 = vpop.xlane.xlu0 %1472
      %v1474 = vsel %vm1374, %v1442, 0.0
      %1475 = vadd.xlane.f32.xlu0 %v1474
      %v1476 = vpop.xlane.xlu0 %1475
      %v1477 = vsel %vm1374, %v1444, 0.0
      %1478 = vadd.xlane.f32.xlu0 %v1477
      %v1479 = vpop.xlane.xlu0 %1478
      %v1480 = vsel %vm1374, %v1446, 0.0
      %1481 = vadd.xlane.f32.xlu0 %v1480
      %v1482 = vpop.xlane.xlu0 %1481
      %v1483 = vrcp.pop %v1449
      %v1484 = vrcp.pop %v1452
      %v1485 = vrcp.pop %v1455
      %v1486 = vrcp.pop %v1458
      %v1487 = vrcp.pop %v1461
      %v1488 = vrcp.pop %v1464
      %v1489 = vrcp.pop %v1467
      %v1490 = vrcp.pop %v1470
      %v1491 = vrcp.pop %v1473
      %v1492 = vrcp.pop %v1476
      %v1493 = vrcp.pop %v1479
      %v1494 = vrcp.pop %v1482
      %v1495 = vmul.f32 %v1424, %v1483
      %v1496 = vmul.f32 %v1426, %v1484
      %v1497 = vmul.f32 %v1428, %v1485
      %v1498 = vmul.f32 %v1430, %v1486
      %v1499 = vmul.f32 %v1432, %v1487
      %v1500 = vmul.f32 %v1434, %v1488
      %v1501 = vmul.f32 %v1436, %v1489
      %v1502 = vmul.f32 %v1438, %v1490
      %v1503 = vmul.f32 %v1440, %v1491
      %v1504 = vmul.f32 %v1442, %v1492
      %v1505 = vmul.f32 %v1444, %v1493
      %v1506 = vmul.f32 %v1446, %v1494
      %v1507 = vpack.c.bf16 %v1496, %v1495
      %v1508 = vpack.c.bf16 %v1497, %v1497
      %v1509 = vpack.c.bf16 %v1499, %v1498
      %v1510 = vpack.c.bf16 %v1500, %v1500
      %v1511 = vpack.c.bf16 %v1502, %v1501
      %v1512 = vpack.c.bf16 %v1503, %v1503
      %v1513 = vpack.c.bf16 %v1505, %v1504
      %v1514 = vpack.c.bf16 %v1506, %v1506
      %v1516 = vsel %vm1374, %v1507, 0
      %v1519 = vsel %vm1374, %v1508, 0
      %vm1521 = vcmask 1043456
      %v1523 = vsel %vm1521, %v1109, 0
      %1525 = vmatprep.subr.bf16.mxu0 0
      %1526 = vmatpush1.bf16.msra.mxu0 %v1108
      %1527 = vmatprep.subr.bf16.mxu0 0
      %1528 = vmatpush1.bf16.msra.mxu0 %v1523
      %1529 = vmatprep.subr.bf16.mxu0 0
      %1530 = vmatpush1.bf16.msra.mxu0 0
      %1531 = vmatprep.subr.bf16.mxu0 0
      %1532 = vmatpush1.bf16.msra.mxu0 0
      %1533 = vmatprep.subr.bf16.mxu0 0
      %1534 = vmatpush1.bf16.msra.mxu0 0
      %1535 = vmatprep.subr.bf16.mxu0 0
      %1536 = vmatpush1.bf16.msra.mxu0 0
      %1537 = vmatprep.subr.bf16.mxu0 0
      %1538 = vmatpush1.bf16.msra.mxu0 0
      %1539 = vmatprep.subr.bf16.mxu0 0
      %1540 = vmatpush1.bf16.msra.mxu0 0
      %1541 = vmatprep.subr.bf16.mxu0 0
      %1542 = vmatpush1.bf16.msra.mxu0 0
      %1543 = vmatprep.subr.bf16.mxu0 0
      %1544 = vmatpush1.bf16.msra.mxu0 0
      %1545 = vmatprep.subr.bf16.mxu0 0
      %1546 = vmatpush1.bf16.msra.mxu0 0
      %1547 = vmatprep.subr.bf16.mxu0 0
      %1548 = vmatpush1.bf16.msra.mxu0 0
      %1549 = vmatprep.subr.bf16.mxu0 0
      %1550 = vmatpush1.bf16.msra.mxu0 0
      %1551 = vmatprep.subr.bf16.mxu0 0
      %1552 = vmatpush1.bf16.msra.mxu0 0
      %1553 = vmatprep.subr.bf16.mxu0 0
      %1554 = vmatpush1.bf16.msra.mxu0 0
      %1555 = vmatprep.subr.bf16.mxu0 0
      %1556 = vmatpush1.bf16.msra.mxu0 0
      %1557 = vmatprep.mubr.bf16.mxu0 0
      %1558 = vmatmul.mubr.bf16.gmra.mrb[0].mxu0 %v1516
      %v1559 = vpop.f32.mrb[0].mxu0
      %v1560 = vadd.f32 0.0, %v1559
      %v1561 = vpop.f32.mrb[0].mxu0
      %v1562 = vpop.f32.mrb[0].mxu0
      %v1563 = vadd.f32 0.0, %v1562
      %v1564 = vpop.f32.mrb[0].mxu0
      %1565 = vmatprep.mubr.bf16.mxu0 0
      %1566 = vmatmul.mubr.bf16.gmra.mrb[0].mxu0 %v1519
      %v1567 = vpop.f32.mrb[0].mxu0
      %v1568 = vadd.f32 0.0, %v1567
      %v1569 = vpop.f32.mrb[0].mxu0
      %v1570 = vpop.f32.mrb[0].mxu0
      %v1571 = vpop.f32.mrb[0].mxu0
      %1572 = vdwg.mxu0
      %v1574 = vsel %vm1374, %v1509, 0
      %v1577 = vsel %vm1374, %v1510, 0
      %v1580 = vsel %vm1521, %v1111, 0
      %1582 = vmatprep.subr.bf16.mxu0 0
      %1583 = vmatpush1.bf16.msra.mxu0 %v1110
      %1584 = vmatprep.subr.bf16.mxu0 0
      %1585 = vmatpush1.bf16.msra.mxu0 %v1580
      %1586 = vmatprep.subr.bf16.mxu0 0
      %1587 = vmatpush1.bf16.msra.mxu0 0
      %1588 = vmatprep.subr.bf16.mxu0 0
      %1589 = vmatpush1.bf16.msra.mxu0 0
      %1590 = vmatprep.subr.bf16.mxu0 0
      %1591 = vmatpush1.bf16.msra.mxu0 0
      %1592 = vmatprep.subr.bf16.mxu0 0
      %1593 = vmatpush1.bf16.msra.mxu0 0
      %1594 = vmatprep.subr.bf16.mxu0 0
      %1595 = vmatpush1.bf16.msra.mxu0 0
      %1596 = vmatprep.subr.bf16.mxu0 0
      %1597 = vmatpush1.bf16.msra.mxu0 0
      %1598 = vmatprep.subr.bf16.mxu0 0
      %1599 = vmatpush1.bf16.msra.mxu0 0
      %1600 = vmatprep.subr.bf16.mxu0 0
      %1601 = vmatpush1.bf16.msra.mxu0 0
      %1602 = vmatprep.subr.bf16.mxu0 0
      %1603 = vmatpush1.bf16.msra.mxu0 0
      %1604 = vmatprep.subr.bf16.mxu0 0
      %1605 = vmatpush1.bf16.msra.mxu0 0
      %1606 = vmatprep.subr.bf16.mxu0 0
      %1607 = vmatpush1.bf16.msra.mxu0 0
      %1608 = vmatprep.subr.bf16.mxu0 0
      %1609 = vmatpush1.bf16.msra.mxu0 0
      %1610 = vmatprep.subr.bf16.mxu0 0
      %1611 = vmatpush1.bf16.msra.mxu0 0
      %1612 = vmatprep.subr.bf16.mxu0 0
      %1613 = vmatpush1.bf16.msra.mxu0 0
      %1614 = vmatprep.mubr.bf16.mxu0 0
      %1615 = vmatmul.mubr.bf16.gmra.mrb[0].mxu0 %v1574
      %v1616 = vpop.f32.mrb[0].mxu0
      %v1617 = vadd.f32 0.0, %v1616
      %v1618 = vpop.f32.mrb[0].mxu0
      %v1619 = vpop.f32.mrb[0].mxu0
      %v1620 = vadd.f32 0.0, %v1619
      %v1621 = vpop.f32.mrb[0].mxu0
      %1622 = vmatprep.mubr.bf16.mxu0 0
      %1623 = vmatmul.mubr.bf16.gmra.mrb[0].mxu0 %v1577
      %v1624 = vpop.f32.mrb[0].mxu0
      %v1625 = vadd.f32 0.0, %v1624
      %v1626 = vpop.f32.mrb[0].mxu0
      %v1627 = vpop.f32.mrb[0].mxu0
      %v1628 = vpop.f32.mrb[0].mxu0
      %1629 = vdwg.mxu0
      %v1631 = vsel %vm1374, %v1511, 0
      %v1634 = vsel %vm1374, %v1512, 0
      %v1637 = vsel %vm1521, %v1113, 0
      %1639 = vmatprep.subr.bf16.mxu0 0
      %1640 = vmatpush1.bf16.msra.mxu0 %v1112
      %1641 = vmatprep.subr.bf16.mxu0 0
      %1642 = vmatpush1.bf16.msra.mxu0 %v1637
      %1643 = vmatprep.subr.bf16.mxu0 0
      %1644 = vmatpush1.bf16.msra.mxu0 0
      %1645 = vmatprep.subr.bf16.mxu0 0
      %1646 = vmatpush1.bf16.msra.mxu0 0
      %1647 = vmatprep.subr.bf16.mxu0 0
      %1648 = vmatpush1.bf16.msra.mxu0 0
      %1649 = vmatprep.subr.bf16.mxu0 0
      %1650 = vmatpush1.bf16.msra.mxu0 0
      %1651 = vmatprep.subr.bf16.mxu0 0
      %1652 = vmatpush1.bf16.msra.mxu0 0
      %1653 = vmatprep.subr.bf16.mxu0 0
      %1654 = vmatpush1.bf16.msra.mxu0 0
      %1655 = vmatprep.subr.bf16.mxu0 0
      %1656 = vmatpush1.bf16.msra.mxu0 0
      %1657 = vmatprep.subr.bf16.mxu0 0
      %1658 = vmatpush1.bf16.msra.mxu0 0
      %1659 = vmatprep.subr.bf16.mxu0 0
      %1660 = vmatpush1.bf16.msra.mxu0 0
      %1661 = vmatprep.subr.bf16.mxu0 0
      %1662 = vmatpush1.bf16.msra.mxu0 0
      %1663 = vmatprep.subr.bf16.mxu0 0
      %1664 = vmatpush1.bf16.msra.mxu0 0
      %1665 = vmatprep.subr.bf16.mxu0 0
      %1666 = vmatpush1.bf16.msra.mxu0 0
      %1667 = vmatprep.subr.bf16.mxu0 0
      %1668 = vmatpush1.bf16.msra.mxu0 0
      %1669 = vmatprep.subr.bf16.mxu0 0
      %1670 = vmatpush1.bf16.msra.mxu0 0
      %1671 = vmatprep.mubr.bf16.mxu0 0
      %1672 = vmatmul.mubr.bf16.gmra.mrb[0].mxu0 %v1631
      %v1673 = vpop.f32.mrb[0].mxu0
      %v1674 = vadd.f32 0.0, %v1673
      %v1675 = vpop.f32.mrb[0].mxu0
      %v1676 = vpop.f32.mrb[0].mxu0
      %v1677 = vadd.f32 0.0, %v1676
      %v1678 = vpop.f32.mrb[0].mxu0
      %1679 = vmatprep.mubr.bf16.mxu0 0
      %1680 = vmatmul.mubr.bf16.gmra.mrb[0].mxu0 %v1634
      %v1681 = vpop.f32.mrb[0].mxu0
      %v1682 = vadd.f32 0.0, %v1681
      %v1683 = vpop.f32.mrb[0].mxu0
      %v1684 = vpop.f32.mrb[0].mxu0
      %v1685 = vpop.f32.mrb[0].mxu0
      %1686 = vdwg.mxu0
      %v1688 = vsel %vm1374, %v1513, 0
      %v1691 = vsel %vm1374, %v1514, 0
      %v1694 = vsel %vm1521, %v1115, 0
      %1696 = vmatprep.subr.bf16.mxu0 0
      %1697 = vmatpush1.bf16.msra.mxu0 %v1114
      %1698 = vmatprep.subr.bf16.mxu0 0
      %1699 = vmatpush1.bf16.msra.mxu0 %v1694
      %1700 = vmatprep.subr.bf16.mxu0 0
      %1701 = vmatpush1.bf16.msra.mxu0 0
      %1702 = vmatprep.subr.bf16.mxu0 0
      %1703 = vmatpush1.bf16.msra.mxu0 0
      %1704 = vmatprep.subr.bf16.mxu0 0
      %1705 = vmatpush1.bf16.msra.mxu0 0
      %1706 = vmatprep.subr.bf16.mxu0 0
      %1707 = vmatpush1.bf16.msra.mxu0 0
      %1708 = vmatprep.subr.bf16.mxu0 0
      %1709 = vmatpush1.bf16.msra.mxu0 0
      %1710 = vmatprep.subr.bf16.mxu0 0
      %1711 = vmatpush1.bf16.msra.mxu0 0
      %1712 = vmatprep.subr.bf16.mxu0 0
      %1713 = vmatpush1.bf16.msra.mxu0 0
      %1714 = vmatprep.subr.bf16.mxu0 0
      %1715 = vmatpush1.bf16.msra.mxu0 0
      %1716 = vmatprep.subr.bf16.mxu0 0
      %1717 = vmatpush1.bf16.msra.mxu0 0
      %1718 = vmatprep.subr.bf16.mxu0 0
      %1719 = vmatpush1.bf16.msra.mxu0 0
      %1720 = vmatprep.subr.bf16.mxu0 0
      %1721 = vmatpush1.bf16.msra.mxu0 0
      %1722 = vmatprep.subr.bf16.mxu0 0
      %1723 = vmatpush1.bf16.msra.mxu0 0
      %1724 = vmatprep.subr.bf16.mxu0 0
      %1725 = vmatpush1.bf16.msra.mxu0 0
      %1726 = vmatprep.subr.bf16.mxu0 0
      %1727 = vmatpush1.bf16.msra.mxu0 0
      %1728 = vmatprep.mubr.bf16.mxu0 0
      %1729 = vmatmul.mubr.bf16.gmra.mrb[0].mxu0 %v1688
      %v1730 = vpop.f32.mrb[0].mxu0
      %v1731 = vadd.f32 0.0, %v1730
      %v1732 = vpop.f32.mrb[0].mxu0
      %v1733 = vpop.f32.mrb[0].mxu0
      %v1734 = vadd.f32 0.0, %v1733
      %v1735 = vpop.f32.mrb[0].mxu0
      %1736 = vmatprep.mubr.bf16.mxu0 0
      %1737 = vmatmul.mubr.bf16.gmra.mrb[0].mxu0 %v1691
      %v1738 = vpop.f32.mrb[0].mxu0
      %v1739 = vadd.f32 0.0, %v1738
      %v1740 = vpop.f32.mrb[0].mxu0
      %v1741 = vpop.f32.mrb[0].mxu0
      %v1742 = vpop.f32.mrb[0].mxu0
      %1743 = vdwg.mxu0
      %1750 = vrot.lane.b32.xlu0 %v1674, 64
      %v1751 = vpop.permute.xlu0 %1750
      %1752 = vrot.lane.b32.xlu0 %v1677, 64
      %v1753 = vpop.permute.xlu0 %1752
      %1754 = vrot.lane.b32.xlu0 %v1682, 64
      %v1755 = vpop.permute.xlu0 %1754
      %1756 = vrot.lane.b32.xlu0 %v1731, 64
      %v1757 = vpop.permute.xlu0 %1756
      %1758 = vrot.lane.b32.xlu0 %v1734, 64
      %v1759 = vpop.permute.xlu0 %1758
      %1760 = vrot.lane.b32.xlu0 %v1739, 64
      %v1761 = vpop.permute.xlu0 %1760
      %v1768 = vsel %vm1116, %v1560, %v1751
      %v1769 = vsel %vm1116, %v1563, %v1753
      %v1770 = vsel %vm1116, %v1568, %v1755
      %v1771 = vsel %vm1116, %v1617, %v1757
      %v1772 = vsel %vm1116, %v1620, %v1759
      %v1773 = vsel %vm1116, %v1625, %v1761
      %v1774 = vpack.c.bf16 %v1769, %v1768
      %v1775 = vpack.c.bf16 %v1771, %v1770
      %v1776 = vpack.c.bf16 %v1773, %v1772
      %v1777 = vld [vmem:[%s581] sm:$0xf]
      %v1778 = vld [vmem:[%s581 + $0x4] sm:$0xf]
      %v1779 = vld [vmem:[%s581 + $0x8] sm:$0xf]
      %v1780 = vld [vmem:[%s581 + $0xc] sm:$0xf]
      %v1781 = vld [vmem:[%s581 + $0x10] sm:$0xf]
      %v1782 = vld [vmem:[%s581 + $0x14] sm:$0xf]
      %v1783 = vld [vmem:[%s581 + $0x18] sm:$0xf]
      %v1784 = vld [vmem:[%s581 + $0x1c] sm:$0xf]
      %v1785 = vld [vmem:[%s581 + $0x20] sm:$0xf]
      %v1786 = vld [vmem:[%s581 + $0x24] sm:$0xf]
      %v1787 = vld [vmem:[%s581 + $0x28] sm:$0xf]
      %v1788 = vld [vmem:[%s581 + $0x2c] sm:$0xf]
      %v1789 = vld [vmem:[%s581 + $0x30] sm:$0xf]
      %v1790 = vld [vmem:[%s581 + $0x34] sm:$0xf]
      %v1791 = vld [vmem:[%s581 + $0x38] sm:$0xf]
      %v1792 = vld [vmem:[%s581 + $0x3c] sm:$0xf]
      %v1793 = vld [vmem:[%s584] sm:$0x1]
      %v1795 = vlaneseq
      %v1796 = vshrl.u32 %v1795, 7
      %v1797 = vsub.s32 0, %v1796
      %v1798 = vrot.slane %v1793, %v1797
      %v1816 = vunpack.c.l.b16 %v1777
      %v1817 = vunpack.c.l.b16 %v1778
      %v1818 = vunpack.c.l.b16 %v1779
      %v1819 = vunpack.c.l.b16 %v1780
      %v1820 = vunpack.c.l.b16 %v1781
      %v1821 = vunpack.c.l.b16 %v1782
      %v1822 = vunpack.c.l.b16 %v1783
      %v1823 = vunpack.c.l.b16 %v1784
      %v1824 = vunpack.c.l.b16 %v1785
      %v1825 = vunpack.c.l.b16 %v1786
      %v1826 = vunpack.c.l.b16 %v1787
      %v1827 = vunpack.c.l.b16 %v1788
      %v1828 = vunpack.c.l.b16 %v1789
      %v1829 = vunpack.c.l.b16 %v1790
      %v1830 = vunpack.c.l.b16 %v1791
      %v1831 = vunpack.c.l.b16 %v1792
      %v1832 = vpack.c.b16 %v1817, %v1816
      %v1833 = vpack.c.b16 %v1819, %v1818
      %v1834 = vpack.c.b16 %v1821, %v1820
      %v1835 = vpack.c.b16 %v1823, %v1822
      %v1836 = vpack.c.b16 %v1825, %v1824
      %v1837 = vpack.c.b16 %v1827, %v1826
      %v1838 = vpack.c.b16 %v1829, %v1828
      %v1839 = vpack.c.b16 %v1831, %v1830
      %1848 = vmatprep.subr.bf16.mxu0 0
      %1849 = vmatpush1.bf16.msra.mxu0 %v1832
      %1850 = vmatprep.subr.bf16.mxu0 0
      %1851 = vmatpush1.bf16.msra.mxu0 %v1833
      %1852 = vmatprep.subr.bf16.mxu0 0
      %1853 = vmatpush1.bf16.msra.mxu0 %v1834
      %1854 = vmatprep.subr.bf16.mxu0 0
      %1855 = vmatpush1.bf16.msra.mxu0 %v1835
      %1856 = vmatprep.subr.bf16.mxu0 0
      %1857 = vmatpush1.bf16.msra.mxu0 %v1836
      %1858 = vmatprep.subr.bf16.mxu0 0
      %1859 = vmatpush1.bf16.msra.mxu0 %v1837
      %1860 = vmatprep.subr.bf16.mxu0 0
      %1861 = vmatpush1.bf16.msra.mxu0 %v1838
      %1862 = vmatprep.subr.bf16.mxu0 0
      %1863 = vmatpush1.bf16.msra.mxu0 %v1839
      %1864 = vmatprep.subr.bf16.mxu0 0
      %1865 = vmatpush1.bf16.msra.mxu0 0
      %1866 = vmatprep.subr.bf16.mxu0 0
      %1867 = vmatpush1.bf16.msra.mxu0 0
      %1868 = vmatprep.subr.bf16.mxu0 0
      %1869 = vmatpush1.bf16.msra.mxu0 0
      %1870 = vmatprep.subr.bf16.mxu0 0
      %1871 = vmatpush1.bf16.msra.mxu0 0
      %1872 = vmatprep.subr.bf16.mxu0 0
      %1873 = vmatpush1.bf16.msra.mxu0 0
      %1874 = vmatprep.subr.bf16.mxu0 0
      %1875 = vmatpush1.bf16.msra.mxu0 0
      %1876 = vmatprep.subr.bf16.mxu0 0
      %1877 = vmatpush1.bf16.msra.mxu0 0
      %1878 = vmatprep.subr.bf16.mxu0 0
      %1879 = vmatpush1.bf16.msra.mxu0 0
      %1880 = vmatprep.mubr.bf16.mxu0 0
      %1881 = vmatmul.mubr.bf16.gmra.mrb[0].mxu0 %v1774
      %v1882 = vpop.f32.mrb[0].mxu0
      %v1883 = vadd.f32 %v1798, %v1882
      %v1884 = vpop.f32.mrb[0].mxu0
      %v1885 = vpop.f32.mrb[0].mxu0
      %v1886 = vadd.f32 %v1798, %v1885
      %v1887 = vpop.f32.mrb[0].mxu0
      %1888 = vmatprep.mubr.bf16.mxu0 0
      %1889 = vmatmul.mubr.bf16.gmra.mrb[0].mxu0 %v1775
      %v1890 = vpop.f32.mrb[0].mxu0
      %v1891 = vadd.f32 %v1798, %v1890
      %v1892 = vpop.f32.mrb[0].mxu0
      %v1893 = vpop.f32.mrb[0].mxu0
      %v1894 = vadd.f32 %v1798, %v1893
      %v1895 = vpop.f32.mrb[0].mxu0
      %1896 = vmatprep.mubr.bf16.mxu0 0
      %1897 = vmatmul.mubr.bf16.gmra.mrb[0].mxu0 %v1776
      %v1898 = vpop.f32.mrb[0].mxu0
      %v1899 = vadd.f32 %v1798, %v1898
      %v1900 = vpop.f32.mrb[0].mxu0
      %v1901 = vpop.f32.mrb[0].mxu0
      %v1902 = vadd.f32 %v1798, %v1901
      %v1903 = vpop.f32.mrb[0].mxu0
      %1904 = vdwg.mxu0
      %v1905 = vadd.f32 %v1883, %v632
      %v1906 = vadd.f32 %v1886, %v633
      %v1907 = vadd.f32 %v1891, %v634
      %v1908 = vadd.f32 %v1894, %v635
      %v1909 = vadd.f32 %v1899, %v636
      %v1910 = vadd.f32 %v1902, %v637
      %v1911 = vld [vmem:[%s587] sm:$0x1]
      %v1912 = vld [vmem:[%s590] sm:$0x1]
      %1913 = vadd.xlane.f32.xlu0 %v1905
      %v1914 = vpop.xlane.xlu0 %1913
      %1915 = vadd.xlane.f32.xlu0 %v1906
      %v1916 = vpop.xlane.xlu0 %1915
      %1917 = vadd.xlane.f32.xlu0 %v1907
      %v1918 = vpop.xlane.xlu0 %1917
      %1919 = vadd.xlane.f32.xlu0 %v1908
      %v1920 = vpop.xlane.xlu0 %1919
      %1921 = vadd.xlane.f32.xlu0 %v1909
      %v1922 = vpop.xlane.xlu0 %1921
      %1923 = vadd.xlane.f32.xlu0 %v1910
      %v1924 = vpop.xlane.xlu0 %1923
      %v1925 = vmul.f32 %v1914, %v652
      %v1926 = vmul.f32 %v1916, %v652
      %v1927 = vmul.f32 %v1918, %v652
      %v1928 = vmul.f32 %v1920, %v652
      %v1929 = vmul.f32 %v1922, %v652
      %v1930 = vmul.f32 %v1924, %v652
      %v1931 = vsub.f32 %v1905, %v1925
      %v1932 = vsub.f32 %v1906, %v1926
      %v1933 = vsub.f32 %v1907, %v1927
      %v1934 = vsub.f32 %v1908, %v1928
      %v1935 = vsub.f32 %v1909, %v1929
      %v1936 = vsub.f32 %v1910, %v1930
      %v1937 = vmul.f32 %v1931, %v1931
      %v1938 = vmul.f32 %v1932, %v1932
      %v1939 = vmul.f32 %v1933, %v1933
      %v1940 = vmul.f32 %v1934, %v1934
      %v1941 = vmul.f32 %v1935, %v1935
      %v1942 = vmul.f32 %v1936, %v1936
      %1943 = vadd.xlane.f32.xlu0 %v1937
      %v1944 = vpop.xlane.xlu0 %1943
      %1945 = vadd.xlane.f32.xlu0 %v1938
      %v1946 = vpop.xlane.xlu0 %1945
      %1947 = vadd.xlane.f32.xlu0 %v1939
      %v1948 = vpop.xlane.xlu0 %1947
      %1949 = vadd.xlane.f32.xlu0 %v1940
      %v1950 = vpop.xlane.xlu0 %1949
      %1951 = vadd.xlane.f32.xlu0 %v1941
      %v1952 = vpop.xlane.xlu0 %1951
      %1953 = vadd.xlane.f32.xlu0 %v1942
      %v1954 = vpop.xlane.xlu0 %1953
      %v1955 = vmul.f32 %v1944, %v652
      %v1956 = vmul.f32 %v1946, %v652
      %v1957 = vmul.f32 %v1948, %v652
      %v1958 = vmul.f32 %v1950, %v652
      %v1959 = vmul.f32 %v1952, %v652
      %v1960 = vmul.f32 %v1954, %v652
      %v1961 = vadd.f32 %v1955, 1e-05
      %v1962 = vadd.f32 %v1956, 1e-05
      %v1963 = vadd.f32 %v1957, 1e-05
      %v1964 = vadd.f32 %v1958, 1e-05
      %v1965 = vadd.f32 %v1959, 1e-05
      %v1966 = vadd.f32 %v1960, 1e-05
      %v1967 = vrsqrt.pop %v1961
      %v1968 = vrsqrt.pop %v1962
      %v1969 = vrsqrt.pop %v1963
      %v1970 = vrsqrt.pop %v1964
      %v1971 = vrsqrt.pop %v1965
      %v1972 = vrsqrt.pop %v1966
      %v1973 = vmul.f32 %v1931, %v1967
      %v1974 = vmul.f32 %v1932, %v1968
      %v1975 = vmul.f32 %v1933, %v1969
      %v1976 = vmul.f32 %v1934, %v1970
      %v1977 = vmul.f32 %v1935, %v1971
      %v1978 = vmul.f32 %v1936, %v1972
      %v1980 = vlaneseq
      %v1981 = vshrl.u32 %v1980, 7
      %v1982 = vsub.s32 0, %v1981
      %v1983 = vrot.slane %v1911, %v1982
      %v1985 = vmul.f32 %v1973, %v1983
      %v1986 = vmul.f32 %v1974, %v1983
      %v1987 = vmul.f32 %v1975, %v1983
      %v1988 = vmul.f32 %v1976, %v1983
      %v1989 = vmul.f32 %v1977, %v1983
      %v1990 = vmul.f32 %v1978, %v1983
      %v1992 = vlaneseq
      %v1993 = vshrl.u32 %v1992, 7
      %v1994 = vsub.s32 0, %v1993
      %v1995 = vrot.slane %v1912, %v1994
      %v1997 = vadd.f32 %v1985, %v1995
      %v1998 = vadd.f32 %v1986, %v1995
      %v1999 = vadd.f32 %v1987, %v1995
      %v2000 = vadd.f32 %v1988, %v1995
      %v2001 = vadd.f32 %v1989, %v1995
      %v2002 = vadd.f32 %v1990, %v1995
      %v2003 = vpack.c.bf16 %v1998, %v1997
      %v2004 = vpack.c.bf16 %v2000, %v1999
      %v2005 = vpack.c.bf16 %v2002, %v2001
      %v2006 = vld [vmem:[%s595] sm:$0xff]
      %v2007 = vld [vmem:[%s595 + $0x8] sm:$0xff]
      %v2008 = vld [vmem:[%s595 + $0x10] sm:$0xff]
      %v2009 = vld [vmem:[%s595 + $0x18] sm:$0xff]
      %v2010 = vld [vmem:[%s595 + $0x20] sm:$0xff]
      %v2011 = vld [vmem:[%s595 + $0x28] sm:$0xff]
      %v2012 = vld [vmem:[%s595 + $0x30] sm:$0xff]
      %v2013 = vld [vmem:[%s595 + $0x38] sm:$0xff]
      %v2014 = vld [vmem:[%s595 + $0x40] sm:$0xff]
      %v2015 = vld [vmem:[%s595 + $0x48] sm:$0xff]
      %v2016 = vld [vmem:[%s595 + $0x50] sm:$0xff]
      %v2017 = vld [vmem:[%s595 + $0x58] sm:$0xff]
      %v2018 = vld [vmem:[%s595 + $0x60] sm:$0xff]
      %v2019 = vld [vmem:[%s595 + $0x68] sm:$0xff]
      %v2020 = vld [vmem:[%s595 + $0x70] sm:$0xff]
      %v2021 = vld [vmem:[%s595 + $0x78] sm:$0xff]
      %v2022 = vld [vmem:[%s599] sm:$0x3]
      %v2024 = vlaneseq
      %v2025 = vshrl.u32 %v2024, 7
      %v2026 = vsub.s32 0, %v2025
      %v2027 = vrot.slane %v2022, %v2026
      %v2028 = vlaneseq
      %v2029 = vshrl.u32 %v2028, 7
      %v2030 = vsub.s32 1, %v2029
      %v2031 = vrot.slane %v2022, %v2030
      %v2050 = vunpack.c.l.b16 %v2006
      %v2051 = vunpack.c.h.b16 %v2006
      %v2052 = vunpack.c.l.b16 %v2007
      %v2053 = vunpack.c.h.b16 %v2007
      %v2054 = vunpack.c.l.b16 %v2008
      %v2055 = vunpack.c.h.b16 %v2008
      %v2056 = vunpack.c.l.b16 %v2009
      %v2057 = vunpack.c.h.b16 %v2009
      %v2058 = vunpack.c.l.b16 %v2010
      %v2059 = vunpack.c.h.b16 %v2010
      %v2060 = vunpack.c.l.b16 %v2011
      %v2061 = vunpack.c.h.b16 %v2011
      %v2062 = vunpack.c.l.b16 %v2012
      %v2063 = vunpack.c.h.b16 %v2012
      %v2064 = vunpack.c.l.b16 %v2013
      %v2065 = vunpack.c.h.b16 %v2013
      %v2066 = vunpack.c.l.b16 %v2014
      %v2067 = vunpack.c.h.b16 %v2014
      %v2068 = vunpack.c.l.b16 %v2015
      %v2069 = vunpack.c.h.b16 %v2015
      %v2070 = vunpack.c.l.b16 %v2016
      %v2071 = vunpack.c.h.b16 %v2016
      %v2072 = vunpack.c.l.b16 %v2017
      %v2073 = vunpack.c.h.b16 %v2017
      %v2074 = vunpack.c.l.b16 %v2018
      %v2075 = vunpack.c.h.b16 %v2018
      %v2076 = vunpack.c.l.b16 %v2019
      %v2077 = vunpack.c.h.b16 %v2019
      %v2078 = vunpack.c.l.b16 %v2020
      %v2079 = vunpack.c.h.b16 %v2020
      %v2080 = vunpack.c.l.b16 %v2021
      %v2081 = vunpack.c.h.b16 %v2021
      %v2082 = vpack.c.b16 %v2052, %v2050
      %v2083 = vpack.c.b16 %v2053, %v2051
      %v2084 = vpack.c.b16 %v2056, %v2054
      %v2085 = vpack.c.b16 %v2057, %v2055
      %v2086 = vpack.c.b16 %v2060, %v2058
      %v2087 = vpack.c.b16 %v2061, %v2059
      %v2088 = vpack.c.b16 %v2064, %v2062
      %v2089 = vpack.c.b16 %v2065, %v2063
      %v2090 = vpack.c.b16 %v2068, %v2066
      %v2091 = vpack.c.b16 %v2069, %v2067
      %v2092 = vpack.c.b16 %v2072, %v2070
      %v2093 = vpack.c.b16 %v2073, %v2071
      %v2094 = vpack.c.b16 %v2076, %v2074
      %v2095 = vpack.c.b16 %v2077, %v2075
      %v2096 = vpack.c.b16 %v2080, %v2078
      %v2097 = vpack.c.b16 %v2081, %v2079
      %2114 = vmatprep.subr.bf16.mxu0 %v2083
      %2115 = vmatpush1.bf16.msra.mxu0 %v2082
      %2116 = vmatprep.subr.bf16.mxu0 %v2085
      %2117 = vmatpush1.bf16.msra.mxu0 %v2084
      %2118 = vmatprep.subr.bf16.mxu0 %v2087
      %2119 = vmatpush1.bf16.msra.mxu0 %v2086
      %2120 = vmatprep.subr.bf16.mxu0 %v2089
      %2121 = vmatpush1.bf16.msra.mxu0 %v2088
      %2122 = vmatprep.subr.bf16.mxu0 %v2091
      %2123 = vmatpush1.bf16.msra.mxu0 %v2090
      %2124 = vmatprep.subr.bf16.mxu0 %v2093
      %2125 = vmatpush1.bf16.msra.mxu0 %v2092
      %2126 = vmatprep.subr.bf16.mxu0 %v2095
      %2127 = vmatpush1.bf16.msra.mxu0 %v2094
      %2128 = vmatprep.subr.bf16.mxu0 %v2097
      %2129 = vmatpush1.bf16.msra.mxu0 %v2096
      %2130 = vmatprep.subr.bf16.mxu0 0
      %2131 = vmatpush1.bf16.msra.mxu0 0
      %2132 = vmatprep.subr.bf16.mxu0 0
      %2133 = vmatpush1.bf16.msra.mxu0 0
      %2134 = vmatprep.subr.bf16.mxu0 0
      %2135 = vmatpush1.bf16.msra.mxu0 0
      %2136 = vmatprep.subr.bf16.mxu0 0
      %2137 = vmatpush1.bf16.msra.mxu0 0
      %2138 = vmatprep.subr.bf16.mxu0 0
      %2139 = vmatpush1.bf16.msra.mxu0 0
      %2140 = vmatprep.subr.bf16.mxu0 0
      %2141 = vmatpush1.bf16.msra.mxu0 0
      %2142 = vmatprep.subr.bf16.mxu0 0
      %2143 = vmatpush1.bf16.msra.mxu0 0
      %2144 = vmatprep.subr.bf16.mxu0 0
      %2145 = vmatpush1.bf16.msra.mxu0 0
      %2146 = vmatprep.mubr.bf16.mxu0 0
      %2147 = vmatmul.mubr.bf16.gmra.mrb[0].mxu0 %v2003
      %v2148 = vpop.f32.mrb[0].mxu0
      %v2149 = vadd.f32 %v2027, %v2148
      %v2150 = vpop.f32.mrb[0].mxu0
      %v2151 = vadd.f32 %v2031, %v2150
      %v2152 = vpop.f32.mrb[0].mxu0
      %v2153 = vadd.f32 %v2027, %v2152
      %v2154 = vpop.f32.mrb[0].mxu0
      %v2155 = vadd.f32 %v2031, %v2154
      %2156 = vmatprep.mubr.bf16.mxu0 0
      %2157 = vmatmul.mubr.bf16.gmra.mrb[0].mxu0 %v2004
      %v2158 = vpop.f32.mrb[0].mxu0
      %v2159 = vadd.f32 %v2027, %v2158
      %v2160 = vpop.f32.mrb[0].mxu0
      %v2161 = vadd.f32 %v2031, %v2160
      %v2162 = vpop.f32.mrb[0].mxu0
      %v2163 = vadd.f32 %v2027, %v2162
      %v2164 = vpop.f32.mrb[0].mxu0
      %v2165 = vadd.f32 %v2031, %v2164
      %2166 = vmatprep.mubr.bf16.mxu0 0
      %2167 = vmatmul.mubr.bf16.gmra.mrb[0].mxu0 %v2005
      %v2168 = vpop.f32.mrb[0].mxu0
      %v2169 = vadd.f32 %v2027, %v2168
      %v2170 = vpop.f32.mrb[0].mxu0
      %v2171 = vadd.f32 %v2031, %v2170
      %v2172 = vpop.f32.mrb[0].mxu0
      %v2173 = vadd.f32 %v2027, %v2172
      %v2174 = vpop.f32.mrb[0].mxu0
      %v2175 = vadd.f32 %v2031, %v2174
      %2176 = vdwg.mxu0
      %v2177 = vmul.f32 %v2149, 0.5
      %v2178 = vmul.f32 %v2151, 0.5
      %v2179 = vmul.f32 %v2153, 0.5
      %v2180 = vmul.f32 %v2155, 0.5
      %v2181 = vmul.f32 %v2159, 0.5
      %v2182 = vmul.f32 %v2161, 0.5
      %v2183 = vmul.f32 %v2163, 0.5
      %v2184 = vmul.f32 %v2165, 0.5
      %v2185 = vmul.f32 %v2169, 0.5
      %v2186 = vmul.f32 %v2171, 0.5
      %v2187 = vmul.f32 %v2173, 0.5
      %v2188 = vmul.f32 %v2175, 0.5
      %v2189 = vmul.f32 %v2149, 0.044715
      %v2190 = vmul.f32 %v2151, 0.044715
      %v2191 = vmul.f32 %v2153, 0.044715
      %v2192 = vmul.f32 %v2155, 0.044715
      %v2193 = vmul.f32 %v2159, 0.044715
      %v2194 = vmul.f32 %v2161, 0.044715
      %v2195 = vmul.f32 %v2163, 0.044715
      %v2196 = vmul.f32 %v2165, 0.044715
      %v2197 = vmul.f32 %v2169, 0.044715
      %v2198 = vmul.f32 %v2171, 0.044715
      %v2199 = vmul.f32 %v2173, 0.044715
      %v2200 = vmul.f32 %v2175, 0.044715
      %v2201 = vmul.f32 %v2189, %v2149
      %v2202 = vmul.f32 %v2190, %v2151
      %v2203 = vmul.f32 %v2191, %v2153
      %v2204 = vmul.f32 %v2192, %v2155
      %v2205 = vmul.f32 %v2193, %v2159
      %v2206 = vmul.f32 %v2194, %v2161
      %v2207 = vmul.f32 %v2195, %v2163
      %v2208 = vmul.f32 %v2196, %v2165
      %v2209 = vmul.f32 %v2197, %v2169
      %v2210 = vmul.f32 %v2198, %v2171
      %v2211 = vmul.f32 %v2199, %v2173
      %v2212 = vmul.f32 %v2200, %v2175
      %v2213 = vmul.f32 %v2201, %v2149
      %v2214 = vmul.f32 %v2202, %v2151
      %v2215 = vmul.f32 %v2203, %v2153
      %v2216 = vmul.f32 %v2204, %v2155
      %v2217 = vmul.f32 %v2205, %v2159
      %v2218 = vmul.f32 %v2206, %v2161
      %v2219 = vmul.f32 %v2207, %v2163
      %v2220 = vmul.f32 %v2208, %v2165
      %v2221 = vmul.f32 %v2209, %v2169
      %v2222 = vmul.f32 %v2210, %v2171
      %v2223 = vmul.f32 %v2211, %v2173
      %v2224 = vmul.f32 %v2212, %v2175
      %v2225 = vadd.f32 %v2149, %v2213
      %v2226 = vadd.f32 %v2151, %v2214
      %v2227 = vadd.f32 %v2153, %v2215
      %v2228 = vadd.f32 %v2155, %v2216
      %v2229 = vadd.f32 %v2159, %v2217
      %v2230 = vadd.f32 %v2161, %v2218
      %v2231 = vadd.f32 %v2163, %v2219
      %v2232 = vadd.f32 %v2165, %v2220
      %v2233 = vadd.f32 %v2169, %v2221
      %v2234 = vadd.f32 %v2171, %v2222
      %v2235 = vadd.f32 %v2173, %v2223
      %v2236 = vadd.f32 %v2175, %v2224
      %v2237 = vmul.f32 %v2225, 0.7978846
      %v2238 = vmul.f32 %v2226, 0.7978846
      %v2239 = vmul.f32 %v2227, 0.7978846
      %v2240 = vmul.f32 %v2228, 0.7978846
      %v2241 = vmul.f32 %v2229, 0.7978846
      %v2242 = vmul.f32 %v2230, 0.7978846
      %v2243 = vmul.f32 %v2231, 0.7978846
      %v2244 = vmul.f32 %v2232, 0.7978846
      %v2245 = vmul.f32 %v2233, 0.7978846
      %v2246 = vmul.f32 %v2234, 0.7978846
      %v2247 = vmul.f32 %v2235, 0.7978846
      %v2248 = vmul.f32 %v2236, 0.7978846
      %v2249 = vtanh.pop %v2237
      %v2250 = vtanh.pop %v2238
      %v2251 = vtanh.pop %v2239
      %v2252 = vtanh.pop %v2240
      %v2253 = vtanh.pop %v2241
      %v2254 = vtanh.pop %v2242
      %v2255 = vtanh.pop %v2243
      %v2256 = vtanh.pop %v2244
      %v2257 = vtanh.pop %v2245
      %v2258 = vtanh.pop %v2246
      %v2259 = vtanh.pop %v2247
      %v2260 = vtanh.pop %v2248
      %v2261 = vadd.f32 %v2249, 1.0
      %v2262 = vadd.f32 %v2250, 1.0
      %v2263 = vadd.f32 %v2251, 1.0
      %v2264 = vadd.f32 %v2252, 1.0
      %v2265 = vadd.f32 %v2253, 1.0
      %v2266 = vadd.f32 %v2254, 1.0
      %v2267 = vadd.f32 %v2255, 1.0
      %v2268 = vadd.f32 %v2256, 1.0
      %v2269 = vadd.f32 %v2257, 1.0
      %v2270 = vadd.f32 %v2258, 1.0
      %v2271 = vadd.f32 %v2259, 1.0
      %v2272 = vadd.f32 %v2260, 1.0
      %v2273 = vmul.f32 %v2177, %v2261
      %v2274 = vmul.f32 %v2178, %v2262
      %v2275 = vmul.f32 %v2179, %v2263
      %v2276 = vmul.f32 %v2180, %v2264
      %v2277 = vmul.f32 %v2181, %v2265
      %v2278 = vmul.f32 %v2182, %v2266
      %v2279 = vmul.f32 %v2183, %v2267
      %v2280 = vmul.f32 %v2184, %v2268
      %v2281 = vmul.f32 %v2185, %v2269
      %v2282 = vmul.f32 %v2186, %v2270
      %v2283 = vmul.f32 %v2187, %v2271
      %v2284 = vmul.f32 %v2188, %v2272
      %v2285 = vpack.c.bf16 %v2275, %v2273
      %v2286 = vpack.c.bf16 %v2276, %v2274
      %v2287 = vpack.c.bf16 %v2279, %v2277
      %v2288 = vpack.c.bf16 %v2280, %v2278
      %v2289 = vpack.c.bf16 %v2283, %v2281
      %v2290 = vpack.c.bf16 %v2284, %v2282
      %v2291 = vld [vmem:[%s604] sm:$0xf]
      %v2292 = vld [vmem:[%s604 + $0x4] sm:$0xf]
      %v2293 = vld [vmem:[%s604 + $0x8] sm:$0xf]
      %v2294 = vld [vmem:[%s604 + $0xc] sm:$0xf]
      %v2295 = vld [vmem:[%s604 + $0x10] sm:$0xf]
      %v2296 = vld [vmem:[%s604 + $0x14] sm:$0xf]
      %v2297 = vld [vmem:[%s604 + $0x18] sm:$0xf]
      %v2298 = vld [vmem:[%s604 + $0x1c] sm:$0xf]
      %v2299 = vld [vmem:[%s604 + $0x20] sm:$0xf]
      %v2300 = vld [vmem:[%s604 + $0x24] sm:$0xf]
      %v2301 = vld [vmem:[%s604 + $0x28] sm:$0xf]
      %v2302 = vld [vmem:[%s604 + $0x2c] sm:$0xf]
      %v2303 = vld [vmem:[%s604 + $0x30] sm:$0xf]
      %v2304 = vld [vmem:[%s604 + $0x34] sm:$0xf]
      %v2305 = vld [vmem:[%s604 + $0x38] sm:$0xf]
      %v2306 = vld [vmem:[%s604 + $0x3c] sm:$0xf]
      %v2307 = vld [vmem:[%s604 + $0x40] sm:$0xf]
      %v2308 = vld [vmem:[%s604 + $0x44] sm:$0xf]
      %v2309 = vld [vmem:[%s604 + $0x48] sm:$0xf]
      %v2310 = vld [vmem:[%s604 + $0x4c] sm:$0xf]
      %v2311 = vld [vmem:[%s604 + $0x50] sm:$0xf]
      %v2312 = vld [vmem:[%s604 + $0x54] sm:$0xf]
      %v2313 = vld [vmem:[%s604 + $0x58] sm:$0xf]
      %v2314 = vld [vmem:[%s604 + $0x5c] sm:$0xf]
      %v2315 = vld [vmem:[%s604 + $0x60] sm:$0xf]
      %v2316 = vld [vmem:[%s604 + $0x64] sm:$0xf]
      %v2317 = vld [vmem:[%s604 + $0x68] sm:$0xf]
      %v2318 = vld [vmem:[%s604 + $0x6c] sm:$0xf]
      %v2319 = vld [vmem:[%s604 + $0x70] sm:$0xf]
      %v2320 = vld [vmem:[%s604 + $0x74] sm:$0xf]
      %v2321 = vld [vmem:[%s604 + $0x78] sm:$0xf]
      %v2322 = vld [vmem:[%s604 + $0x7c] sm:$0xf]
      %v2323 = vld [vmem:[%s607] sm:$0x1]
      %v2325 = vlaneseq
      %v2326 = vshrl.u32 %v2325, 7
      %v2327 = vsub.s32 0, %v2326
      %v2328 = vrot.slane %v2323, %v2327
      %v2362 = vunpack.c.l.b16 %v2291
      %v2363 = vunpack.c.l.b16 %v2292
      %v2364 = vunpack.c.l.b16 %v2293
      %v2365 = vunpack.c.l.b16 %v2294
      %v2366 = vunpack.c.l.b16 %v2295
      %v2367 = vunpack.c.l.b16 %v2296
      %v2368 = vunpack.c.l.b16 %v2297
      %v2369 = vunpack.c.l.b16 %v2298
      %v2370 = vunpack.c.l.b16 %v2299
      %v2371 = vunpack.c.l.b16 %v2300
      %v2372 = vunpack.c.l.b16 %v2301
      %v2373 = vunpack.c.l.b16 %v2302
      %v2374 = vunpack.c.l.b16 %v2303
      %v2375 = vunpack.c.l.b16 %v2304
      %v2376 = vunpack.c.l.b16 %v2305
      %v2377 = vunpack.c.l.b16 %v2306
      %v2378 = vunpack.c.l.b16 %v2307
      %v2379 = vunpack.c.l.b16 %v2308
      %v2380 = vunpack.c.l.b16 %v2309
      %v2381 = vunpack.c.l.b16 %v2310
      %v2382 = vunpack.c.l.b16 %v2311
      %v2383 = vunpack.c.l.b16 %v2312
      %v2384 = vunpack.c.l.b16 %v2313
      %v2385 = vunpack.c.l.b16 %v2314
      %v2386 = vunpack.c.l.b16 %v2315
      %v2387 = vunpack.c.l.b16 %v2316
      %v2388 = vunpack.c.l.b16 %v2317
      %v2389 = vunpack.c.l.b16 %v2318
      %v2390 = vunpack.c.l.b16 %v2319
      %v2391 = vunpack.c.l.b16 %v2320
      %v2392 = vunpack.c.l.b16 %v2321
      %v2393 = vunpack.c.l.b16 %v2322
      %v2394 = vpack.c.b16 %v2363, %v2362
      %v2395 = vpack.c.b16 %v2365, %v2364
      %v2396 = vpack.c.b16 %v2367, %v2366
      %v2397 = vpack.c.b16 %v2369, %v2368
      %v2398 = vpack.c.b16 %v2371, %v2370
      %v2399 = vpack.c.b16 %v2373, %v2372
      %v2400 = vpack.c.b16 %v2375, %v2374
      %v2401 = vpack.c.b16 %v2377, %v2376
      %v2402 = vpack.c.b16 %v2379, %v2378
      %v2403 = vpack.c.b16 %v2381, %v2380
      %v2404 = vpack.c.b16 %v2383, %v2382
      %v2405 = vpack.c.b16 %v2385, %v2384
      %v2406 = vpack.c.b16 %v2387, %v2386
      %v2407 = vpack.c.b16 %v2389, %v2388
      %v2408 = vpack.c.b16 %v2391, %v2390
      %v2409 = vpack.c.b16 %v2393, %v2392
      %2426 = vmatprep.subr.bf16.mxu0 0
      %2427 = vmatpush1.bf16.msra.mxu0 %v2394
      %2428 = vmatprep.subr.bf16.mxu0 0
      %2429 = vmatpush1.bf16.msra.mxu0 %v2395
      %2430 = vmatprep.subr.bf16.mxu0 0
      %2431 = vmatpush1.bf16.msra.mxu0 %v2396
      %2432 = vmatprep.subr.bf16.mxu0 0
      %2433 = vmatpush1.bf16.msra.mxu0 %v2397
      %2434 = vmatprep.subr.bf16.mxu0 0
      %2435 = vmatpush1.bf16.msra.mxu0 %v2398
      %2436 = vmatprep.subr.bf16.mxu0 0
      %2437 = vmatpush1.bf16.msra.mxu0 %v2399
      %2438 = vmatprep.subr.bf16.mxu0 0
      %2439 = vmatpush1.bf16.msra.mxu0 %v2400
      %2440 = vmatprep.subr.bf16.mxu0 0
      %2441 = vmatpush1.bf16.msra.mxu0 %v2401
      %2442 = vmatprep.subr.bf16.mxu0 0
      %2443 = vmatpush1.bf16.msra.mxu0 %v2402
      %2444 = vmatprep.subr.bf16.mxu0 0
      %2445 = vmatpush1.bf16.msra.mxu0 %v2403
      %2446 = vmatprep.subr.bf16.mxu0 0
      %2447 = vmatpush1.bf16.msra.mxu0 %v2404
      %2448 = vmatprep.subr.bf16.mxu0 0
      %2449 = vmatpush1.bf16.msra.mxu0 %v2405
      %2450 = vmatprep.subr.bf16.mxu0 0
      %2451 = vmatpush1.bf16.msra.mxu0 %v2406
      %2452 = vmatprep.subr.bf16.mxu0 0
      %2453 = vmatpush1.bf16.msra.mxu0 %v2407
      %2454 = vmatprep.subr.bf16.mxu0 0
      %2455 = vmatpush1.bf16.msra.mxu0 %v2408
      %2456 = vmatprep.subr.bf16.mxu0 0
      %2457 = vmatpush1.bf16.msra.mxu0 %v2409
      %2458 = vmatprep.mubr.bf16.mxu0 %v2286
      %2459 = vmatmul.mubr.bf16.gmra.mrb[0].mxu0 %v2285
      %v2460 = vpop.f32.mrb[0].mxu0
      %v2461 = vadd.f32 %v2328, %v2460
      %v2462 = vpop.f32.mrb[0].mxu0
      %v2463 = vpop.f32.mrb[0].mxu0
      %v2464 = vadd.f32 %v2328, %v2463
      %v2465 = vpop.f32.mrb[0].mxu0
      %2466 = vmatprep.mubr.bf16.mxu0 %v2288
      %2467 = vmatmul.mubr.bf16.gmra.mrb[0].mxu0 %v2287
      %v2468 = vpop.f32.mrb[0].mxu0
      %v2469 = vadd.f32 %v2328, %v2468
      %v2470 = vpop.f32.mrb[0].mxu0
      %v2471 = vpop.f32.mrb[0].mxu0
      %v2472 = vadd.f32 %v2328, %v2471
      %v2473 = vpop.f32.mrb[0].mxu0
      %2474 = vmatprep.mubr.bf16.mxu0 %v2290
      %2475 = vmatmul.mubr.bf16.gmra.mrb[0].mxu0 %v2289
      %v2476 = vpop.f32.mrb[0].mxu0
      %v2477 = vadd.f32 %v2328, %v2476
      %v2478 = vpop.f32.mrb[0].mxu0
      %v2479 = vpop.f32.mrb[0].mxu0
      %v2480 = vadd.f32 %v2328, %v2479
      %v2481 = vpop.f32.mrb[0].mxu0
      %2482 = vdwg.mxu0
      %v2483 = vadd.f32 %v2461, %v1905
      %v2484 = vadd.f32 %v2464, %v1906
      %v2485 = vadd.f32 %v2469, %v1907
      %v2486 = vadd.f32 %v2472, %v1908
      %v2487 = vadd.f32 %v2477, %v1909
      %v2488 = vadd.f32 %v2480, %v1910
      %2489 = vst [vmem:[#allocation2] sm:$0xff] %v2483
      %2490 = vst [vmem:[#allocation2 + $0x8] sm:$0xff] %v2484
      %2491 = vst [vmem:[#allocation2 + $0x10] sm:$0xff] %v2485
      %2492 = vst [vmem:[#allocation2 + $0x18] sm:$0xff] %v2486
      %2493 = vst [vmem:[#allocation2 + $0x20] sm:$0xff] %v2487
      %2494 = vst [vmem:[#allocation2 + $0x28] sm:$0xff] %v2488
      %p2495 = scmp.eq.s32.totalorder %s28, 1
      // Predicated region
      $region73: #{_lambda_.3} parent=67 // pred_check
        %p2496 = pneg %p2495
      $region74: #{_lambda_.3} parent=67 // pred_check_branch
        %2498 = sbr.rel (%p2496) target = $region76
      $region75: #{_lambda_.3} parent=67 // pred_region
        %2499 = vst [vmem:[%s613] sm:$0xff] %v2483
        %2500 = vst [vmem:[%s613 + $0x8] sm:$0xff] %v2484
        %2501 = vst [vmem:[%s613 + $0x10] sm:$0xff] %v2485
        %2502 = vst [vmem:[%s613 + $0x18] sm:$0xff] %v2486
        %2503 = vst [vmem:[%s613 + $0x20] sm:$0xff] %v2487
        %2504 = vst [vmem:[%s613 + $0x28] sm:$0xff] %v2488
      $region76: #{_lambda_.3} parent=67 // pred_fallthru
        _
      %s2505 = smul.u32 2, %s27
      %p2506 = scmp.lt.s32.totalorder %s2505, 3
      %s2507 = scalar_select %p2506, %s2505, 3
      %s2508 = smul.addr %s2507, 3
      %s2509 = smul.addr %s2508, 8
      %s2510 = scalar_lea.vmem %s12, %s2509
      // Predicated region
      $region77: #{_lambda_.3} parent=67 // pred_check
        %p2511 = pneg %p365
      $region78: #{_lambda_.3} parent=67 // pred_check_branch
        %2513 = sbr.rel (%p2511) target = $region80
      $region79: #{_lambda_.3} parent=67 // pred_region
        %s2514 = smul.u32 2, %s27
      $region80: #{_lambda_.3} parent=67 // pred_fallthru
        _
    $region68: #{_lambda_.3} parent=5 // pred_fallthru
      _
    %p2515 = scmp.le.s32.totalorder 2, %s18
    // Predicated region
    $region81: #{_lambda_.3} parent=5 // pred_check
      %p2516 = pneg %p2515
    $region82: #{_lambda_.3} parent=5 // pred_check_branch
      %2518 = sbr.rel (%p2516) target = $region84
    $region83: #{_lambda_.3} parent=5 // pred_region
      %s2519 = ssub.s32 %s18, 2
      // Predicated region
      $region85: #{_lambda_.3} parent=83 // pred_check
        %p2520 = pneg %p371
      $region86: #{_lambda_.3} parent=83 // pred_check_branch
        %2522 = sbr.rel (%p2520) target = $region88
      $region87: #{_lambda_.3} parent=83 // pred_region
        %s2523 = smul.u32 2, %s29
        %p2524 = scmp.lt.s32.totalorder %s2523, 3
        %s2525 = scalar_select %p2524, %s2523, 3
        %s2526 = smul.addr %s2525, 3
        %s2527 = smul.addr %s2526, 8
        %s2528 = scalar_lea.vmem %s12, %s2527
      $region88: #{_lambda_.3} parent=83 // pred_fallthru
        _
    $region84: #{_lambda_.3} parent=5 // pred_fallthru
      _
  $region6: #{_lambda_.3} parent=0 // loop_footer
    %s22 = sadd.s32 1, %s18
  $region7: #{_lambda_.3} parent=0 // loop_footer_branch
    %17 = sbr.rel target = $region3
  $region8: #{_lambda_.3} parent=0 // loop_exit
    _

</llo_original>
